<compile_context>
chip_gen: v7x
topology: tpu7x:2x2x1
jax: 0.10.0
libtpu: 0.0.40
codegen_flags: <defaults>
</compile_context>

<pallas_src>
import jax
import jax.numpy as jnp
from jax.experimental import pallas as pl
from jax.experimental.pallas import tpu as pltpu

INPUT_DIM = 40
LATENT_DIM = 8
HIDDEN1 = 128
HIDDEN2 = 64
CLS_HIDDEN = 16
NUM_CLASSES = 2
PAD = 128            # lane-padded feature width used throughout the kernel
LN_EPS = 1e-5        # nn.LayerNorm default
NORM_EPS = 1e-12     # F.normalize default

# Column layout inside the kernel / packed output slab.
RECON_OFF = 0                            # recon  -> cols [0, 40)
Z_OFF = INPUT_DIM                        # z      -> cols [40, 48)
LOGITS_OFF = INPUT_DIM + LATENT_DIM      # logits -> cols [48, 50)
CLS_OFF = 64                             # classifier hidden -> cols [64, 80)

# Packed weight planes (each (128,128), bf16). w4 and w7 share one plane.
W_ORDER = ("w1", "w2", "w3", "w4w7", "w5", "w6", "w8")
NUM_W = len(W_ORDER)

# Packed (1,128) rows: biases, LayerNorm gammas/betas, fused b4|b7, lane masks.
ROW_ORDER = ("b1", "g1", "be1", "b2", "g2", "be2", "b3",
             "b4b7", "g4", "be4", "b5", "g5", "be5", "b6", "b8",
             "mask_dec", "mask_cls")
(B1, G1, BE1, B2, G2, BE2, B3,
 B4B7, G4, BE4, B5, G5, BE5, B6, B8, MDEC, MCLS) = range(len(ROW_ORDER))
NUM_ROWS = len(ROW_ORDER)


def triplet_ae_kernel(x_ref, w_ref, p_ref, out_ref):
    x = x_ref[...]                       # (tb, 128) f32; cols >= 40 are zero

    def prow(i):                         # (1, 128) packed bias / LN-param / mask row
        return p_ref[i:i + 1, :]

    def matmul(h, layer, bias_row):
        # bf16 MXU matmul (weights already bf16), f32 accumulation + f32 bias.
        return (jnp.dot(h.astype(jnp.bfloat16), w_ref[layer],
                        preferred_element_type=jnp.float32) + prow(bias_row))

    def ln_relu(h, n, gamma_row, beta_row):
        # LayerNorm over the first n real features, then ReLU.  The reductions run
        # on the XLU as plain lane sums: padded lanes of h are exactly 0, so the
        # unmasked 128-lane sums equal the true sums over the n real features, and
        # var = E[h^2] - mean^2 avoids the (h - mean)-in-padded-lanes pitfall.
        inv_n = 1.0 / float(n)
        mean = jnp.sum(h, axis=-1, keepdims=True) * inv_n
        ex2 = jnp.sum(h * h, axis=-1, keepdims=True) * inv_n
        var = jnp.maximum(ex2 - mean * mean, 0.0)
        y = (h - mean) * jax.lax.rsqrt(var + LN_EPS) * prow(gamma_row) + prow(beta_row)
        # gamma/beta are zero in padded lanes -> padded lanes stay exactly 0.
        return jnp.maximum(y, 0.0)       # ReLU; eval-mode dropout = identity

    # ---------------- encoder ----------------
    h = matmul(x, 0, B1)                           # Linear(40 -> 128)
    h = ln_relu(h, HIDDEN1, G1, BE1)
    h = matmul(h, 1, B2)                           # Linear(128 -> 64)
    h = ln_relu(h, HIDDEN2, G2, BE2)
    z = matmul(h, 2, B3)                           # Linear(64 -> 8), cols [40, 48)

    # F.normalize(z, p=2, dim=1): clamp the norm at eps (sqrt is monotone, so
    # clamping the squared norm at eps^2 is identical) -> one EUP rsqrt.
    sumsq = jnp.sum(z * z, axis=-1, keepdims=True)
    z = z * jax.lax.rsqrt(jnp.maximum(sumsq, NORM_EPS * NORM_EPS))

    # -------- fused decoder-input + classifier-hidden matmul (w4 | w7) --------
    dc = matmul(z, 3, B4B7)                        # dec pre-LN cols [0,64), cls cols [64,80)
    dm = dc * prow(MDEC)                           # decoder branch, cols [0, 64)
    c = jnp.maximum(dc, 0.0) * prow(MCLS)          # ReLU classifier hidden, cols [64, 80)

    # ---------------- decoder ----------------
    d = ln_relu(dm, HIDDEN2, G4, BE4)
    d = matmul(d, 4, B5)                           # Linear(64 -> 128)
    d = ln_relu(d, HIDDEN1, G5, BE5)
    recon = matmul(d, 5, B6)                       # Linear(128 -> 40), cols [0, 40)

    # ---------------- classifier ----------------
    logits = matmul(c, 6, B8)                      # Linear(16 -> 2), cols [48, 50)

    # recon / z / logits occupy disjoint column bands and are exactly zero
    # elsewhere, so a single add packs them into one lane-dense output slab.
    out_ref[...] = recon + z + logits


# ------------------------------ host-side helpers ------------------------------

def _round_up(n, m):
    return (n + m - 1) // m * m


def _pad2(a, rows, cols, roff=0, coff=0):
    a = jnp.asarray(a, jnp.float32)
    if a.ndim == 1:
        a = a.reshape(1, -1)
    return jnp.zeros((rows, cols), jnp.float32).at[
        roff:roff + a.shape[0], coff:coff + a.shape[1]].set(a)


def pack_params(params):
    """Pack the 23 parameter tensors into one bf16 weight slab + one f32 row slab.

    Weights are stored [in, out] and zero-padded to (128, 128).  w3/b3 place z in
    columns [40,48); the fused w4|w7 plane reads z from rows [40,48) and writes the
    decoder band to cols [0,64) and the classifier-hidden band to cols [64,80);
    w8/b8 read rows [64,80) and write logits to cols [48,50).
    """
    w47 = (jnp.zeros((PAD, PAD), jnp.float32)
           .at[Z_OFF:Z_OFF + LATENT_DIM, 0:HIDDEN2].set(jnp.asarray(params["w4"], jnp.float32))
           .at[Z_OFF:Z_OFF + LATENT_DIM, CLS_OFF:CLS_OFF + CLS_HIDDEN].set(
               jnp.asarray(params["w7"], jnp.float32)))
    planes = [
        _pad2(params["w1"], PAD, PAD, 0, 0),
        _pad2(params["w2"], PAD, PAD, 0, 0),
        _pad2(params["w3"], PAD, PAD, 0, Z_OFF),
        w47,
        _pad2(params["w5"], PAD, PAD, 0, 0),
        _pad2(params["w6"], PAD, PAD, 0, 0),
        _pad2(params["w8"], PAD, PAD, CLS_OFF, LOGITS_OFF),
    ]
    w_stack = jnp.stack(planes).astype(jnp.bfloat16)

    def row(vec, coff=0):
        return _pad2(vec, 1, PAD, 0, coff)

    b4b7 = (jnp.zeros((1, PAD), jnp.float32)
            .at[0, 0:HIDDEN2].set(jnp.asarray(params["b4"], jnp.float32))
            .at[0, CLS_OFF:CLS_OFF + CLS_HIDDEN].set(jnp.asarray(params["b7"], jnp.float32)))
    mask_dec = jnp.zeros((1, PAD), jnp.float32).at[0, 0:HIDDEN2].set(1.0)
    mask_cls = jnp.zeros((1, PAD), jnp.float32).at[0, CLS_OFF:CLS_OFF + CLS_HIDDEN].set(1.0)

    p_stack = jnp.concatenate([
        row(params["b1"]), row(params["g1"]), row(params["be1"]),
        row(params["b2"]), row(params["g2"]), row(params["be2"]),
        row(params["b3"], Z_OFF),
        b4b7,
        row(params["g4"]), row(params["be4"]),
        row(params["b5"]), row(params["g5"]), row(params["be5"]),
        row(params["b6"]),
        row(params["b8"], LOGITS_OFF),
        mask_dec, mask_cls,
    ], axis=0)
    assert p_stack.shape == (NUM_ROWS, PAD)
    return w_stack, p_stack


def init_params(key, input_dim=INPUT_DIM, latent_dim=LATENT_DIM):
    """PyTorch-like uniform(+-1/sqrt(fan_in)) init; LayerNorm gamma=1, beta=0."""
    dims = {
        "w1": (input_dim, HIDDEN1), "w2": (HIDDEN1, HIDDEN2), "w3": (HIDDEN2, latent_dim),
        "w4": (latent_dim, HIDDEN2), "w5": (HIDDEN2, HIDDEN1), "w6": (HIDDEN1, input_dim),
        "w7": (latent_dim, CLS_HIDDEN), "w8": (CLS_HIDDEN, NUM_CLASSES),
    }
    params = {}
    keys = jax.random.split(key, 2 * len(dims))
    for i, (name, (fan_in, fan_out)) in enumerate(dims.items()):
        bound = 1.0 / jnp.sqrt(float(fan_in))
        params[name] = jax.random.uniform(
            keys[2 * i], (fan_in, fan_out), jnp.float32, -bound, bound)
        params["b" + name[1:]] = jax.random.uniform(
            keys[2 * i + 1], (fan_out,), jnp.float32, -bound, bound)
    for suffix, dim in (("1", HIDDEN1), ("2", HIDDEN2), ("4", HIDDEN2), ("5", HIDDEN1)):
        params["g" + suffix] = jnp.ones((dim,), jnp.float32)
        params["be" + suffix] = jnp.zeros((dim,), jnp.float32)
    return params


def _pallas_forward(xp, w_stack, p_stack, tb, single_buffer_consts):
    Bp = xp.shape[0]
    grid = (Bp // tb,)
    # Constant-index params: request a single buffer (no pointless double-buffer /
    # redundant second DMA); harmless to fall back to the default if unsupported.
    const_kw = {"pipeline_mode": pl.Buffered(1)} if single_buffer_consts else {}
    return pl.pallas_call(
        triplet_ae_kernel,
        out_shape=jax.ShapeDtypeStruct((Bp, PAD), jnp.float32),
        grid_spec=pltpu.PrefetchScalarGridSpec(
            num_scalar_prefetch=0,
            grid=grid,
            in_specs=[
                pl.BlockSpec((tb, PAD), lambda i: (i, 0)),                      # x tile
                pl.BlockSpec((NUM_W, PAD, PAD), lambda i: (0, 0, 0), **const_kw),   # weights
                pl.BlockSpec((NUM_ROWS, PAD), lambda i: (0, 0), **const_kw),        # rows
            ],
            out_specs=pl.BlockSpec((tb, PAD), lambda i: (i, 0)),                # packed slab
        ),
        compiler_params=pltpu.CompilerParams(
            dimension_semantics=("parallel",),     # grid steps shardable across TCs (v7x)
            vmem_limit_bytes=32 * 1024 * 1024,
        ),
    )(xp, w_stack, p_stack)


def triplet_autoencoder_forward(x, params, *, tile_b=512):
    """Eval-mode forward pass. Returns (x_recon, z, logits)."""
    B, D = x.shape
    assert D == INPUT_DIM

    w_stack, p_stack = pack_params(params)

    # Batch tiling: large sublane-aligned tiles, but capped so the grid keeps at
    # least 2 steps (so both v7x TensorCores get work when the batch allows it).
    B8 = _round_up(B, 8)
    half = max(8, _round_up(pl.cdiv(B8, 2), 8))
    tb = max(8, min(_round_up(tile_b, 8), half))
    Bp = _round_up(B, tb)

    # Lane-pad the input to 128 features (padded columns are zero; w1's padded
    # rows are zero so they contribute nothing).
    xp = jnp.zeros((Bp, PAD), jnp.float32).at[:B, :D].set(x.astype(jnp.float32))

    try:
        out = _pallas_forward(xp, w_stack, p_stack, tb, True)
        jax.block_until_ready(out)
    except Exception:
        out = _pallas_forward(xp, w_stack, p_stack, tb, False)

    recon = out[:B, RECON_OFF:RECON_OFF + INPUT_DIM]
    z = out[:B, Z_OFF:Z_OFF + LATENT_DIM]
    logits = out[:B, LOGITS_OFF:LOGITS_OFF + NUM_CLASSES]
    return recon, z, logits


def reference_forward(x, params):
    """Plain-JAX (f32) reference of the eval-mode forward pass."""
    def ln(h, g, b):
        mu = jnp.mean(h, axis=-1, keepdims=True)
        var = jnp.mean((h - mu) ** 2, axis=-1, keepdims=True)
        return (h - mu) / jnp.sqrt(var + LN_EPS) * g + b

    h = x @ params["w1"] + params["b1"]
    h = jnp.maximum(ln(h, params["g1"], params["be1"]), 0.0)
    h = h @ params["w2"] + params["b2"]
    h = jnp.maximum(ln(h, params["g2"], params["be2"]), 0.0)
    z = h @ params["w3"] + params["b3"]
    z = z / jnp.maximum(jnp.linalg.norm(z, axis=1, keepdims=True), NORM_EPS)
    d = z @ params["w4"] + params["b4"]
    d = jnp.maximum(ln(d, params["g4"], params["be4"]), 0.0)
    d = d @ params["w5"] + params["b5"]
    d = jnp.maximum(ln(d, params["g5"], params["be5"]), 0.0)
    recon = d @ params["w6"] + params["b6"]
    c = jnp.maximum(z @ params["w7"] + params["b7"], 0.0)
    logits = c @ params["w8"] + params["b8"]
    return recon, z, logits


if __name__ == "__main__":
    key = jax.random.PRNGKey(0)
    pkey, xkey = jax.random.split(key)

    params = init_params(pkey)
    B = 44  # not a multiple of 8 -> exercises batch padding; tile cap -> 2 grid steps
    x = jax.random.normal(xkey, (B, INPUT_DIM), jnp.float32)

    recon, z, logits = triplet_autoencoder_forward(x, params)
    jax.block_until_ready((recon, z, logits))

    r_ref, z_ref, l_ref = reference_forward(x, params)
    assert recon.shape == (B, INPUT_DIM)
    assert z.shape == (B, LATENT_DIM)
    assert logits.shape == (B, NUM_CLASSES)
    # bf16 matmuls -> tolerance loosened from 1e-4 (f32) to a few e-2.
    tol = dict(atol=3e-2, rtol=3e-2)
    assert jnp.allclose(recon, r_ref, **tol)
    assert jnp.allclose(z, z_ref, **tol)
    assert jnp.allclose(logits, l_ref, **tol)

    print("KERNEL_OK")
</pallas_src>

<mosaic_0001>
module attributes {stable_mosaic.version = 11 : i64} {
  func.func @triplet_ae_kernel(%arg0: i32, %arg1: memref<24x128xf32, #tpu.memory_space<vmem>>, %arg2: memref<7x128x128xbf16, #tpu.memory_space<vmem>>, %arg3: memref<17x128xf32, #tpu.memory_space<vmem>>, %arg4: memref<24x128xf32, #tpu.memory_space<vmem>>) attributes {dimension_semantics = [#tpu.dimension_semantics<parallel>], iteration_bounds = array<i64: 2>, scalar_prefetch = 0 : i64, scratch_operands = 0 : i64, tpu.core_type = #tpu.core_type<tc>, window_params = [{transform_indices = @transform_0, window_bounds = array<i64: 24, 128>}, {pipeline_mode = #tpu.pipeline_mode<synchronous>, transform_indices = @transform_1, window_bounds = array<i64: 7, 128, 128>}, {pipeline_mode = #tpu.pipeline_mode<synchronous>, transform_indices = @transform_2, window_bounds = array<i64: 17, 128>}, {transform_indices = @transform_3, window_bounds = array<i64: 24, 128>}]} {
    %c0 = arith.constant 0 : index
    %c0_0 = arith.constant 0 : index
    %0 = vector.load %arg1[%c0, %c0_0] : memref<24x128xf32, #tpu.memory_space<vmem>>, vector<24x128xf32>
    %1 = arith.truncf %0 : vector<24x128xf32> to vector<24x128xbf16>
    %c0_1 = arith.constant 0 : index
    %c0_2 = arith.constant 0 : index
    %c0_3 = arith.constant 0 : index
    %2 = vector.load %arg2[%c0_1, %c0_2, %c0_3] : memref<7x128x128xbf16, #tpu.memory_space<vmem>>, vector<1x128x128xbf16>
    %3 = vector.shape_cast %2 : vector<1x128x128xbf16> to vector<128x128xbf16>
    %cst = arith.constant dense<0.000000e+00> : vector<24x128xf32>
    %4 = tpu.matmul %1, %3, %cst {dimension_numbers = #tpu.dot_dimension_numbers<[1], [0], [0], [1], [0, 0, 1, 1], [], []>} : vector<24x128xbf16>, vector<128x128xbf16>, vector<24x128xf32> -> vector<24x128xf32>
    %c0_4 = arith.constant 0 : index
    %c0_5 = arith.constant 0 : index
    %5 = vector.load %arg3[%c0_4, %c0_5] : memref<17x128xf32, #tpu.memory_space<vmem>>, vector<1x128xf32>
    %6 = vector.broadcast %5 : vector<1x128xf32> to vector<24x128xf32>
    %7 = arith.addf %4, %6 : vector<24x128xf32>
    %cst_6 = arith.constant dense<0.000000e+00> : vector<24xf32>
    %8 = vector.multi_reduction <add>, %7, %cst_6 [1] : vector<24x128xf32> to vector<24xf32>
    %9 = vector.shape_cast %8 : vector<24xf32> to vector<24x1xf32>
    %cst_7 = arith.constant 7.812500e-03 : f32
    %10 = vector.broadcast %cst_7 : f32 to vector<24x1xf32>
    %11 = arith.mulf %9, %10 : vector<24x1xf32>
    %12 = arith.mulf %7, %7 : vector<24x128xf32>
    %cst_8 = arith.constant dense<0.000000e+00> : vector<24xf32>
    %13 = vector.multi_reduction <add>, %12, %cst_8 [1] : vector<24x128xf32> to vector<24xf32>
    %14 = vector.shape_cast %13 : vector<24xf32> to vector<24x1xf32>
    %cst_9 = arith.constant 7.812500e-03 : f32
    %15 = vector.broadcast %cst_9 : f32 to vector<24x1xf32>
    %16 = arith.mulf %14, %15 : vector<24x1xf32>
    %17 = arith.mulf %11, %11 : vector<24x1xf32>
    %18 = arith.subf %16, %17 : vector<24x1xf32>
    %cst_10 = arith.constant 0.000000e+00 : f32
    %19 = vector.broadcast %cst_10 : f32 to vector<24x1xf32>
    %20 = arith.maximumf %18, %19 : vector<24x1xf32>
    %21 = vector.broadcast %11 : vector<24x1xf32> to vector<24x128xf32>
    %22 = arith.subf %7, %21 : vector<24x128xf32>
    %cst_11 = arith.constant 9.99999974E-6 : f32
    %23 = vector.broadcast %cst_11 : f32 to vector<24x1xf32>
    %24 = arith.addf %20, %23 : vector<24x1xf32>
    %25 = math.rsqrt %24 : vector<24x1xf32>
    %26 = vector.broadcast %25 : vector<24x1xf32> to vector<24x128xf32>
    %27 = arith.mulf %22, %26 : vector<24x128xf32>
    %c1 = arith.constant 1 : index
    %c0_12 = arith.constant 0 : index
    %28 = vector.load %arg3[%c1, %c0_12] : memref<17x128xf32, #tpu.memory_space<vmem>>, vector<1x128xf32>
    %29 = vector.broadcast %28 : vector<1x128xf32> to vector<24x128xf32>
    %30 = arith.mulf %27, %29 : vector<24x128xf32>
    %c2 = arith.constant 2 : index
    %c0_13 = arith.constant 0 : index
    %31 = vector.load %arg3[%c2, %c0_13] : memref<17x128xf32, #tpu.memory_space<vmem>>, vector<1x128xf32>
    %32 = vector.broadcast %31 : vector<1x128xf32> to vector<24x128xf32>
    %33 = arith.addf %30, %32 : vector<24x128xf32>
    %cst_14 = arith.constant 0.000000e+00 : f32
    %34 = vector.broadcast %cst_14 : f32 to vector<24x128xf32>
    %35 = arith.maximumf %33, %34 : vector<24x128xf32>
    %36 = arith.truncf %35 : vector<24x128xf32> to vector<24x128xbf16>
    %c1_15 = arith.constant 1 : index
    %c0_16 = arith.constant 0 : index
    %c0_17 = arith.constant 0 : index
    %37 = vector.load %arg2[%c1_15, %c0_16, %c0_17] : memref<7x128x128xbf16, #tpu.memory_space<vmem>>, vector<1x128x128xbf16>
    %38 = vector.shape_cast %37 : vector<1x128x128xbf16> to vector<128x128xbf16>
    %cst_18 = arith.constant dense<0.000000e+00> : vector<24x128xf32>
    %39 = tpu.matmul %36, %38, %cst_18 {dimension_numbers = #tpu.dot_dimension_numbers<[1], [0], [0], [1], [0, 0, 1, 1], [], []>} : vector<24x128xbf16>, vector<128x128xbf16>, vector<24x128xf32> -> vector<24x128xf32>
    %c3 = arith.constant 3 : index
    %c0_19 = arith.constant 0 : index
    %40 = vector.load %arg3[%c3, %c0_19] : memref<17x128xf32, #tpu.memory_space<vmem>>, vector<1x128xf32>
    %41 = vector.broadcast %40 : vector<1x128xf32> to vector<24x128xf32>
    %42 = arith.addf %39, %41 : vector<24x128xf32>
    %cst_20 = arith.constant dense<0.000000e+00> : vector<24xf32>
    %43 = vector.multi_reduction <add>, %42, %cst_20 [1] : vector<24x128xf32> to vector<24xf32>
    %44 = vector.shape_cast %43 : vector<24xf32> to vector<24x1xf32>
    %cst_21 = arith.constant 1.562500e-02 : f32
    %45 = vector.broadcast %cst_21 : f32 to vector<24x1xf32>
    %46 = arith.mulf %44, %45 : vector<24x1xf32>
    %47 = arith.mulf %42, %42 : vector<24x128xf32>
    %cst_22 = arith.constant dense<0.000000e+00> : vector<24xf32>
    %48 = vector.multi_reduction <add>, %47, %cst_22 [1] : vector<24x128xf32> to vector<24xf32>
    %49 = vector.shape_cast %48 : vector<24xf32> to vector<24x1xf32>
    %cst_23 = arith.constant 1.562500e-02 : f32
    %50 = vector.broadcast %cst_23 : f32 to vector<24x1xf32>
    %51 = arith.mulf %49, %50 : vector<24x1xf32>
    %52 = arith.mulf %46, %46 : vector<24x1xf32>
    %53 = arith.subf %51, %52 : vector<24x1xf32>
    %cst_24 = arith.constant 0.000000e+00 : f32
    %54 = vector.broadcast %cst_24 : f32 to vector<24x1xf32>
    %55 = arith.maximumf %53, %54 : vector<24x1xf32>
    %56 = vector.broadcast %46 : vector<24x1xf32> to vector<24x128xf32>
    %57 = arith.subf %42, %56 : vector<24x128xf32>
    %cst_25 = arith.constant 9.99999974E-6 : f32
    %58 = vector.broadcast %cst_25 : f32 to vector<24x1xf32>
    %59 = arith.addf %55, %58 : vector<24x1xf32>
    %60 = math.rsqrt %59 : vector<24x1xf32>
    %61 = vector.broadcast %60 : vector<24x1xf32> to vector<24x128xf32>
    %62 = arith.mulf %57, %61 : vector<24x128xf32>
    %c4 = arith.constant 4 : index
    %c0_26 = arith.constant 0 : index
    %63 = vector.load %arg3[%c4, %c0_26] : memref<17x128xf32, #tpu.memory_space<vmem>>, vector<1x128xf32>
    %64 = vector.broadcast %63 : vector<1x128xf32> to vector<24x128xf32>
    %65 = arith.mulf %62, %64 : vector<24x128xf32>
    %c5 = arith.constant 5 : index
    %c0_27 = arith.constant 0 : index
    %66 = vector.load %arg3[%c5, %c0_27] : memref<17x128xf32, #tpu.memory_space<vmem>>, vector<1x128xf32>
    %67 = vector.broadcast %66 : vector<1x128xf32> to vector<24x128xf32>
    %68 = arith.addf %65, %67 : vector<24x128xf32>
    %cst_28 = arith.constant 0.000000e+00 : f32
    %69 = vector.broadcast %cst_28 : f32 to vector<24x128xf32>
    %70 = arith.maximumf %68, %69 : vector<24x128xf32>
    %71 = arith.truncf %70 : vector<24x128xf32> to vector<24x128xbf16>
    %c2_29 = arith.constant 2 : index
    %c0_30 = arith.constant 0 : index
    %c0_31 = arith.constant 0 : index
    %72 = vector.load %arg2[%c2_29, %c0_30, %c0_31] : memref<7x128x128xbf16, #tpu.memory_space<vmem>>, vector<1x128x128xbf16>
    %73 = vector.shape_cast %72 : vector<1x128x128xbf16> to vector<128x128xbf16>
    %cst_32 = arith.constant dense<0.000000e+00> : vector<24x128xf32>
    %74 = tpu.matmul %71, %73, %cst_32 {dimension_numbers = #tpu.dot_dimension_numbers<[1], [0], [0], [1], [0, 0, 1, 1], [], []>} : vector<24x128xbf16>, vector<128x128xbf16>, vector<24x128xf32> -> vector<24x128xf32>
    %c6 = arith.constant 6 : index
    %c0_33 = arith.constant 0 : index
    %75 = vector.load %arg3[%c6, %c0_33] : memref<17x128xf32, #tpu.memory_space<vmem>>, vector<1x128xf32>
    %76 = vector.broadcast %75 : vector<1x128xf32> to vector<24x128xf32>
    %77 = arith.addf %74, %76 : vector<24x128xf32>
    %78 = arith.mulf %77, %77 : vector<24x128xf32>
    %cst_34 = arith.constant dense<0.000000e+00> : vector<24xf32>
    %79 = vector.multi_reduction <add>, %78, %cst_34 [1] : vector<24x128xf32> to vector<24xf32>
    %80 = vector.shape_cast %79 : vector<24xf32> to vector<24x1xf32>
    %cst_35 = arith.constant 1.000000e-24 : f32
    %81 = vector.broadcast %cst_35 : f32 to vector<24x1xf32>
    %82 = arith.maximumf %80, %81 : vector<24x1xf32>
    %83 = math.rsqrt %82 : vector<24x1xf32>
    %84 = vector.broadcast %83 : vector<24x1xf32> to vector<24x128xf32>
    %85 = arith.mulf %77, %84 : vector<24x128xf32>
    %86 = arith.truncf %85 : vector<24x128xf32> to vector<24x128xbf16>
    %c3_36 = arith.constant 3 : index
    %c0_37 = arith.constant 0 : index
    %c0_38 = arith.constant 0 : index
    %87 = vector.load %arg2[%c3_36, %c0_37, %c0_38] : memref<7x128x128xbf16, #tpu.memory_space<vmem>>, vector<1x128x128xbf16>
    %88 = vector.shape_cast %87 : vector<1x128x128xbf16> to vector<128x128xbf16>
    %cst_39 = arith.constant dense<0.000000e+00> : vector<24x128xf32>
    %89 = tpu.matmul %86, %88, %cst_39 {dimension_numbers = #tpu.dot_dimension_numbers<[1], [0], [0], [1], [0, 0, 1, 1], [], []>} : vector<24x128xbf16>, vector<128x128xbf16>, vector<24x128xf32> -> vector<24x128xf32>
    %c7 = arith.constant 7 : index
    %c0_40 = arith.constant 0 : index
    %90 = vector.load %arg3[%c7, %c0_40] : memref<17x128xf32, #tpu.memory_space<vmem>>, vector<1x128xf32>
    %91 = vector.broadcast %90 : vector<1x128xf32> to vector<24x128xf32>
    %92 = arith.addf %89, %91 : vector<24x128xf32>
    %c15 = arith.constant 15 : index
    %c0_41 = arith.constant 0 : index
    %93 = vector.load %arg3[%c15, %c0_41] : memref<17x128xf32, #tpu.memory_space<vmem>>, vector<1x128xf32>
    %94 = vector.broadcast %93 : vector<1x128xf32> to vector<24x128xf32>
    %95 = arith.mulf %92, %94 : vector<24x128xf32>
    %cst_42 = arith.constant 0.000000e+00 : f32
    %96 = vector.broadcast %cst_42 : f32 to vector<24x128xf32>
    %97 = arith.maximumf %92, %96 : vector<24x128xf32>
    %c16 = arith.constant 16 : index
    %c0_43 = arith.constant 0 : index
    %98 = vector.load %arg3[%c16, %c0_43] : memref<17x128xf32, #tpu.memory_space<vmem>>, vector<1x128xf32>
    %99 = vector.broadcast %98 : vector<1x128xf32> to vector<24x128xf32>
    %100 = arith.mulf %97, %99 : vector<24x128xf32>
    %cst_44 = arith.constant dense<0.000000e+00> : vector<24xf32>
    %101 = vector.multi_reduction <add>, %95, %cst_44 [1] : vector<24x128xf32> to vector<24xf32>
    %102 = vector.shape_cast %101 : vector<24xf32> to vector<24x1xf32>
    %cst_45 = arith.constant 1.562500e-02 : f32
    %103 = vector.broadcast %cst_45 : f32 to vector<24x1xf32>
    %104 = arith.mulf %102, %103 : vector<24x1xf32>
    %105 = arith.mulf %95, %95 : vector<24x128xf32>
    %cst_46 = arith.constant dense<0.000000e+00> : vector<24xf32>
    %106 = vector.multi_reduction <add>, %105, %cst_46 [1] : vector<24x128xf32> to vector<24xf32>
    %107 = vector.shape_cast %106 : vector<24xf32> to vector<24x1xf32>
    %cst_47 = arith.constant 1.562500e-02 : f32
    %108 = vector.broadcast %cst_47 : f32 to vector<24x1xf32>
    %109 = arith.mulf %107, %108 : vector<24x1xf32>
    %110 = arith.mulf %104, %104 : vector<24x1xf32>
    %111 = arith.subf %109, %110 : vector<24x1xf32>
    %cst_48 = arith.constant 0.000000e+00 : f32
    %112 = vector.broadcast %cst_48 : f32 to vector<24x1xf32>
    %113 = arith.maximumf %111, %112 : vector<24x1xf32>
    %114 = vector.broadcast %104 : vector<24x1xf32> to vector<24x128xf32>
    %115 = arith.subf %95, %114 : vector<24x128xf32>
    %cst_49 = arith.constant 9.99999974E-6 : f32
    %116 = vector.broadcast %cst_49 : f32 to vector<24x1xf32>
    %117 = arith.addf %113, %116 : vector<24x1xf32>
    %118 = math.rsqrt %117 : vector<24x1xf32>
    %119 = vector.broadcast %118 : vector<24x1xf32> to vector<24x128xf32>
    %120 = arith.mulf %115, %119 : vector<24x128xf32>
    %c8 = arith.constant 8 : index
    %c0_50 = arith.constant 0 : index
    %121 = vector.load %arg3[%c8, %c0_50] : memref<17x128xf32, #tpu.memory_space<vmem>>, vector<1x128xf32>
    %122 = vector.broadcast %121 : vector<1x128xf32> to vector<24x128xf32>
    %123 = arith.mulf %120, %122 : vector<24x128xf32>
    %c9 = arith.constant 9 : index
    %c0_51 = arith.constant 0 : index
    %124 = vector.load %arg3[%c9, %c0_51] : memref<17x128xf32, #tpu.memory_space<vmem>>, vector<1x128xf32>
    %125 = vector.broadcast %124 : vector<1x128xf32> to vector<24x128xf32>
    %126 = arith.addf %123, %125 : vector<24x128xf32>
    %cst_52 = arith.constant 0.000000e+00 : f32
    %127 = vector.broadcast %cst_52 : f32 to vector<24x128xf32>
    %128 = arith.maximumf %126, %127 : vector<24x128xf32>
    %129 = arith.truncf %128 : vector<24x128xf32> to vector<24x128xbf16>
    %c4_53 = arith.constant 4 : index
    %c0_54 = arith.constant 0 : index
    %c0_55 = arith.constant 0 : index
    %130 = vector.load %arg2[%c4_53, %c0_54, %c0_55] : memref<7x128x128xbf16, #tpu.memory_space<vmem>>, vector<1x128x128xbf16>
    %131 = vector.shape_cast %130 : vector<1x128x128xbf16> to vector<128x128xbf16>
    %cst_56 = arith.constant dense<0.000000e+00> : vector<24x128xf32>
    %132 = tpu.matmul %129, %131, %cst_56 {dimension_numbers = #tpu.dot_dimension_numbers<[1], [0], [0], [1], [0, 0, 1, 1], [], []>} : vector<24x128xbf16>, vector<128x128xbf16>, vector<24x128xf32> -> vector<24x128xf32>
    %c10 = arith.constant 10 : index
    %c0_57 = arith.constant 0 : index
    %133 = vector.load %arg3[%c10, %c0_57] : memref<17x128xf32, #tpu.memory_space<vmem>>, vector<1x128xf32>
    %134 = vector.broadcast %133 : vector<1x128xf32> to vector<24x128xf32>
    %135 = arith.addf %132, %134 : vector<24x128xf32>
    %cst_58 = arith.constant dense<0.000000e+00> : vector<24xf32>
    %136 = vector.multi_reduction <add>, %135, %cst_58 [1] : vector<24x128xf32> to vector<24xf32>
    %137 = vector.shape_cast %136 : vector<24xf32> to vector<24x1xf32>
    %cst_59 = arith.constant 7.812500e-03 : f32
    %138 = vector.broadcast %cst_59 : f32 to vector<24x1xf32>
    %139 = arith.mulf %137, %138 : vector<24x1xf32>
    %140 = arith.mulf %135, %135 : vector<24x128xf32>
    %cst_60 = arith.constant dense<0.000000e+00> : vector<24xf32>
    %141 = vector.multi_reduction <add>, %140, %cst_60 [1] : vector<24x128xf32> to vector<24xf32>
    %142 = vector.shape_cast %141 : vector<24xf32> to vector<24x1xf32>
    %cst_61 = arith.constant 7.812500e-03 : f32
    %143 = vector.broadcast %cst_61 : f32 to vector<24x1xf32>
    %144 = arith.mulf %142, %143 : vector<24x1xf32>
    %145 = arith.mulf %139, %139 : vector<24x1xf32>
    %146 = arith.subf %144, %145 : vector<24x1xf32>
    %cst_62 = arith.constant 0.000000e+00 : f32
    %147 = vector.broadcast %cst_62 : f32 to vector<24x1xf32>
    %148 = arith.maximumf %146, %147 : vector<24x1xf32>
    %149 = vector.broadcast %139 : vector<24x1xf32> to vector<24x128xf32>
    %150 = arith.subf %135, %149 : vector<24x128xf32>
    %cst_63 = arith.constant 9.99999974E-6 : f32
    %151 = vector.broadcast %cst_63 : f32 to vector<24x1xf32>
    %152 = arith.addf %148, %151 : vector<24x1xf32>
    %153 = math.rsqrt %152 : vector<24x1xf32>
    %154 = vector.broadcast %153 : vector<24x1xf32> to vector<24x128xf32>
    %155 = arith.mulf %150, %154 : vector<24x128xf32>
    %c11 = arith.constant 11 : index
    %c0_64 = arith.constant 0 : index
    %156 = vector.load %arg3[%c11, %c0_64] : memref<17x128xf32, #tpu.memory_space<vmem>>, vector<1x128xf32>
    %157 = vector.broadcast %156 : vector<1x128xf32> to vector<24x128xf32>
    %158 = arith.mulf %155, %157 : vector<24x128xf32>
    %c12 = arith.constant 12 : index
    %c0_65 = arith.constant 0 : index
    %159 = vector.load %arg3[%c12, %c0_65] : memref<17x128xf32, #tpu.memory_space<vmem>>, vector<1x128xf32>
    %160 = vector.broadcast %159 : vector<1x128xf32> to vector<24x128xf32>
    %161 = arith.addf %158, %160 : vector<24x128xf32>
    %cst_66 = arith.constant 0.000000e+00 : f32
    %162 = vector.broadcast %cst_66 : f32 to vector<24x128xf32>
    %163 = arith.maximumf %161, %162 : vector<24x128xf32>
    %164 = arith.truncf %163 : vector<24x128xf32> to vector<24x128xbf16>
    %c5_67 = arith.constant 5 : index
    %c0_68 = arith.constant 0 : index
    %c0_69 = arith.constant 0 : index
    %165 = vector.load %arg2[%c5_67, %c0_68, %c0_69] : memref<7x128x128xbf16, #tpu.memory_space<vmem>>, vector<1x128x128xbf16>
    %166 = vector.shape_cast %165 : vector<1x128x128xbf16> to vector<128x128xbf16>
    %cst_70 = arith.constant dense<0.000000e+00> : vector<24x128xf32>
    %167 = tpu.matmul %164, %166, %cst_70 {dimension_numbers = #tpu.dot_dimension_numbers<[1], [0], [0], [1], [0, 0, 1, 1], [], []>} : vector<24x128xbf16>, vector<128x128xbf16>, vector<24x128xf32> -> vector<24x128xf32>
    %c13 = arith.constant 13 : index
    %c0_71 = arith.constant 0 : index
    %168 = vector.load %arg3[%c13, %c0_71] : memref<17x128xf32, #tpu.memory_space<vmem>>, vector<1x128xf32>
    %169 = vector.broadcast %168 : vector<1x128xf32> to vector<24x128xf32>
    %170 = arith.addf %167, %169 : vector<24x128xf32>
    %171 = arith.truncf %100 : vector<24x128xf32> to vector<24x128xbf16>
    %c6_72 = arith.constant 6 : index
    %c0_73 = arith.constant 0 : index
    %c0_74 = arith.constant 0 : index
    %172 = vector.load %arg2[%c6_72, %c0_73, %c0_74] : memref<7x128x128xbf16, #tpu.memory_space<vmem>>, vector<1x128x128xbf16>
    %173 = vector.shape_cast %172 : vector<1x128x128xbf16> to vector<128x128xbf16>
    %cst_75 = arith.constant dense<0.000000e+00> : vector<24x128xf32>
    %174 = tpu.matmul %171, %173, %cst_75 {dimension_numbers = #tpu.dot_dimension_numbers<[1], [0], [0], [1], [0, 0, 1, 1], [], []>} : vector<24x128xbf16>, vector<128x128xbf16>, vector<24x128xf32> -> vector<24x128xf32>
    %c14 = arith.constant 14 : index
    %c0_76 = arith.constant 0 : index
    %175 = vector.load %arg3[%c14, %c0_76] : memref<17x128xf32, #tpu.memory_space<vmem>>, vector<1x128xf32>
    %176 = vector.broadcast %175 : vector<1x128xf32> to vector<24x128xf32>
    %177 = arith.addf %174, %176 : vector<24x128xf32>
    %178 = arith.addf %170, %85 : vector<24x128xf32>
    %179 = arith.addf %178, %177 : vector<24x128xf32>
    %c0_77 = arith.constant 0 : index
    %c0_78 = arith.constant 0 : index
    %180 = vector.load %arg4[%c0_77, %c0_78] : memref<24x128xf32, #tpu.memory_space<vmem>>, vector<24x128xf32>
    tpu.vector_store %arg4[%c0_77, %c0_78], %179 {strides = array<i32>} : memref<24x128xf32, #tpu.memory_space<vmem>>, vector<24x128xf32>,
    return
  }
  func.func @transform_0(%arg0: i32) -> (i32, i32) {
    %c0_i32 = arith.constant 0 : i32
    %c0_i32_0 = arith.constant 0 : i32
    return %arg0, %c0_i32 : i32, i32
  }
  func.func @transform_1(%arg0: i32) -> (i32, i32, i32) {
    %c0_i32 = arith.constant 0 : i32
    %c0_i32_0 = arith.constant 0 : i32
    %c0_i32_1 = arith.constant 0 : i32
    %c0_i32_2 = arith.constant 0 : i32
    return %c0_i32, %c0_i32_0, %c0_i32_1 : i32, i32, i32
  }
  func.func @transform_2(%arg0: i32) -> (i32, i32) {
    %c0_i32 = arith.constant 0 : i32
    %c0_i32_0 = arith.constant 0 : i32
    %c0_i32_1 = arith.constant 0 : i32
    return %c0_i32, %c0_i32_0 : i32, i32
  }
  func.func @transform_3(%arg0: i32) -> (i32, i32) {
    %c0_i32 = arith.constant 0 : i32
    %c0_i32_0 = arith.constant 0 : i32
    return %arg0, %c0_i32 : i32, i32
  }
}

module attributes {stable_mosaic.version = 11 : i64} {
  func.func @triplet_ae_kernel(%arg0: i32, %arg1: memref<24x128xf32, #tpu.memory_space<vmem>>, %arg2: memref<7x128x128xbf16, #tpu.memory_space<vmem>>, %arg3: memref<17x128xf32, #tpu.memory_space<vmem>>, %arg4: memref<24x128xf32, #tpu.memory_space<vmem>>) attributes {dimension_semantics = [#tpu.dimension_semantics<parallel>], iteration_bounds = array<i64: 2>, scalar_prefetch = 0 : i64, scratch_operands = 0 : i64, tpu.core_type = #tpu.core_type<tc>, window_params = [{transform_indices = @transform_0, window_bounds = array<i64: 24, 128>}, {pipeline_mode = #tpu.pipeline_mode<synchronous>, transform_indices = @transform_1, window_bounds = array<i64: 7, 128, 128>}, {pipeline_mode = #tpu.pipeline_mode<synchronous>, transform_indices = @transform_2, window_bounds = array<i64: 17, 128>}, {transform_indices = @transform_3, window_bounds = array<i64: 24, 128>}]} {
    %c0 = arith.constant 0 : index
    %c0_0 = arith.constant 0 : index
    %0 = vector.load %arg1[%c0, %c0_0] : memref<24x128xf32, #tpu.memory_space<vmem>>, vector<24x128xf32>
    %1 = arith.truncf %0 : vector<24x128xf32> to vector<24x128xbf16>
    %c0_1 = arith.constant 0 : index
    %c0_2 = arith.constant 0 : index
    %c0_3 = arith.constant 0 : index
    %2 = vector.load %arg2[%c0_1, %c0_2, %c0_3] : memref<7x128x128xbf16, #tpu.memory_space<vmem>>, vector<1x128x128xbf16>
    %3 = vector.shape_cast %2 : vector<1x128x128xbf16> to vector<128x128xbf16>
    %cst = arith.constant dense<0.000000e+00> : vector<24x128xf32>
    %4 = tpu.matmul %1, %3, %cst {dimension_numbers = #tpu.dot_dimension_numbers<[1], [0], [0], [1], [0, 0, 1, 1], [], []>} : vector<24x128xbf16>, vector<128x128xbf16>, vector<24x128xf32> -> vector<24x128xf32>
    %c0_4 = arith.constant 0 : index
    %c0_5 = arith.constant 0 : index
    %5 = vector.load %arg3[%c0_4, %c0_5] : memref<17x128xf32, #tpu.memory_space<vmem>>, vector<1x128xf32>
    %6 = vector.broadcast %5 : vector<1x128xf32> to vector<24x128xf32>
    %7 = arith.addf %4, %6 : vector<24x128xf32>
    %cst_6 = arith.constant dense<0.000000e+00> : vector<24xf32>
    %8 = vector.multi_reduction <add>, %7, %cst_6 [1] : vector<24x128xf32> to vector<24xf32>
    %9 = vector.shape_cast %8 : vector<24xf32> to vector<24x1xf32>
    %cst_7 = arith.constant 7.812500e-03 : f32
    %10 = vector.broadcast %cst_7 : f32 to vector<24x1xf32>
    %11 = arith.mulf %9, %10 : vector<24x1xf32>
    %12 = arith.mulf %7, %7 : vector<24x128xf32>
    %cst_8 = arith.constant dense<0.000000e+00> : vector<24xf32>
    %13 = vector.multi_reduction <add>, %12, %cst_8 [1] : vector<24x128xf32> to vector<24xf32>
    %14 = vector.shape_cast %13 : vector<24xf32> to vector<24x1xf32>
    %cst_9 = arith.constant 7.812500e-03 : f32
    %15 = vector.broadcast %cst_9 : f32 to vector<24x1xf32>
    %16 = arith.mulf %14, %15 : vector<24x1xf32>
    %17 = arith.mulf %11, %11 : vector<24x1xf32>
    %18 = arith.subf %16, %17 : vector<24x1xf32>
    %cst_10 = arith.constant 0.000000e+00 : f32
    %19 = vector.broadcast %cst_10 : f32 to vector<24x1xf32>
    %20 = arith.maximumf %18, %19 : vector<24x1xf32>
    %21 = vector.broadcast %11 : vector<24x1xf32> to vector<24x128xf32>
    %22 = arith.subf %7, %21 : vector<24x128xf32>
    %cst_11 = arith.constant 9.99999974E-6 : f32
    %23 = vector.broadcast %cst_11 : f32 to vector<24x1xf32>
    %24 = arith.addf %20, %23 : vector<24x1xf32>
    %25 = math.rsqrt %24 : vector<24x1xf32>
    %26 = vector.broadcast %25 : vector<24x1xf32> to vector<24x128xf32>
    %27 = arith.mulf %22, %26 : vector<24x128xf32>
    %c1 = arith.constant 1 : index
    %c0_12 = arith.constant 0 : index
    %28 = vector.load %arg3[%c1, %c0_12] : memref<17x128xf32, #tpu.memory_space<vmem>>, vector<1x128xf32>
    %29 = vector.broadcast %28 : vector<1x128xf32> to vector<24x128xf32>
    %30 = arith.mulf %27, %29 : vector<24x128xf32>
    %c2 = arith.constant 2 : index
    %c0_13 = arith.constant 0 : index
    %31 = vector.load %arg3[%c2, %c0_13] : memref<17x128xf32, #tpu.memory_space<vmem>>, vector<1x128xf32>
    %32 = vector.broadcast %31 : vector<1x128xf32> to vector<24x128xf32>
    %33 = arith.addf %30, %32 : vector<24x128xf32>
    %cst_14 = arith.constant 0.000000e+00 : f32
    %34 = vector.broadcast %cst_14 : f32 to vector<24x128xf32>
    %35 = arith.maximumf %33, %34 : vector<24x128xf32>
    %36 = arith.truncf %35 : vector<24x128xf32> to vector<24x128xbf16>
    %c1_15 = arith.constant 1 : index
    %c0_16 = arith.constant 0 : index
    %c0_17 = arith.constant 0 : index
    %37 = vector.load %arg2[%c1_15, %c0_16, %c0_17] : memref<7x128x128xbf16, #tpu.memory_space<vmem>>, vector<1x128x128xbf16>
    %38 = vector.shape_cast %37 : vector<1x128x128xbf16> to vector<128x128xbf16>
    %cst_18 = arith.constant dense<0.000000e+00> : vector<24x128xf32>
    %39 = tpu.matmul %36, %38, %cst_18 {dimension_numbers = #tpu.dot_dimension_numbers<[1], [0], [0], [1], [0, 0, 1, 1], [], []>} : vector<24x128xbf16>, vector<128x128xbf16>, vector<24x128xf32> -> vector<24x128xf32>
    %c3 = arith.constant 3 : index
    %c0_19 = arith.constant 0 : index
    %40 = vector.load %arg3[%c3, %c0_19] : memref<17x128xf32, #tpu.memory_space<vmem>>, vector<1x128xf32>
    %41 = vector.broadcast %40 : vector<1x128xf32> to vector<24x128xf32>
    %42 = arith.addf %39, %41 : vector<24x128xf32>
    %cst_20 = arith.constant dense<0.000000e+00> : vector<24xf32>
    %43 = vector.multi_reduction <add>, %42, %cst_20 [1] : vector<24x128xf32> to vector<24xf32>
    %44 = vector.shape_cast %43 : vector<24xf32> to vector<24x1xf32>
    %cst_21 = arith.constant 1.562500e-02 : f32
    %45 = vector.broadcast %cst_21 : f32 to vector<24x1xf32>
    %46 = arith.mulf %44, %45 : vector<24x1xf32>
    %47 = arith.mulf %42, %42 : vector<24x128xf32>
    %cst_22 = arith.constant dense<0.000000e+00> : vector<24xf32>
    %48 = vector.multi_reduction <add>, %47, %cst_22 [1] : vector<24x128xf32> to vector<24xf32>
    %49 = vector.shape_cast %48 : vector<24xf32> to vector<24x1xf32>
    %cst_23 = arith.constant 1.562500e-02 : f32
    %50 = vector.broadcast %cst_23 : f32 to vector<24x1xf32>
    %51 = arith.mulf %49, %50 : vector<24x1xf32>
    %52 = arith.mulf %46, %46 : vector<24x1xf32>
    %53 = arith.subf %51, %52 : vector<24x1xf32>
    %cst_24 = arith.constant 0.000000e+00 : f32
    %54 = vector.broadcast %cst_24 : f32 to vector<24x1xf32>
    %55 = arith.maximumf %53, %54 : vector<24x1xf32>
    %56 = vector.broadcast %46 : vector<24x1xf32> to vector<24x128xf32>
    %57 = arith.subf %42, %56 : vector<24x128xf32>
    %cst_25 = arith.constant 9.99999974E-6 : f32
    %58 = vector.broadcast %cst_25 : f32 to vector<24x1xf32>
    %59 = arith.addf %55, %58 : vector<24x1xf32>
    %60 = math.rsqrt %59 : vector<24x1xf32>
    %61 = vector.broadcast %60 : vector<24x1xf32> to vector<24x128xf32>
    %62 = arith.mulf %57, %61 : vector<24x128xf32>
    %c4 = arith.constant 4 : index
    %c0_26 = arith.constant 0 : index
    %63 = vector.load %arg3[%c4, %c0_26] : memref<17x128xf32, #tpu.memory_space<vmem>>, vector<1x128xf32>
    %64 = vector.broadcast %63 : vector<1x128xf32> to vector<24x128xf32>
    %65 = arith.mulf %62, %64 : vector<24x128xf32>
    %c5 = arith.constant 5 : index
    %c0_27 = arith.constant 0 : index
    %66 = vector.load %arg3[%c5, %c0_27] : memref<17x128xf32, #tpu.memory_space<vmem>>, vector<1x128xf32>
    %67 = vector.broadcast %66 : vector<1x128xf32> to vector<24x128xf32>
    %68 = arith.addf %65, %67 : vector<24x128xf32>
    %cst_28 = arith.constant 0.000000e+00 : f32
    %69 = vector.broadcast %cst_28 : f32 to vector<24x128xf32>
    %70 = arith.maximumf %68, %69 : vector<24x128xf32>
    %71 = arith.truncf %70 : vector<24x128xf32> to vector<24x128xbf16>
    %c2_29 = arith.constant 2 : index
    %c0_30 = arith.constant 0 : index
    %c0_31 = arith.constant 0 : index
    %72 = vector.load %arg2[%c2_29, %c0_30, %c0_31] : memref<7x128x128xbf16, #tpu.memory_space<vmem>>, vector<1x128x128xbf16>
    %73 = vector.shape_cast %72 : vector<1x128x128xbf16> to vector<128x128xbf16>
    %cst_32 = arith.constant dense<0.000000e+00> : vector<24x128xf32>
    %74 = tpu.matmul %71, %73, %cst_32 {dimension_numbers = #tpu.dot_dimension_numbers<[1], [0], [0], [1], [0, 0, 1, 1], [], []>} : vector<24x128xbf16>, vector<128x128xbf16>, vector<24x128xf32> -> vector<24x128xf32>
    %c6 = arith.constant 6 : index
    %c0_33 = arith.constant 0 : index
    %75 = vector.load %arg3[%c6, %c0_33] : memref<17x128xf32, #tpu.memory_space<vmem>>, vector<1x128xf32>
    %76 = vector.broadcast %75 : vector<1x128xf32> to vector<24x128xf32>
    %77 = arith.addf %74, %76 : vector<24x128xf32>
    %78 = arith.mulf %77, %77 : vector<24x128xf32>
    %cst_34 = arith.constant dense<0.000000e+00> : vector<24xf32>
    %79 = vector.multi_reduction <add>, %78, %cst_34 [1] : vector<24x128xf32> to vector<24xf32>
    %80 = vector.shape_cast %79 : vector<24xf32> to vector<24x1xf32>
    %cst_35 = arith.constant 1.000000e-24 : f32
    %81 = vector.broadcast %cst_35 : f32 to vector<24x1xf32>
    %82 = arith.maximumf %80, %81 : vector<24x1xf32>
    %83 = math.rsqrt %82 : vector<24x1xf32>
    %84 = vector.broadcast %83 : vector<24x1xf32> to vector<24x128xf32>
    %85 = arith.mulf %77, %84 : vector<24x128xf32>
    %86 = arith.truncf %85 : vector<24x128xf32> to vector<24x128xbf16>
    %c3_36 = arith.constant 3 : index
    %c0_37 = arith.constant 0 : index
    %c0_38 = arith.constant 0 : index
    %87 = vector.load %arg2[%c3_36, %c0_37, %c0_38] : memref<7x128x128xbf16, #tpu.memory_space<vmem>>, vector<1x128x128xbf16>
    %88 = vector.shape_cast %87 : vector<1x128x128xbf16> to vector<128x128xbf16>
    %cst_39 = arith.constant dense<0.000000e+00> : vector<24x128xf32>
    %89 = tpu.matmul %86, %88, %cst_39 {dimension_numbers = #tpu.dot_dimension_numbers<[1], [0], [0], [1], [0, 0, 1, 1], [], []>} : vector<24x128xbf16>, vector<128x128xbf16>, vector<24x128xf32> -> vector<24x128xf32>
    %c7 = arith.constant 7 : index
    %c0_40 = arith.constant 0 : index
    %90 = vector.load %arg3[%c7, %c0_40] : memref<17x128xf32, #tpu.memory_space<vmem>>, vector<1x128xf32>
    %91 = vector.broadcast %90 : vector<1x128xf32> to vector<24x128xf32>
    %92 = arith.addf %89, %91 : vector<24x128xf32>
    %c15 = arith.constant 15 : index
    %c0_41 = arith.constant 0 : index
    %93 = vector.load %arg3[%c15, %c0_41] : memref<17x128xf32, #tpu.memory_space<vmem>>, vector<1x128xf32>
    %94 = vector.broadcast %93 : vector<1x128xf32> to vector<24x128xf32>
    %95 = arith.mulf %92, %94 : vector<24x128xf32>
    %cst_42 = arith.constant 0.000000e+00 : f32
    %96 = vector.broadcast %cst_42 : f32 to vector<24x128xf32>
    %97 = arith.maximumf %92, %96 : vector<24x128xf32>
    %c16 = arith.constant 16 : index
    %c0_43 = arith.constant 0 : index
    %98 = vector.load %arg3[%c16, %c0_43] : memref<17x128xf32, #tpu.memory_space<vmem>>, vector<1x128xf32>
    %99 = vector.broadcast %98 : vector<1x128xf32> to vector<24x128xf32>
    %100 = arith.mulf %97, %99 : vector<24x128xf32>
    %cst_44 = arith.constant dense<0.000000e+00> : vector<24xf32>
    %101 = vector.multi_reduction <add>, %95, %cst_44 [1] : vector<24x128xf32> to vector<24xf32>
    %102 = vector.shape_cast %101 : vector<24xf32> to vector<24x1xf32>
    %cst_45 = arith.constant 1.562500e-02 : f32
    %103 = vector.broadcast %cst_45 : f32 to vector<24x1xf32>
    %104 = arith.mulf %102, %103 : vector<24x1xf32>
    %105 = arith.mulf %95, %95 : vector<24x128xf32>
    %cst_46 = arith.constant dense<0.000000e+00> : vector<24xf32>
    %106 = vector.multi_reduction <add>, %105, %cst_46 [1] : vector<24x128xf32> to vector<24xf32>
    %107 = vector.shape_cast %106 : vector<24xf32> to vector<24x1xf32>
    %cst_47 = arith.constant 1.562500e-02 : f32
    %108 = vector.broadcast %cst_47 : f32 to vector<24x1xf32>
    %109 = arith.mulf %107, %108 : vector<24x1xf32>
    %110 = arith.mulf %104, %104 : vector<24x1xf32>
    %111 = arith.subf %109, %110 : vector<24x1xf32>
    %cst_48 = arith.constant 0.000000e+00 : f32
    %112 = vector.broadcast %cst_48 : f32 to vector<24x1xf32>
    %113 = arith.maximumf %111, %112 : vector<24x1xf32>
    %114 = vector.broadcast %104 : vector<24x1xf32> to vector<24x128xf32>
    %115 = arith.subf %95, %114 : vector<24x128xf32>
    %cst_49 = arith.constant 9.99999974E-6 : f32
    %116 = vector.broadcast %cst_49 : f32 to vector<24x1xf32>
    %117 = arith.addf %113, %116 : vector<24x1xf32>
    %118 = math.rsqrt %117 : vector<24x1xf32>
    %119 = vector.broadcast %118 : vector<24x1xf32> to vector<24x128xf32>
    %120 = arith.mulf %115, %119 : vector<24x128xf32>
    %c8 = arith.constant 8 : index
    %c0_50 = arith.constant 0 : index
    %121 = vector.load %arg3[%c8, %c0_50] : memref<17x128xf32, #tpu.memory_space<vmem>>, vector<1x128xf32>
    %122 = vector.broadcast %121 : vector<1x128xf32> to vector<24x128xf32>
    %123 = arith.mulf %120, %122 : vector<24x128xf32>
    %c9 = arith.constant 9 : index
    %c0_51 = arith.constant 0 : index
    %124 = vector.load %arg3[%c9, %c0_51] : memref<17x128xf32, #tpu.memory_space<vmem>>, vector<1x128xf32>
    %125 = vector.broadcast %124 : vector<1x128xf32> to vector<24x128xf32>
    %126 = arith.addf %123, %125 : vector<24x128xf32>
    %cst_52 = arith.constant 0.000000e+00 : f32
    %127 = vector.broadcast %cst_52 : f32 to vector<24x128xf32>
    %128 = arith.maximumf %126, %127 : vector<24x128xf32>
    %129 = arith.truncf %128 : vector<24x128xf32> to vector<24x128xbf16>
    %c4_53 = arith.constant 4 : index
    %c0_54 = arith.constant 0 : index
    %c0_55 = arith.constant 0 : index
    %130 = vector.load %arg2[%c4_53, %c0_54, %c0_55] : memref<7x128x128xbf16, #tpu.memory_space<vmem>>, vector<1x128x128xbf16>
    %131 = vector.shape_cast %130 : vector<1x128x128xbf16> to vector<128x128xbf16>
    %cst_56 = arith.constant dense<0.000000e+00> : vector<24x128xf32>
    %132 = tpu.matmul %129, %131, %cst_56 {dimension_numbers = #tpu.dot_dimension_numbers<[1], [0], [0], [1], [0, 0, 1, 1], [], []>} : vector<24x128xbf16>, vector<128x128xbf16>, vector<24x128xf32> -> vector<24x128xf32>
    %c10 = arith.constant 10 : index
    %c0_57 = arith.constant 0 : index
    %133 = vector.load %arg3[%c10, %c0_57] : memref<17x128xf32, #tpu.memory_space<vmem>>, vector<1x128xf32>
    %134 = vector.broadcast %133 : vector<1x128xf32> to vector<24x128xf32>
    %135 = arith.addf %132, %134 : vector<24x128xf32>
    %cst_58 = arith.constant dense<0.000000e+00> : vector<24xf32>
    %136 = vector.multi_reduction <add>, %135, %cst_58 [1] : vector<24x128xf32> to vector<24xf32>
    %137 = vector.shape_cast %136 : vector<24xf32> to vector<24x1xf32>
    %cst_59 = arith.constant 7.812500e-03 : f32
    %138 = vector.broadcast %cst_59 : f32 to vector<24x1xf32>
    %139 = arith.mulf %137, %138 : vector<24x1xf32>
    %140 = arith.mulf %135, %135 : vector<24x128xf32>
    %cst_60 = arith.constant dense<0.000000e+00> : vector<24xf32>
    %141 = vector.multi_reduction <add>, %140, %cst_60 [1] : vector<24x128xf32> to vector<24xf32>
    %142 = vector.shape_cast %141 : vector<24xf32> to vector<24x1xf32>
    %cst_61 = arith.constant 7.812500e-03 : f32
    %143 = vector.broadcast %cst_61 : f32 to vector<24x1xf32>
    %144 = arith.mulf %142, %143 : vector<24x1xf32>
    %145 = arith.mulf %139, %139 : vector<24x1xf32>
    %146 = arith.subf %144, %145 : vector<24x1xf32>
    %cst_62 = arith.constant 0.000000e+00 : f32
    %147 = vector.broadcast %cst_62 : f32 to vector<24x1xf32>
    %148 = arith.maximumf %146, %147 : vector<24x1xf32>
    %149 = vector.broadcast %139 : vector<24x1xf32> to vector<24x128xf32>
    %150 = arith.subf %135, %149 : vector<24x128xf32>
    %cst_63 = arith.constant 9.99999974E-6 : f32
    %151 = vector.broadcast %cst_63 : f32 to vector<24x1xf32>
    %152 = arith.addf %148, %151 : vector<24x1xf32>
    %153 = math.rsqrt %152 : vector<24x1xf32>
    %154 = vector.broadcast %153 : vector<24x1xf32> to vector<24x128xf32>
    %155 = arith.mulf %150, %154 : vector<24x128xf32>
    %c11 = arith.constant 11 : index
    %c0_64 = arith.constant 0 : index
    %156 = vector.load %arg3[%c11, %c0_64] : memref<17x128xf32, #tpu.memory_space<vmem>>, vector<1x128xf32>
    %157 = vector.broadcast %156 : vector<1x128xf32> to vector<24x128xf32>
    %158 = arith.mulf %155, %157 : vector<24x128xf32>
    %c12 = arith.constant 12 : index
    %c0_65 = arith.constant 0 : index
    %159 = vector.load %arg3[%c12, %c0_65] : memref<17x128xf32, #tpu.memory_space<vmem>>, vector<1x128xf32>
    %160 = vector.broadcast %159 : vector<1x128xf32> to vector<24x128xf32>
    %161 = arith.addf %158, %160 : vector<24x128xf32>
    %cst_66 = arith.constant 0.000000e+00 : f32
    %162 = vector.broadcast %cst_66 : f32 to vector<24x128xf32>
    %163 = arith.maximumf %161, %162 : vector<24x128xf32>
    %164 = arith.truncf %163 : vector<24x128xf32> to vector<24x128xbf16>
    %c5_67 = arith.constant 5 : index
    %c0_68 = arith.constant 0 : index
    %c0_69 = arith.constant 0 : index
    %165 = vector.load %arg2[%c5_67, %c0_68, %c0_69] : memref<7x128x128xbf16, #tpu.memory_space<vmem>>, vector<1x128x128xbf16>
    %166 = vector.shape_cast %165 : vector<1x128x128xbf16> to vector<128x128xbf16>
    %cst_70 = arith.constant dense<0.000000e+00> : vector<24x128xf32>
    %167 = tpu.matmul %164, %166, %cst_70 {dimension_numbers = #tpu.dot_dimension_numbers<[1], [0], [0], [1], [0, 0, 1, 1], [], []>} : vector<24x128xbf16>, vector<128x128xbf16>, vector<24x128xf32> -> vector<24x128xf32>
    %c13 = arith.constant 13 : index
    %c0_71 = arith.constant 0 : index
    %168 = vector.load %arg3[%c13, %c0_71] : memref<17x128xf32, #tpu.memory_space<vmem>>, vector<1x128xf32>
    %169 = vector.broadcast %168 : vector<1x128xf32> to vector<24x128xf32>
    %170 = arith.addf %167, %169 : vector<24x128xf32>
    %171 = arith.truncf %100 : vector<24x128xf32> to vector<24x128xbf16>
    %c6_72 = arith.constant 6 : index
    %c0_73 = arith.constant 0 : index
    %c0_74 = arith.constant 0 : index
    %172 = vector.load %arg2[%c6_72, %c0_73, %c0_74] : memref<7x128x128xbf16, #tpu.memory_space<vmem>>, vector<1x128x128xbf16>
    %173 = vector.shape_cast %172 : vector<1x128x128xbf16> to vector<128x128xbf16>
    %cst_75 = arith.constant dense<0.000000e+00> : vector<24x128xf32>
    %174 = tpu.matmul %171, %173, %cst_75 {dimension_numbers = #tpu.dot_dimension_numbers<[1], [0], [0], [1], [0, 0, 1, 1], [], []>} : vector<24x128xbf16>, vector<128x128xbf16>, vector<24x128xf32> -> vector<24x128xf32>
    %c14 = arith.constant 14 : index
    %c0_76 = arith.constant 0 : index
    %175 = vector.load %arg3[%c14, %c0_76] : memref<17x128xf32, #tpu.memory_space<vmem>>, vector<1x128xf32>
    %176 = vector.broadcast %175 : vector<1x128xf32> to vector<24x128xf32>
    %177 = arith.addf %174, %176 : vector<24x128xf32>
    %178 = arith.addf %170, %85 : vector<24x128xf32>
    %179 = arith.addf %178, %177 : vector<24x128xf32>
    %c0_77 = arith.constant 0 : index
    %c0_78 = arith.constant 0 : index
    %180 = vector.load %arg4[%c0_77, %c0_78] : memref<24x128xf32, #tpu.memory_space<vmem>>, vector<24x128xf32>
    tpu.vector_store %arg4[%c0_77, %c0_78], %179 {strides = array<i32>} : memref<24x128xf32, #tpu.memory_space<vmem>>, vector<24x128xf32>,
    return
  }
  func.func @transform_0(%arg0: i32) -> (i32, i32) {
    %c0_i32 = arith.constant 0 : i32
    %c0_i32_0 = arith.constant 0 : i32
    return %arg0, %c0_i32 : i32, i32
  }
  func.func @transform_1(%arg0: i32) -> (i32, i32, i32) {
    %c0_i32 = arith.constant 0 : i32
    %c0_i32_0 = arith.constant 0 : i32
    %c0_i32_1 = arith.constant 0 : i32
    %c0_i32_2 = arith.constant 0 : i32
    return %c0_i32, %c0_i32_0, %c0_i32_1 : i32, i32, i32
  }
  func.func @transform_2(%arg0: i32) -> (i32, i32) {
    %c0_i32 = arith.constant 0 : i32
    %c0_i32_0 = arith.constant 0 : i32
    %c0_i32_1 = arith.constant 0 : i32
    return %c0_i32, %c0_i32_0 : i32, i32
  }
  func.func @transform_3(%arg0: i32) -> (i32, i32) {
    %c0_i32 = arith.constant 0 : i32
    %c0_i32_0 = arith.constant 0 : i32
    return %arg0, %c0_i32 : i32, i32
  }
}

</mosaic_0001>

<llo_original>
// kernel: tpu_custom_call.1
$region0: #{tpu_custom_call.1}
  #allocation0 [shape = 'u32[]', space=smem, size = 0x4, offset = 0x4, fixed_abs, tag = 'smem constant byte address 0x4 - core index']
  #allocation1 [shape = 'u32[144,128]{1,0:T(1,128)}', space=vmem, size = 0x12000, scoped, tag = 'internal scratch']
  %s0 = inlined_call_operand.hbm [shape: f32[48,128], index: 0, kind: input, shape index: {}]
  %s1 = inlined_call_operand.hbm [shape: bf16[7,128,128], index: 1, kind: input, shape index: {}]
  %s2 = inlined_call_operand.hbm [shape: f32[17,128], index: 2, kind: input, shape index: {}]
  %s3 = inlined_call_operand.hbm [shape: f32[48,128], index: 3, kind: output, shape index: {}]
  %s4 = sld [smem:[#allocation0]]
  $region57: #{tpu_custom_call.1} parent=0
    _
  %s6 = ssub.s32 1, %s4
  %s7 = scalar_select 0, %s6, %s4
  $region1: #{tpu_custom_call.1} parent=0
    #allocation2 [shape = 'u8[24576]{0}', space=vmem, size = 0x6000, scoped, tag = 'input window, operand 0']
    #allocation3 [shape = 's32[2]{0}', space=sflag, size = 0x8, scoped, tag = 'scoped memory for tpu_custom_call.1']
    #allocation4 [shape = 's32[2]{0}', space=sflag, size = 0x8, scoped, tag = 'scoped memory for tpu_custom_call.1']
    #allocation5 [shape = 'u8[229376]{0}', space=vmem, size = 0x38000, scoped, tag = 'input window, operand 1, single buffered']
    #allocation6 [shape = 's32[1]{0}', space=sflag, size = 0x4, scoped, tag = 'scoped memory for tpu_custom_call.1']
    #allocation7 [shape = 'u8[12288]{0}', space=vmem, size = 0x3000, scoped, tag = 'input window, operand 2, single buffered']
    #allocation8 [shape = 'u8[24576]{0}', space=vmem, size = 0x6000, scoped, tag = 'output window, operand 0']
    %8 = vsyncpa [#allocation3], 0
    %s9 = scalar_lea.sflag [#allocation3], 1
    %10 = vsyncpa %s9, 0
    %11 = vsyncpa [#allocation6], 0
    %12 = vsyncpa [#allocation4], 0
    %s13 = scalar_lea.sflag [#allocation4], 1
    %14 = vsyncpa %s13, 0
    loop: start=0, step=1, limit=4
    $region2: #{tpu_custom_call.1} parent=1 // loop_pre_header
      _
    $region3: #{tpu_custom_call.1} parent=1 // loop_header
      %s16 = sphi 0, %s20
      %p17 = scmp.ge.s32.totalorder %s16, 4
      %s26 = sphi 0, %s28
      %s29 = sphi 0, %s26
      %s30 = sphi 0, %s29
      %s46 = sphi 0, %s30
      %s50 = sphi 0, %s50
      %s52 = sphi 0, %s50
      %s53 = sphi 0, %s52
      %s67 = sphi 0, %s53
      %s71 = sphi 0, %s71
      %s73 = sphi 0, %s71
      %s74 = sphi 0, %s73
      %s88 = sphi 0, %s74
      %s94 = sphi 0, %s96
      %s97 = sphi 0, %s94
      %s98 = sphi 0, %s97
      %s114 = sphi 0, %s98
    $region4: #{tpu_custom_call.1} parent=1 // loop_header_branch
      %19 = sbr.rel (%p17) target = $region8
    $region5: #{tpu_custom_call.1} parent=1 // loop_body
      %s21 = ssub.s32 %s16, 1
      %s22 = ssub.s32 %s16, 2
      %s23 = sadd.s32 %s16, 1
      %s24 = ssub.s32 %s16, %s23
      %p25 = scmp.eq.s32.totalorder %s24, 0
      %s27 = sadd.s32 %s26, 1
      %s28 = scalar_select %p25, %s26, %s27
      %p31 = pneg %p25
      %p32 = scmp.eq.s32.totalorder %s16, 1
      %p33 = por %p31, %p32
      %p34 = scmp.ne.s32.totalorder %s26, %s29
      %p35 = scmp.eq.s32.totalorder %s16, 0
      %p36 = por %p34, %p35
      %p37 = scmp.ne.s32.totalorder %s26, %s29
      %p38 = scmp.eq.s32.totalorder %s21, 1
      %p39 = por %p37, %p38
      %p40 = scmp.ne.s32.totalorder %s29, %s30
      %p41 = scmp.eq.s32.totalorder %s21, 0
      %p42 = por %p40, %p41
      %p43 = scmp.ne.s32.totalorder %s29, %s30
      %p44 = scmp.eq.s32.totalorder %s22, 1
      %p45 = por %p43, %p44
      %p47 = scmp.ne.s32.totalorder %s30, %s46
      %p48 = scmp.eq.s32.totalorder %s22, 0
      %p49 = por %p47, %p48
      %s51 = sadd.s32 %s50, 1
      %p54 = scmp.eq.s32.totalorder %s16, 1
      %p55 = scmp.ne.s32.totalorder %s50, %s52
      %p56 = scmp.eq.s32.totalorder %s16, 0
      %p57 = por %p55, %p56
      %p58 = scmp.ne.s32.totalorder %s50, %s52
      %p59 = scmp.eq.s32.totalorder %s21, 1
      %p60 = por %p58, %p59
      %p61 = scmp.ne.s32.totalorder %s52, %s53
      %p62 = scmp.eq.s32.totalorder %s21, 0
      %p63 = por %p61, %p62
      %p64 = scmp.ne.s32.totalorder %s52, %s53
      %p65 = scmp.eq.s32.totalorder %s22, 1
      %p66 = por %p64, %p65
      %p68 = scmp.ne.s32.totalorder %s53, %s67
      %p69 = scmp.eq.s32.totalorder %s22, 0
      %p70 = por %p68, %p69
      %s72 = sadd.s32 %s71, 1
      %p75 = scmp.eq.s32.totalorder %s16, 1
      %p76 = scmp.ne.s32.totalorder %s71, %s73
      %p77 = scmp.eq.s32.totalorder %s16, 0
      %p78 = por %p76, %p77
      %p79 = scmp.ne.s32.totalorder %s71, %s73
      %p80 = scmp.eq.s32.totalorder %s21, 1
      %p81 = por %p79, %p80
      %p82 = scmp.ne.s32.totalorder %s73, %s74
      %p83 = scmp.eq.s32.totalorder %s21, 0
      %p84 = por %p82, %p83
      %p85 = scmp.ne.s32.totalorder %s73, %s74
      %p86 = scmp.eq.s32.totalorder %s22, 1
      %p87 = por %p85, %p86
      %p89 = scmp.ne.s32.totalorder %s74, %s88
      %p90 = scmp.eq.s32.totalorder %s22, 0
      %p91 = por %p89, %p90
      %s92 = ssub.s32 %s16, %s23
      %p93 = scmp.eq.s32.totalorder %s92, 0
      %s95 = sadd.s32 %s94, 1
      %s96 = scalar_select %p93, %s94, %s95
      %p99 = pneg %p93
      %p100 = scmp.eq.s32.totalorder %s16, 1
      %p101 = por %p99, %p100
      %p102 = scmp.ne.s32.totalorder %s94, %s97
      %p103 = scmp.eq.s32.totalorder %s16, 0
      %p104 = por %p102, %p103
      %p105 = scmp.ne.s32.totalorder %s94, %s97
      %p106 = scmp.eq.s32.totalorder %s21, 1
      %p107 = por %p105, %p106
      %p108 = scmp.ne.s32.totalorder %s97, %s98
      %p109 = scmp.eq.s32.totalorder %s21, 0
      %p110 = por %p108, %p109
      %p111 = scmp.ne.s32.totalorder %s97, %s98
      %p112 = scmp.eq.s32.totalorder %s22, 1
      %p113 = por %p111, %p112
      %p115 = scmp.ne.s32.totalorder %s98, %s114
      %p116 = scmp.eq.s32.totalorder %s22, 0
      %p117 = por %p115, %p116
      %p118 = scmp.le.s32.totalorder 1, %s16
      %p119 = scmp.lt.s32.totalorder %s16, 3
      %p120 = pnand %p118, %p119
      %p121 = pneg %p120
      // Predicated region
      $region9: #{tpu_custom_call.1} parent=5 // pred_check
        _
      $region10: #{tpu_custom_call.1} parent=5 // pred_check_branch
        %123 = sbr.rel (%p120) target = $region12
      $region11: #{tpu_custom_call.1} parent=5 // pred_region
        %s124 = ssub.s32 %s16, 1
        // Predicated region
        $region13: #{tpu_custom_call.1} parent=11 // pred_check
          %p125 = pneg %p63
        $region14: #{tpu_custom_call.1} parent=11 // pred_check_branch
          %127 = sbr.rel (%p125) target = $region16
        $region15: #{tpu_custom_call.1} parent=11 // pred_region
          %s129 = ssub.s32 7168, 7168
          %130 = vsyncadd [#allocation6], %s129
          %s131 = sshll.u32 [#allocation5], 4
          %s132 = int_to_ptr.vmem [resolvable:$true] %s131
          %137 = dma.hbm_to_vmem [thread:$0]  %s1, 7168, %s132, [#allocation6], 64, 64, 4
        $region16: #{tpu_custom_call.1} parent=11 // pred_fallthru
          _
        // Predicated region
        $region17: #{tpu_custom_call.1} parent=11 // pred_check
          %p138 = pneg %p84
        $region18: #{tpu_custom_call.1} parent=11 // pred_check_branch
          %140 = sbr.rel (%p138) target = $region20
        $region19: #{tpu_custom_call.1} parent=11 // pred_region
          %s142 = ssub.s32 384, 384
          %143 = vsyncadd [#allocation6], %s142
          %s144 = sshll.u32 [#allocation7], 4
          %s145 = int_to_ptr.vmem [resolvable:$true] %s144
          %150 = dma.hbm_to_vmem [thread:$0]  %s2, 384, %s145, [#allocation6], 128, 128, 8
        $region20: #{tpu_custom_call.1} parent=11 // pred_fallthru
          _
      $region12: #{tpu_custom_call.1} parent=5 // pred_fallthru
        _
      %p151 = scmp.lt.s32.totalorder %s16, 2
      // Predicated region
      $region21: #{tpu_custom_call.1} parent=5 // pred_check
        %p152 = pneg %p151
      $region22: #{tpu_custom_call.1} parent=5 // pred_check_branch
        %154 = sbr.rel (%p152) target = $region24
      $region23: #{tpu_custom_call.1} parent=5 // pred_region
        // Predicated region
        $region25: #{tpu_custom_call.1} parent=23 // pred_check
          %p155 = pneg %p36
        $region26: #{tpu_custom_call.1} parent=23 // pred_check_branch
          %157 = sbr.rel (%p155) target = $region28
        $region27: #{tpu_custom_call.1} parent=23 // pred_region
          %s158 = sand.u32 %s26, 1
          %s159 = scalar_lea.sflag [#allocation3], %s158
          %s160 = sand.u32 %s26, 1
          %s161 = smul.addr %s160, 24
          %s162 = scalar_lea.vmem [#allocation2], %s161
          %s163 = smul.u32 3, %s16
          %s165 = ssub.s32 384, 384
          %166 = vsyncadd %s159, %s165
          %s167 = smul.addr %s163, 128
          %s168 = scalar_lea.hbm %s0, %s167
          %s169 = sshll.u32 %s162, 4
          %s170 = int_to_ptr.vmem [resolvable:$true] %s169
          %175 = dma.hbm_to_vmem [thread:$0]  %s168, 384, %s170, %s159, 128, 128, 8
        $region28: #{tpu_custom_call.1} parent=23 // pred_fallthru
          _
      $region24: #{tpu_custom_call.1} parent=5 // pred_fallthru
        _
      %p176 = scmp.le.s32.totalorder 1, %s16
      %p177 = scmp.lt.s32.totalorder %s16, 3
      %p178 = pnand %p176, %p177
      %p179 = pneg %p178
      // Predicated region
      $region29: #{tpu_custom_call.1} parent=5 // pred_check
        _
      $region30: #{tpu_custom_call.1} parent=5 // pred_check_branch
        %181 = sbr.rel (%p178) target = $region32
      $region31: #{tpu_custom_call.1} parent=5 // pred_region
        %s182 = ssub.s32 %s16, 1
        %s183 = sand.u32 %s29, 1
        %s184 = scalar_lea.sflag [#allocation3], %s183
        %s185 = sand.u32 %s29, 1
        %s186 = smul.addr %s185, 24
        %s187 = scalar_lea.vmem [#allocation2], %s186
        // Predicated region
        $region33: #{tpu_custom_call.1} parent=31 // pred_check
          %p188 = pneg %p42
        $region34: #{tpu_custom_call.1} parent=31 // pred_check_branch
          %190 = sbr.rel (%p188) target = $region36
        $region35: #{tpu_custom_call.1} parent=31 // pred_region
          %191 = dma.done %s184, 384
        $region36: #{tpu_custom_call.1} parent=31 // pred_fallthru
          _
        // Predicated region
        $region37: #{tpu_custom_call.1} parent=31 // pred_check
          %p192 = pneg %p63
        $region38: #{tpu_custom_call.1} parent=31 // pred_check_branch
          %194 = sbr.rel (%p192) target = $region40
        $region39: #{tpu_custom_call.1} parent=31 // pred_region
          %195 = dma.done [#allocation6], 7168
        $region40: #{tpu_custom_call.1} parent=31 // pred_fallthru
          _
        // Predicated region
        $region41: #{tpu_custom_call.1} parent=31 // pred_check
          %p196 = pneg %p84
        $region42: #{tpu_custom_call.1} parent=31 // pred_check_branch
          %198 = sbr.rel (%p196) target = $region44
        $region43: #{tpu_custom_call.1} parent=31 // pred_region
          %199 = dma.done [#allocation6], 384
        $region44: #{tpu_custom_call.1} parent=31 // pred_fallthru
          _
        %s200 = sand.u32 %s29, 1
        %s201 = scalar_lea.sflag [#allocation3], %s200
        %s202 = sand.u32 %s29, 1
        %s203 = smul.addr %s202, 24
        %s204 = scalar_lea.vmem [#allocation2], %s203
        %p205 = pneg %p42
        %p206 = pneg %p39
        %p207 = pneg %p63
        %p208 = pneg %p60
        %p209 = pneg %p84
        %p210 = pneg %p81
        %p211 = pneg %p110
        %p212 = pneg %p107
        %s213 = sand.u32 %s97, 1
        %s214 = scalar_lea.sflag [#allocation4], %s213
        %s215 = sand.u32 %s97, 1
        %s216 = smul.addr %s215, 24
        %s217 = scalar_lea.vmem [#allocation8], %s216
        %s218 = smul.u32 3, %s21
        %s219 = smul.u32 3, %s21
        %v221 = vld [vmem:[%s187] sm:$0xff]
        %v222 = vld [vmem:[%s187 + $0x8] sm:$0xff]
        %v223 = vld [vmem:[%s187 + $0x10] sm:$0xff]
        %v224 = vpack.c.bf16 %v222, %v221
        %v225 = vpack.c.bf16 %v223, %v223
        %v226 = vld [vmem:[#allocation5] sm:$0xf]
        %v227 = vld [vmem:[#allocation5 + $0x4] sm:$0xf]
        %v228 = vld [vmem:[#allocation5 + $0x8] sm:$0xf]
        %v229 = vld [vmem:[#allocation5 + $0xc] sm:$0xf]
        %v230 = vld [vmem:[#allocation5 + $0x10] sm:$0xf]
        %v231 = vld [vmem:[#allocation5 + $0x14] sm:$0xf]
        %v232 = vld [vmem:[#allocation5 + $0x18] sm:$0xf]
        %v233 = vld [vmem:[#allocation5 + $0x1c] sm:$0xf]
        %v234 = vld [vmem:[#allocation5 + $0x20] sm:$0xf]
        %v235 = vld [vmem:[#allocation5 + $0x24] sm:$0xf]
        %v236 = vld [vmem:[#allocation5 + $0x28] sm:$0xf]
        %v237 = vld [vmem:[#allocation5 + $0x2c] sm:$0xf]
        %v238 = vld [vmem:[#allocation5 + $0x30] sm:$0xf]
        %v239 = vld [vmem:[#allocation5 + $0x34] sm:$0xf]
        %v240 = vld [vmem:[#allocation5 + $0x38] sm:$0xf]
        %v241 = vld [vmem:[#allocation5 + $0x3c] sm:$0xf]
        %v242 = vld [vmem:[#allocation7] sm:$0x1]
        %v243 = vlaneseq
        %v244 = vshrl.u32 %v243, 7
        %v245 = vsub.s32 0, %v244
        %v246 = vrot.slane %v242, %v245
        %v263 = vunpack.c.l.b16 %v226
        %v264 = vunpack.c.l.b16 %v227
        %v265 = vunpack.c.l.b16 %v228
        %v266 = vunpack.c.l.b16 %v229
        %v267 = vunpack.c.l.b16 %v230
        %v268 = vunpack.c.l.b16 %v231
        %v269 = vunpack.c.l.b16 %v232
        %v270 = vunpack.c.l.b16 %v233
        %v271 = vunpack.c.l.b16 %v234
        %v272 = vunpack.c.l.b16 %v235
        %v273 = vunpack.c.l.b16 %v236
        %v274 = vunpack.c.l.b16 %v237
        %v275 = vunpack.c.l.b16 %v238
        %v276 = vunpack.c.l.b16 %v239
        %v277 = vunpack.c.l.b16 %v240
        %v278 = vunpack.c.l.b16 %v241
        %v279 = vpack.c.b16 %v264, %v263
        %v280 = vpack.c.b16 %v266, %v265
        %v281 = vpack.c.b16 %v268, %v267
        %v282 = vpack.c.b16 %v270, %v269
        %v283 = vpack.c.b16 %v272, %v271
        %v284 = vpack.c.b16 %v274, %v273
        %v285 = vpack.c.b16 %v276, %v275
        %v286 = vpack.c.b16 %v278, %v277
        %295 = vmatprep.subr.bf16.mxu0 0
        %296 = vmatpush1.bf16.msra.mxu0 %v279
        %297 = vmatprep.subr.bf16.mxu0 0
        %298 = vmatpush1.bf16.msra.mxu0 %v280
        %299 = vmatprep.subr.bf16.mxu0 0
        %300 = vmatpush1.bf16.msra.mxu0 %v281
        %301 = vmatprep.subr.bf16.mxu0 0
        %302 = vmatpush1.bf16.msra.mxu0 %v282
        %303 = vmatprep.subr.bf16.mxu0 0
        %304 = vmatpush1.bf16.msra.mxu0 %v283
        %305 = vmatprep.subr.bf16.mxu0 0
        %306 = vmatpush1.bf16.msra.mxu0 %v284
        %307 = vmatprep.subr.bf16.mxu0 0
        %308 = vmatpush1.bf16.msra.mxu0 %v285
        %309 = vmatprep.subr.bf16.mxu0 0
        %310 = vmatpush1.bf16.msra.mxu0 %v286
        %311 = vmatprep.subr.bf16.mxu0 0
        %312 = vmatpush1.bf16.msra.mxu0 0
        %313 = vmatprep.subr.bf16.mxu0 0
        %314 = vmatpush1.bf16.msra.mxu0 0
        %315 = vmatprep.subr.bf16.mxu0 0
        %316 = vmatpush1.bf16.msra.mxu0 0
        %317 = vmatprep.subr.bf16.mxu0 0
        %318 = vmatpush1.bf16.msra.mxu0 0
        %319 = vmatprep.subr.bf16.mxu0 0
        %320 = vmatpush1.bf16.msra.mxu0 0
        %321 = vmatprep.subr.bf16.mxu0 0
        %322 = vmatpush1.bf16.msra.mxu0 0
        %323 = vmatprep.subr.bf16.mxu0 0
        %324 = vmatpush1.bf16.msra.mxu0 0
        %325 = vmatprep.subr.bf16.mxu0 0
        %326 = vmatpush1.bf16.msra.mxu0 0
        %327 = vmatprep.mubr.bf16.mxu0 0
        %328 = vmatmul.mubr.bf16.gmra.mrb[0].mxu0 %v224
        %v329 = vpop.f32.mrb[0].mxu0
        %v330 = vadd.f32 %v246, %v329
        %v331 = vpop.f32.mrb[0].mxu0
        %v332 = vpop.f32.mrb[0].mxu0
        %v333 = vadd.f32 %v246, %v332
        %v334 = vpop.f32.mrb[0].mxu0
        %335 = vmatprep.mubr.bf16.mxu0 0
        %336 = vmatmul.mubr.bf16.gmra.mrb[0].mxu0 %v225
        %v337 = vpop.f32.mrb[0].mxu0
        %v338 = vadd.f32 %v246, %v337
        %v339 = vpop.f32.mrb[0].mxu0
        %v340 = vpop.f32.mrb[0].mxu0
        %v341 = vpop.f32.mrb[0].mxu0
        %342 = vdwg.mxu0
        %343 = vadd.xlane.f32.xlu0 %v330
        %v344 = vpop.xlane.xlu0 %343
        %345 = vadd.xlane.f32.xlu0 %v333
        %v346 = vpop.xlane.xlu0 %345
        %347 = vadd.xlane.f32.xlu0 %v338
        %v348 = vpop.xlane.xlu0 %347
        %v349 = vmul.f32 %v344, 0.0078125
        %v350 = vmul.f32 %v346, 0.0078125
        %v351 = vmul.f32 %v348, 0.0078125
        %v352 = vmul.f32 %v330, %v330
        %v353 = vmul.f32 %v333, %v333
        %v354 = vmul.f32 %v338, %v338
        %355 = vadd.xlane.f32.xlu0 %v352
        %v356 = vpop.xlane.xlu0 %355
        %357 = vadd.xlane.f32.xlu0 %v353
        %v358 = vpop.xlane.xlu0 %357
        %359 = vadd.xlane.f32.xlu0 %v354
        %v360 = vpop.xlane.xlu0 %359
        %v361 = vmul.f32 %v356, 0.0078125
        %v362 = vmul.f32 %v358, 0.0078125
        %v363 = vmul.f32 %v360, 0.0078125
        %v364 = vmul.f32 %v349, %v349
        %v365 = vmul.f32 %v350, %v350
        %v366 = vmul.f32 %v351, %v351
        %v367 = vsub.f32 %v361, %v364
        %v368 = vsub.f32 %v362, %v365
        %v369 = vsub.f32 %v363, %v366
        %v370 = vmax.f32 %v367, 0.0
        %v371 = vmax.f32 %v368, 0.0
        %v372 = vmax.f32 %v369, 0.0
        %v373 = vsub.f32 %v330, %v349
        %v374 = vsub.f32 %v333, %v350
        %v375 = vsub.f32 %v338, %v351
        %v376 = vadd.f32 %v370, 1e-05
        %v377 = vadd.f32 %v371, 1e-05
        %v378 = vadd.f32 %v372, 1e-05
        %v379 = vrsqrt.pop %v376
        %v380 = vrsqrt.pop %v377
        %v381 = vrsqrt.pop %v378
        %v382 = vmul.f32 %v373, %v379
        %v383 = vmul.f32 %v374, %v380
        %v384 = vmul.f32 %v375, %v381
        %v385 = vld [vmem:[#allocation7 + $0x1] sm:$0x1]
        %v386 = vlaneseq
        %v387 = vshrl.u32 %v386, 7
        %v388 = vsub.s32 0, %v387
        %v389 = vrot.slane %v385, %v388
        %v390 = vmul.f32 %v382, %v389
        %v391 = vmul.f32 %v383, %v389
        %v392 = vmul.f32 %v384, %v389
        %v393 = vld [vmem:[#allocation7 + $0x2] sm:$0x1]
        %v394 = vlaneseq
        %v395 = vshrl.u32 %v394, 7
        %v396 = vsub.s32 0, %v395
        %v397 = vrot.slane %v393, %v396
        %v398 = vadd.f32 %v390, %v397
        %v399 = vadd.f32 %v391, %v397
        %v400 = vadd.f32 %v392, %v397
        %v401 = vmax.f32 %v398, 0.0
        %v402 = vmax.f32 %v399, 0.0
        %v403 = vmax.f32 %v400, 0.0
        %v404 = vpack.c.bf16 %v402, %v401
        %v405 = vpack.c.bf16 %v403, %v403
        %s406 = scalar_lea.vmem [#allocation5], 64
        %v407 = vld [vmem:[%s406] sm:$0xf]
        %v408 = vld [vmem:[%s406 + $0x4] sm:$0xf]
        %v409 = vld [vmem:[%s406 + $0x8] sm:$0xf]
        %v410 = vld [vmem:[%s406 + $0xc] sm:$0xf]
        %v411 = vld [vmem:[%s406 + $0x10] sm:$0xf]
        %v412 = vld [vmem:[%s406 + $0x14] sm:$0xf]
        %v413 = vld [vmem:[%s406 + $0x18] sm:$0xf]
        %v414 = vld [vmem:[%s406 + $0x1c] sm:$0xf]
        %v415 = vld [vmem:[%s406 + $0x20] sm:$0xf]
        %v416 = vld [vmem:[%s406 + $0x24] sm:$0xf]
        %v417 = vld [vmem:[%s406 + $0x28] sm:$0xf]
        %v418 = vld [vmem:[%s406 + $0x2c] sm:$0xf]
        %v419 = vld [vmem:[%s406 + $0x30] sm:$0xf]
        %v420 = vld [vmem:[%s406 + $0x34] sm:$0xf]
        %v421 = vld [vmem:[%s406 + $0x38] sm:$0xf]
        %v422 = vld [vmem:[%s406 + $0x3c] sm:$0xf]
        %v423 = vld [vmem:[#allocation7 + $0x3] sm:$0x1]
        %v424 = vlaneseq
        %v425 = vshrl.u32 %v424, 7
        %v426 = vsub.s32 0, %v425
        %v427 = vrot.slane %v423, %v426
        %v444 = vunpack.c.l.b16 %v407
        %v445 = vunpack.c.l.b16 %v408
        %v446 = vunpack.c.l.b16 %v409
        %v447 = vunpack.c.l.b16 %v410
        %v448 = vunpack.c.l.b16 %v411
        %v449 = vunpack.c.l.b16 %v412
        %v450 = vunpack.c.l.b16 %v413
        %v451 = vunpack.c.l.b16 %v414
        %v452 = vunpack.c.l.b16 %v415
        %v453 = vunpack.c.l.b16 %v416
        %v454 = vunpack.c.l.b16 %v417
        %v455 = vunpack.c.l.b16 %v418
        %v456 = vunpack.c.l.b16 %v419
        %v457 = vunpack.c.l.b16 %v420
        %v458 = vunpack.c.l.b16 %v421
        %v459 = vunpack.c.l.b16 %v422
        %v460 = vpack.c.b16 %v445, %v444
        %v461 = vpack.c.b16 %v447, %v446
        %v462 = vpack.c.b16 %v449, %v448
        %v463 = vpack.c.b16 %v451, %v450
        %v464 = vpack.c.b16 %v453, %v452
        %v465 = vpack.c.b16 %v455, %v454
        %v466 = vpack.c.b16 %v457, %v456
        %v467 = vpack.c.b16 %v459, %v458
        %476 = vmatprep.subr.bf16.mxu0 0
        %477 = vmatpush1.bf16.msra.mxu0 %v460
        %478 = vmatprep.subr.bf16.mxu0 0
        %479 = vmatpush1.bf16.msra.mxu0 %v461
        %480 = vmatprep.subr.bf16.mxu0 0
        %481 = vmatpush1.bf16.msra.mxu0 %v462
        %482 = vmatprep.subr.bf16.mxu0 0
        %483 = vmatpush1.bf16.msra.mxu0 %v463
        %484 = vmatprep.subr.bf16.mxu0 0
        %485 = vmatpush1.bf16.msra.mxu0 %v464
        %486 = vmatprep.subr.bf16.mxu0 0
        %487 = vmatpush1.bf16.msra.mxu0 %v465
        %488 = vmatprep.subr.bf16.mxu0 0
        %489 = vmatpush1.bf16.msra.mxu0 %v466
        %490 = vmatprep.subr.bf16.mxu0 0
        %491 = vmatpush1.bf16.msra.mxu0 %v467
        %492 = vmatprep.subr.bf16.mxu0 0
        %493 = vmatpush1.bf16.msra.mxu0 0
        %494 = vmatprep.subr.bf16.mxu0 0
        %495 = vmatpush1.bf16.msra.mxu0 0
        %496 = vmatprep.subr.bf16.mxu0 0
        %497 = vmatpush1.bf16.msra.mxu0 0
        %498 = vmatprep.subr.bf16.mxu0 0
        %499 = vmatpush1.bf16.msra.mxu0 0
        %500 = vmatprep.subr.bf16.mxu0 0
        %501 = vmatpush1.bf16.msra.mxu0 0
        %502 = vmatprep.subr.bf16.mxu0 0
        %503 = vmatpush1.bf16.msra.mxu0 0
        %504 = vmatprep.subr.bf16.mxu0 0
        %505 = vmatpush1.bf16.msra.mxu0 0
        %506 = vmatprep.subr.bf16.mxu0 0
        %507 = vmatpush1.bf16.msra.mxu0 0
        %508 = vmatprep.mubr.bf16.mxu0 0
        %509 = vmatmul.mubr.bf16.gmra.mrb[0].mxu0 %v404
        %v510 = vpop.f32.mrb[0].mxu0
        %v511 = vadd.f32 %v427, %v510
        %v512 = vpop.f32.mrb[0].mxu0
        %v513 = vpop.f32.mrb[0].mxu0
        %v514 = vadd.f32 %v427, %v513
        %v515 = vpop.f32.mrb[0].mxu0
        %516 = vmatprep.mubr.bf16.mxu0 0
        %517 = vmatmul.mubr.bf16.gmra.mrb[0].mxu0 %v405
        %v518 = vpop.f32.mrb[0].mxu0
        %v519 = vadd.f32 %v427, %v518
        %v520 = vpop.f32.mrb[0].mxu0
        %v521 = vpop.f32.mrb[0].mxu0
        %v522 = vpop.f32.mrb[0].mxu0
        %523 = vdwg.mxu0
        %524 = vadd.xlane.f32.xlu0 %v511
        %v525 = vpop.xlane.xlu0 %524
        %526 = vadd.xlane.f32.xlu0 %v514
        %v527 = vpop.xlane.xlu0 %526
        %528 = vadd.xlane.f32.xlu0 %v519
        %v529 = vpop.xlane.xlu0 %528
        %v530 = vmul.f32 %v525, 0.015625
        %v531 = vmul.f32 %v527, 0.015625
        %v532 = vmul.f32 %v529, 0.015625
        %v533 = vmul.f32 %v511, %v511
        %v534 = vmul.f32 %v514, %v514
        %v535 = vmul.f32 %v519, %v519
        %536 = vadd.xlane.f32.xlu0 %v533
        %v537 = vpop.xlane.xlu0 %536
        %538 = vadd.xlane.f32.xlu0 %v534
        %v539 = vpop.xlane.xlu0 %538
        %540 = vadd.xlane.f32.xlu0 %v535
        %v541 = vpop.xlane.xlu0 %540
        %v542 = vmul.f32 %v537, 0.015625
        %v543 = vmul.f32 %v539, 0.015625
        %v544 = vmul.f32 %v541, 0.015625
        %v545 = vmul.f32 %v530, %v530
        %v546 = vmul.f32 %v531, %v531
        %v547 = vmul.f32 %v532, %v532
        %v548 = vsub.f32 %v542, %v545
        %v549 = vsub.f32 %v543, %v546
        %v550 = vsub.f32 %v544, %v547
        %v551 = vmax.f32 %v548, 0.0
        %v552 = vmax.f32 %v549, 0.0
        %v553 = vmax.f32 %v550, 0.0
        %v554 = vsub.f32 %v511, %v530
        %v555 = vsub.f32 %v514, %v531
        %v556 = vsub.f32 %v519, %v532
        %v557 = vadd.f32 %v551, 1e-05
        %v558 = vadd.f32 %v552, 1e-05
        %v559 = vadd.f32 %v553, 1e-05
        %v560 = vrsqrt.pop %v557
        %v561 = vrsqrt.pop %v558
        %v562 = vrsqrt.pop %v559
        %v563 = vmul.f32 %v554, %v560
        %v564 = vmul.f32 %v555, %v561
        %v565 = vmul.f32 %v556, %v562
        %v566 = vld [vmem:[#allocation7 + $0x4] sm:$0x1]
        %v567 = vlaneseq
        %v568 = vshrl.u32 %v567, 7
        %v569 = vsub.s32 0, %v568
        %v570 = vrot.slane %v566, %v569
        %v571 = vmul.f32 %v563, %v570
        %v572 = vmul.f32 %v564, %v570
        %v573 = vmul.f32 %v565, %v570
        %v574 = vld [vmem:[#allocation7 + $0x5] sm:$0x1]
        %v575 = vlaneseq
        %v576 = vshrl.u32 %v575, 7
        %v577 = vsub.s32 0, %v576
        %v578 = vrot.slane %v574, %v577
        %v579 = vadd.f32 %v571, %v578
        %v580 = vadd.f32 %v572, %v578
        %v581 = vadd.f32 %v573, %v578
        %v582 = vmax.f32 %v579, 0.0
        %v583 = vmax.f32 %v580, 0.0
        %v584 = vmax.f32 %v581, 0.0
        %v585 = vpack.c.bf16 %v583, %v582
        %v586 = vpack.c.bf16 %v584, %v584
        %s587 = scalar_lea.vmem [#allocation5], 128
        %v588 = vld [vmem:[%s587] sm:$0xf]
        %v589 = vld [vmem:[%s587 + $0x4] sm:$0xf]
        %v590 = vld [vmem:[%s587 + $0x8] sm:$0xf]
        %v591 = vld [vmem:[%s587 + $0xc] sm:$0xf]
        %v592 = vld [vmem:[%s587 + $0x10] sm:$0xf]
        %v593 = vld [vmem:[%s587 + $0x14] sm:$0xf]
        %v594 = vld [vmem:[%s587 + $0x18] sm:$0xf]
        %v595 = vld [vmem:[%s587 + $0x1c] sm:$0xf]
        %v596 = vld [vmem:[%s587 + $0x20] sm:$0xf]
        %v597 = vld [vmem:[%s587 + $0x24] sm:$0xf]
        %v598 = vld [vmem:[%s587 + $0x28] sm:$0xf]
        %v599 = vld [vmem:[%s587 + $0x2c] sm:$0xf]
        %v600 = vld [vmem:[%s587 + $0x30] sm:$0xf]
        %v601 = vld [vmem:[%s587 + $0x34] sm:$0xf]
        %v602 = vld [vmem:[%s587 + $0x38] sm:$0xf]
        %v603 = vld [vmem:[%s587 + $0x3c] sm:$0xf]
        %v604 = vld [vmem:[#allocation7 + $0x6] sm:$0x1]
        %v605 = vlaneseq
        %v606 = vshrl.u32 %v605, 7
        %v607 = vsub.s32 0, %v606
        %v608 = vrot.slane %v604, %v607
        %v625 = vunpack.c.l.b16 %v588
        %v626 = vunpack.c.l.b16 %v589
        %v627 = vunpack.c.l.b16 %v590
        %v628 = vunpack.c.l.b16 %v591
        %v629 = vunpack.c.l.b16 %v592
        %v630 = vunpack.c.l.b16 %v593
        %v631 = vunpack.c.l.b16 %v594
        %v632 = vunpack.c.l.b16 %v595
        %v633 = vunpack.c.l.b16 %v596
        %v634 = vunpack.c.l.b16 %v597
        %v635 = vunpack.c.l.b16 %v598
        %v636 = vunpack.c.l.b16 %v599
        %v637 = vunpack.c.l.b16 %v600
        %v638 = vunpack.c.l.b16 %v601
        %v639 = vunpack.c.l.b16 %v602
        %v640 = vunpack.c.l.b16 %v603
        %v641 = vpack.c.b16 %v626, %v625
        %v642 = vpack.c.b16 %v628, %v627
        %v643 = vpack.c.b16 %v630, %v629
        %v644 = vpack.c.b16 %v632, %v631
        %v645 = vpack.c.b16 %v634, %v633
        %v646 = vpack.c.b16 %v636, %v635
        %v647 = vpack.c.b16 %v638, %v637
        %v648 = vpack.c.b16 %v640, %v639
        %657 = vmatprep.subr.bf16.mxu0 0
        %658 = vmatpush1.bf16.msra.mxu0 %v641
        %659 = vmatprep.subr.bf16.mxu0 0
        %660 = vmatpush1.bf16.msra.mxu0 %v642
        %661 = vmatprep.subr.bf16.mxu0 0
        %662 = vmatpush1.bf16.msra.mxu0 %v643
        %663 = vmatprep.subr.bf16.mxu0 0
        %664 = vmatpush1.bf16.msra.mxu0 %v644
        %665 = vmatprep.subr.bf16.mxu0 0
        %666 = vmatpush1.bf16.msra.mxu0 %v645
        %667 = vmatprep.subr.bf16.mxu0 0
        %668 = vmatpush1.bf16.msra.mxu0 %v646
        %669 = vmatprep.subr.bf16.mxu0 0
        %670 = vmatpush1.bf16.msra.mxu0 %v647
        %671 = vmatprep.subr.bf16.mxu0 0
        %672 = vmatpush1.bf16.msra.mxu0 %v648
        %673 = vmatprep.subr.bf16.mxu0 0
        %674 = vmatpush1.bf16.msra.mxu0 0
        %675 = vmatprep.subr.bf16.mxu0 0
        %676 = vmatpush1.bf16.msra.mxu0 0
        %677 = vmatprep.subr.bf16.mxu0 0
        %678 = vmatpush1.bf16.msra.mxu0 0
        %679 = vmatprep.subr.bf16.mxu0 0
        %680 = vmatpush1.bf16.msra.mxu0 0
        %681 = vmatprep.subr.bf16.mxu0 0
        %682 = vmatpush1.bf16.msra.mxu0 0
        %683 = vmatprep.subr.bf16.mxu0 0
        %684 = vmatpush1.bf16.msra.mxu0 0
        %685 = vmatprep.subr.bf16.mxu0 0
        %686 = vmatpush1.bf16.msra.mxu0 0
        %687 = vmatprep.subr.bf16.mxu0 0
        %688 = vmatpush1.bf16.msra.mxu0 0
        %689 = vmatprep.mubr.bf16.mxu0 0
        %690 = vmatmul.mubr.bf16.gmra.mrb[0].mxu0 %v585
        %v691 = vpop.f32.mrb[0].mxu0
        %v692 = vadd.f32 %v608, %v691
        %v693 = vpop.f32.mrb[0].mxu0
        %v694 = vpop.f32.mrb[0].mxu0
        %v695 = vadd.f32 %v608, %v694
        %v696 = vpop.f32.mrb[0].mxu0
        %697 = vmatprep.mubr.bf16.mxu0 0
        %698 = vmatmul.mubr.bf16.gmra.mrb[0].mxu0 %v586
        %v699 = vpop.f32.mrb[0].mxu0
        %v700 = vadd.f32 %v608, %v699
        %v701 = vpop.f32.mrb[0].mxu0
        %v702 = vpop.f32.mrb[0].mxu0
        %v703 = vpop.f32.mrb[0].mxu0
        %704 = vdwg.mxu0
        %v705 = vmul.f32 %v692, %v692
        %v706 = vmul.f32 %v695, %v695
        %v707 = vmul.f32 %v700, %v700
        %708 = vadd.xlane.f32.xlu0 %v705
        %v709 = vpop.xlane.xlu0 %708
        %710 = vadd.xlane.f32.xlu0 %v706
        %v711 = vpop.xlane.xlu0 %710
        %712 = vadd.xlane.f32.xlu0 %v707
        %v713 = vpop.xlane.xlu0 %712
        %v714 = vmax.f32 %v709, 1e-24
        %v715 = vmax.f32 %v711, 1e-24
        %v716 = vmax.f32 %v713, 1e-24
        %v717 = vrsqrt.pop %v714
        %v718 = vrsqrt.pop %v715
        %v719 = vrsqrt.pop %v716
        %v720 = vmul.f32 %v692, %v717
        %v721 = vmul.f32 %v695, %v718
        %v722 = vmul.f32 %v700, %v719
        %v723 = vpack.c.bf16 %v721, %v720
        %v724 = vpack.c.bf16 %v722, %v722
        %s725 = scalar_lea.vmem [#allocation5], 192
        %v726 = vld [vmem:[%s725] sm:$0xf]
        %v727 = vld [vmem:[%s725 + $0x4] sm:$0xf]
        %v728 = vld [vmem:[%s725 + $0x8] sm:$0xf]
        %v729 = vld [vmem:[%s725 + $0xc] sm:$0xf]
        %v730 = vld [vmem:[%s725 + $0x10] sm:$0xf]
        %v731 = vld [vmem:[%s725 + $0x14] sm:$0xf]
        %v732 = vld [vmem:[%s725 + $0x18] sm:$0xf]
        %v733 = vld [vmem:[%s725 + $0x1c] sm:$0xf]
        %v734 = vld [vmem:[%s725 + $0x20] sm:$0xf]
        %v735 = vld [vmem:[%s725 + $0x24] sm:$0xf]
        %v736 = vld [vmem:[%s725 + $0x28] sm:$0xf]
        %v737 = vld [vmem:[%s725 + $0x2c] sm:$0xf]
        %v738 = vld [vmem:[%s725 + $0x30] sm:$0xf]
        %v739 = vld [vmem:[%s725 + $0x34] sm:$0xf]
        %v740 = vld [vmem:[%s725 + $0x38] sm:$0xf]
        %v741 = vld [vmem:[%s725 + $0x3c] sm:$0xf]
        %v742 = vld [vmem:[#allocation7 + $0x7] sm:$0x1]
        %v743 = vlaneseq
        %v744 = vshrl.u32 %v743, 7
        %v745 = vsub.s32 0, %v744
        %v746 = vrot.slane %v742, %v745
        %v763 = vunpack.c.l.b16 %v726
        %v764 = vunpack.c.l.b16 %v727
        %v765 = vunpack.c.l.b16 %v728
        %v766 = vunpack.c.l.b16 %v729
        %v767 = vunpack.c.l.b16 %v730
        %v768 = vunpack.c.l.b16 %v731
        %v769 = vunpack.c.l.b16 %v732
        %v770 = vunpack.c.l.b16 %v733
        %v771 = vunpack.c.l.b16 %v734
        %v772 = vunpack.c.l.b16 %v735
        %v773 = vunpack.c.l.b16 %v736
        %v774 = vunpack.c.l.b16 %v737
        %v775 = vunpack.c.l.b16 %v738
        %v776 = vunpack.c.l.b16 %v739
        %v777 = vunpack.c.l.b16 %v740
        %v778 = vunpack.c.l.b16 %v741
        %v779 = vpack.c.b16 %v764, %v763
        %v780 = vpack.c.b16 %v766, %v765
        %v781 = vpack.c.b16 %v768, %v767
        %v782 = vpack.c.b16 %v770, %v769
        %v783 = vpack.c.b16 %v772, %v771
        %v784 = vpack.c.b16 %v774, %v773
        %v785 = vpack.c.b16 %v776, %v775
        %v786 = vpack.c.b16 %v778, %v777
        %795 = vmatprep.subr.bf16.mxu0 0
        %796 = vmatpush1.bf16.msra.mxu0 %v779
        %797 = vmatprep.subr.bf16.mxu0 0
        %798 = vmatpush1.bf16.msra.mxu0 %v780
        %799 = vmatprep.subr.bf16.mxu0 0
        %800 = vmatpush1.bf16.msra.mxu0 %v781
        %801 = vmatprep.subr.bf16.mxu0 0
        %802 = vmatpush1.bf16.msra.mxu0 %v782
        %803 = vmatprep.subr.bf16.mxu0 0
        %804 = vmatpush1.bf16.msra.mxu0 %v783
        %805 = vmatprep.subr.bf16.mxu0 0
        %806 = vmatpush1.bf16.msra.mxu0 %v784
        %807 = vmatprep.subr.bf16.mxu0 0
        %808 = vmatpush1.bf16.msra.mxu0 %v785
        %809 = vmatprep.subr.bf16.mxu0 0
        %810 = vmatpush1.bf16.msra.mxu0 %v786
        %811 = vmatprep.subr.bf16.mxu0 0
        %812 = vmatpush1.bf16.msra.mxu0 0
        %813 = vmatprep.subr.bf16.mxu0 0
        %814 = vmatpush1.bf16.msra.mxu0 0
        %815 = vmatprep.subr.bf16.mxu0 0
        %816 = vmatpush1.bf16.msra.mxu0 0
        %817 = vmatprep.subr.bf16.mxu0 0
        %818 = vmatpush1.bf16.msra.mxu0 0
        %819 = vmatprep.subr.bf16.mxu0 0
        %820 = vmatpush1.bf16.msra.mxu0 0
        %821 = vmatprep.subr.bf16.mxu0 0
        %822 = vmatpush1.bf16.msra.mxu0 0
        %823 = vmatprep.subr.bf16.mxu0 0
        %824 = vmatpush1.bf16.msra.mxu0 0
        %825 = vmatprep.subr.bf16.mxu0 0
        %826 = vmatpush1.bf16.msra.mxu0 0
        %827 = vmatprep.mubr.bf16.mxu0 0
        %828 = vmatmul.mubr.bf16.gmra.mrb[0].mxu0 %v723
        %v829 = vpop.f32.mrb[0].mxu0
        %v830 = vadd.f32 %v746, %v829
        %v831 = vpop.f32.mrb[0].mxu0
        %v832 = vpop.f32.mrb[0].mxu0
        %v833 = vadd.f32 %v746, %v832
        %v834 = vpop.f32.mrb[0].mxu0
        %835 = vmatprep.mubr.bf16.mxu0 0
        %836 = vmatmul.mubr.bf16.gmra.mrb[0].mxu0 %v724
        %v837 = vpop.f32.mrb[0].mxu0
        %v838 = vadd.f32 %v746, %v837
        %v839 = vpop.f32.mrb[0].mxu0
        %v840 = vpop.f32.mrb[0].mxu0
        %v841 = vpop.f32.mrb[0].mxu0
        %842 = vdwg.mxu0
        %v843 = vld [vmem:[#allocation7 + $0xf] sm:$0x1]
        %v844 = vlaneseq
        %v845 = vshrl.u32 %v844, 7
        %v846 = vsub.s32 0, %v845
        %v847 = vrot.slane %v843, %v846
        %v848 = vmul.f32 %v830, %v847
        %v849 = vmul.f32 %v833, %v847
        %v850 = vmul.f32 %v838, %v847
        %v851 = vmax.f32 %v830, 0.0
        %v852 = vmax.f32 %v833, 0.0
        %v853 = vmax.f32 %v838, 0.0
        %v854 = vld [vmem:[#allocation7 + $0x10] sm:$0x1]
        %v855 = vlaneseq
        %v856 = vshrl.u32 %v855, 7
        %v857 = vsub.s32 0, %v856
        %v858 = vrot.slane %v854, %v857
        %v859 = vmul.f32 %v851, %v858
        %v860 = vmul.f32 %v852, %v858
        %v861 = vmul.f32 %v853, %v858
        %862 = vadd.xlane.f32.xlu0 %v848
        %v863 = vpop.xlane.xlu0 %862
        %864 = vadd.xlane.f32.xlu0 %v849
        %v865 = vpop.xlane.xlu0 %864
        %866 = vadd.xlane.f32.xlu0 %v850
        %v867 = vpop.xlane.xlu0 %866
        %v868 = vmul.f32 %v863, 0.015625
        %v869 = vmul.f32 %v865, 0.015625
        %v870 = vmul.f32 %v867, 0.015625
        %v871 = vmul.f32 %v848, %v848
        %v872 = vmul.f32 %v849, %v849
        %v873 = vmul.f32 %v850, %v850
        %874 = vadd.xlane.f32.xlu0 %v871
        %v875 = vpop.xlane.xlu0 %874
        %876 = vadd.xlane.f32.xlu0 %v872
        %v877 = vpop.xlane.xlu0 %876
        %878 = vadd.xlane.f32.xlu0 %v873
        %v879 = vpop.xlane.xlu0 %878
        %v880 = vmul.f32 %v875, 0.015625
        %v881 = vmul.f32 %v877, 0.015625
        %v882 = vmul.f32 %v879, 0.015625
        %v883 = vmul.f32 %v868, %v868
        %v884 = vmul.f32 %v869, %v869
        %v885 = vmul.f32 %v870, %v870
        %v886 = vsub.f32 %v880, %v883
        %v887 = vsub.f32 %v881, %v884
        %v888 = vsub.f32 %v882, %v885
        %v889 = vmax.f32 %v886, 0.0
        %v890 = vmax.f32 %v887, 0.0
        %v891 = vmax.f32 %v888, 0.0
        %v892 = vsub.f32 %v848, %v868
        %v893 = vsub.f32 %v849, %v869
        %v894 = vsub.f32 %v850, %v870
        %v895 = vadd.f32 %v889, 1e-05
        %v896 = vadd.f32 %v890, 1e-05
        %v897 = vadd.f32 %v891, 1e-05
        %v898 = vrsqrt.pop %v895
        %v899 = vrsqrt.pop %v896
        %v900 = vrsqrt.pop %v897
        %v901 = vmul.f32 %v892, %v898
        %v902 = vmul.f32 %v893, %v899
        %v903 = vmul.f32 %v894, %v900
        %v904 = vld [vmem:[#allocation7 + $0x8] sm:$0x1]
        %v905 = vlaneseq
        %v906 = vshrl.u32 %v905, 7
        %v907 = vsub.s32 0, %v906
        %v908 = vrot.slane %v904, %v907
        %v909 = vmul.f32 %v901, %v908
        %v910 = vmul.f32 %v902, %v908
        %v911 = vmul.f32 %v903, %v908
        %v912 = vld [vmem:[#allocation7 + $0x9] sm:$0x1]
        %v913 = vlaneseq
        %v914 = vshrl.u32 %v913, 7
        %v915 = vsub.s32 0, %v914
        %v916 = vrot.slane %v912, %v915
        %v917 = vadd.f32 %v909, %v916
        %v918 = vadd.f32 %v910, %v916
        %v919 = vadd.f32 %v911, %v916
        %v920 = vmax.f32 %v917, 0.0
        %v921 = vmax.f32 %v918, 0.0
        %v922 = vmax.f32 %v919, 0.0
        %v923 = vpack.c.bf16 %v921, %v920
        %v924 = vpack.c.bf16 %v922, %v922
        %s925 = scalar_lea.vmem [#allocation5], 256
        %v926 = vld [vmem:[%s925] sm:$0xf]
        %v927 = vld [vmem:[%s925 + $0x4] sm:$0xf]
        %v928 = vld [vmem:[%s925 + $0x8] sm:$0xf]
        %v929 = vld [vmem:[%s925 + $0xc] sm:$0xf]
        %v930 = vld [vmem:[%s925 + $0x10] sm:$0xf]
        %v931 = vld [vmem:[%s925 + $0x14] sm:$0xf]
        %v932 = vld [vmem:[%s925 + $0x18] sm:$0xf]
        %v933 = vld [vmem:[%s925 + $0x1c] sm:$0xf]
        %v934 = vld [vmem:[%s925 + $0x20] sm:$0xf]
        %v935 = vld [vmem:[%s925 + $0x24] sm:$0xf]
        %v936 = vld [vmem:[%s925 + $0x28] sm:$0xf]
        %v937 = vld [vmem:[%s925 + $0x2c] sm:$0xf]
        %v938 = vld [vmem:[%s925 + $0x30] sm:$0xf]
        %v939 = vld [vmem:[%s925 + $0x34] sm:$0xf]
        %v940 = vld [vmem:[%s925 + $0x38] sm:$0xf]
        %v941 = vld [vmem:[%s925 + $0x3c] sm:$0xf]
        %v942 = vld [vmem:[#allocation7 + $0xa] sm:$0x1]
        %v943 = vlaneseq
        %v944 = vshrl.u32 %v943, 7
        %v945 = vsub.s32 0, %v944
        %v946 = vrot.slane %v942, %v945
        %v963 = vunpack.c.l.b16 %v926
        %v964 = vunpack.c.l.b16 %v927
        %v965 = vunpack.c.l.b16 %v928
        %v966 = vunpack.c.l.b16 %v929
        %v967 = vunpack.c.l.b16 %v930
        %v968 = vunpack.c.l.b16 %v931
        %v969 = vunpack.c.l.b16 %v932
        %v970 = vunpack.c.l.b16 %v933
        %v971 = vunpack.c.l.b16 %v934
        %v972 = vunpack.c.l.b16 %v935
        %v973 = vunpack.c.l.b16 %v936
        %v974 = vunpack.c.l.b16 %v937
        %v975 = vunpack.c.l.b16 %v938
        %v976 = vunpack.c.l.b16 %v939
        %v977 = vunpack.c.l.b16 %v940
        %v978 = vunpack.c.l.b16 %v941
        %v979 = vpack.c.b16 %v964, %v963
        %v980 = vpack.c.b16 %v966, %v965
        %v981 = vpack.c.b16 %v968, %v967
        %v982 = vpack.c.b16 %v970, %v969
        %v983 = vpack.c.b16 %v972, %v971
        %v984 = vpack.c.b16 %v974, %v973
        %v985 = vpack.c.b16 %v976, %v975
        %v986 = vpack.c.b16 %v978, %v977
        %995 = vmatprep.subr.bf16.mxu0 0
        %996 = vmatpush1.bf16.msra.mxu0 %v979
        %997 = vmatprep.subr.bf16.mxu0 0
        %998 = vmatpush1.bf16.msra.mxu0 %v980
        %999 = vmatprep.subr.bf16.mxu0 0
        %1000 = vmatpush1.bf16.msra.mxu0 %v981
        %1001 = vmatprep.subr.bf16.mxu0 0
        %1002 = vmatpush1.bf16.msra.mxu0 %v982
        %1003 = vmatprep.subr.bf16.mxu0 0
        %1004 = vmatpush1.bf16.msra.mxu0 %v983
        %1005 = vmatprep.subr.bf16.mxu0 0
        %1006 = vmatpush1.bf16.msra.mxu0 %v984
        %1007 = vmatprep.subr.bf16.mxu0 0
        %1008 = vmatpush1.bf16.msra.mxu0 %v985
        %1009 = vmatprep.subr.bf16.mxu0 0
        %1010 = vmatpush1.bf16.msra.mxu0 %v986
        %1011 = vmatprep.subr.bf16.mxu0 0
        %1012 = vmatpush1.bf16.msra.mxu0 0
        %1013 = vmatprep.subr.bf16.mxu0 0
        %1014 = vmatpush1.bf16.msra.mxu0 0
        %1015 = vmatprep.subr.bf16.mxu0 0
        %1016 = vmatpush1.bf16.msra.mxu0 0
        %1017 = vmatprep.subr.bf16.mxu0 0
        %1018 = vmatpush1.bf16.msra.mxu0 0
        %1019 = vmatprep.subr.bf16.mxu0 0
        %1020 = vmatpush1.bf16.msra.mxu0 0
        %1021 = vmatprep.subr.bf16.mxu0 0
        %1022 = vmatpush1.bf16.msra.mxu0 0
        %1023 = vmatprep.subr.bf16.mxu0 0
        %1024 = vmatpush1.bf16.msra.mxu0 0
        %1025 = vmatprep.subr.bf16.mxu0 0
        %1026 = vmatpush1.bf16.msra.mxu0 0
        %1027 = vmatprep.mubr.bf16.mxu0 0
        %1028 = vmatmul.mubr.bf16.gmra.mrb[0].mxu0 %v923
        %v1029 = vpop.f32.mrb[0].mxu0
        %v1030 = vadd.f32 %v946, %v1029
        %v1031 = vpop.f32.mrb[0].mxu0
        %v1032 = vpop.f32.mrb[0].mxu0
        %v1033 = vadd.f32 %v946, %v1032
        %v1034 = vpop.f32.mrb[0].mxu0
        %1035 = vmatprep.mubr.bf16.mxu0 0
        %1036 = vmatmul.mubr.bf16.gmra.mrb[0].mxu0 %v924
        %v1037 = vpop.f32.mrb[0].mxu0
        %v1038 = vadd.f32 %v946, %v1037
        %v1039 = vpop.f32.mrb[0].mxu0
        %v1040 = vpop.f32.mrb[0].mxu0
        %v1041 = vpop.f32.mrb[0].mxu0
        %1042 = vdwg.mxu0
        %1043 = vadd.xlane.f32.xlu0 %v1030
        %v1044 = vpop.xlane.xlu0 %1043
        %1045 = vadd.xlane.f32.xlu0 %v1033
        %v1046 = vpop.xlane.xlu0 %1045
        %1047 = vadd.xlane.f32.xlu0 %v1038
        %v1048 = vpop.xlane.xlu0 %1047
        %v1049 = vmul.f32 %v1044, 0.0078125
        %v1050 = vmul.f32 %v1046, 0.0078125
        %v1051 = vmul.f32 %v1048, 0.0078125
        %v1052 = vmul.f32 %v1030, %v1030
        %v1053 = vmul.f32 %v1033, %v1033
        %v1054 = vmul.f32 %v1038, %v1038
        %1055 = vadd.xlane.f32.xlu0 %v1052
        %v1056 = vpop.xlane.xlu0 %1055
        %1057 = vadd.xlane.f32.xlu0 %v1053
        %v1058 = vpop.xlane.xlu0 %1057
        %1059 = vadd.xlane.f32.xlu0 %v1054
        %v1060 = vpop.xlane.xlu0 %1059
        %v1061 = vmul.f32 %v1056, 0.0078125
        %v1062 = vmul.f32 %v1058, 0.0078125
        %v1063 = vmul.f32 %v1060, 0.0078125
        %v1064 = vmul.f32 %v1049, %v1049
        %v1065 = vmul.f32 %v1050, %v1050
        %v1066 = vmul.f32 %v1051, %v1051
        %v1067 = vsub.f32 %v1061, %v1064
        %v1068 = vsub.f32 %v1062, %v1065
        %v1069 = vsub.f32 %v1063, %v1066
        %v1070 = vmax.f32 %v1067, 0.0
        %v1071 = vmax.f32 %v1068, 0.0
        %v1072 = vmax.f32 %v1069, 0.0
        %v1073 = vsub.f32 %v1030, %v1049
        %v1074 = vsub.f32 %v1033, %v1050
        %v1075 = vsub.f32 %v1038, %v1051
        %v1076 = vadd.f32 %v1070, 1e-05
        %v1077 = vadd.f32 %v1071, 1e-05
        %v1078 = vadd.f32 %v1072, 1e-05
        %v1079 = vrsqrt.pop %v1076
        %v1080 = vrsqrt.pop %v1077
        %v1081 = vrsqrt.pop %v1078
        %v1082 = vmul.f32 %v1073, %v1079
        %v1083 = vmul.f32 %v1074, %v1080
        %v1084 = vmul.f32 %v1075, %v1081
        %v1085 = vld [vmem:[#allocation7 + $0xb] sm:$0x1]
        %v1086 = vlaneseq
        %v1087 = vshrl.u32 %v1086, 7
        %v1088 = vsub.s32 0, %v1087
        %v1089 = vrot.slane %v1085, %v1088
        %v1090 = vmul.f32 %v1082, %v1089
        %v1091 = vmul.f32 %v1083, %v1089
        %v1092 = vmul.f32 %v1084, %v1089
        %v1093 = vld [vmem:[#allocation7 + $0xc] sm:$0x1]
        %v1094 = vlaneseq
        %v1095 = vshrl.u32 %v1094, 7
        %v1096 = vsub.s32 0, %v1095
        %v1097 = vrot.slane %v1093, %v1096
        %v1098 = vadd.f32 %v1090, %v1097
        %v1099 = vadd.f32 %v1091, %v1097
        %v1100 = vadd.f32 %v1092, %v1097
        %v1101 = vmax.f32 %v1098, 0.0
        %v1102 = vmax.f32 %v1099, 0.0
        %v1103 = vmax.f32 %v1100, 0.0
        %v1104 = vpack.c.bf16 %v1102, %v1101
        %v1105 = vpack.c.bf16 %v1103, %v1103
        %s1106 = scalar_lea.vmem [#allocation5], 320
        %v1107 = vld [vmem:[%s1106] sm:$0xf]
        %v1108 = vld [vmem:[%s1106 + $0x4] sm:$0xf]
        %v1109 = vld [vmem:[%s1106 + $0x8] sm:$0xf]
        %v1110 = vld [vmem:[%s1106 + $0xc] sm:$0xf]
        %v1111 = vld [vmem:[%s1106 + $0x10] sm:$0xf]
        %v1112 = vld [vmem:[%s1106 + $0x14] sm:$0xf]
        %v1113 = vld [vmem:[%s1106 + $0x18] sm:$0xf]
        %v1114 = vld [vmem:[%s1106 + $0x1c] sm:$0xf]
        %v1115 = vld [vmem:[%s1106 + $0x20] sm:$0xf]
        %v1116 = vld [vmem:[%s1106 + $0x24] sm:$0xf]
        %v1117 = vld [vmem:[%s1106 + $0x28] sm:$0xf]
        %v1118 = vld [vmem:[%s1106 + $0x2c] sm:$0xf]
        %v1119 = vld [vmem:[%s1106 + $0x30] sm:$0xf]
        %v1120 = vld [vmem:[%s1106 + $0x34] sm:$0xf]
        %v1121 = vld [vmem:[%s1106 + $0x38] sm:$0xf]
        %v1122 = vld [vmem:[%s1106 + $0x3c] sm:$0xf]
        %v1123 = vld [vmem:[#allocation7 + $0xd] sm:$0x1]
        %v1124 = vlaneseq
        %v1125 = vshrl.u32 %v1124, 7
        %v1126 = vsub.s32 0, %v1125
        %v1127 = vrot.slane %v1123, %v1126
        %v1144 = vunpack.c.l.b16 %v1107
        %v1145 = vunpack.c.l.b16 %v1108
        %v1146 = vunpack.c.l.b16 %v1109
        %v1147 = vunpack.c.l.b16 %v1110
        %v1148 = vunpack.c.l.b16 %v1111
        %v1149 = vunpack.c.l.b16 %v1112
        %v1150 = vunpack.c.l.b16 %v1113
        %v1151 = vunpack.c.l.b16 %v1114
        %v1152 = vunpack.c.l.b16 %v1115
        %v1153 = vunpack.c.l.b16 %v1116
        %v1154 = vunpack.c.l.b16 %v1117
        %v1155 = vunpack.c.l.b16 %v1118
        %v1156 = vunpack.c.l.b16 %v1119
        %v1157 = vunpack.c.l.b16 %v1120
        %v1158 = vunpack.c.l.b16 %v1121
        %v1159 = vunpack.c.l.b16 %v1122
        %v1160 = vpack.c.b16 %v1145, %v1144
        %v1161 = vpack.c.b16 %v1147, %v1146
        %v1162 = vpack.c.b16 %v1149, %v1148
        %v1163 = vpack.c.b16 %v1151, %v1150
        %v1164 = vpack.c.b16 %v1153, %v1152
        %v1165 = vpack.c.b16 %v1155, %v1154
        %v1166 = vpack.c.b16 %v1157, %v1156
        %v1167 = vpack.c.b16 %v1159, %v1158
        %1176 = vmatprep.subr.bf16.mxu0 0
        %1177 = vmatpush1.bf16.msra.mxu0 %v1160
        %1178 = vmatprep.subr.bf16.mxu0 0
        %1179 = vmatpush1.bf16.msra.mxu0 %v1161
        %1180 = vmatprep.subr.bf16.mxu0 0
        %1181 = vmatpush1.bf16.msra.mxu0 %v1162
        %1182 = vmatprep.subr.bf16.mxu0 0
        %1183 = vmatpush1.bf16.msra.mxu0 %v1163
        %1184 = vmatprep.subr.bf16.mxu0 0
        %1185 = vmatpush1.bf16.msra.mxu0 %v1164
        %1186 = vmatprep.subr.bf16.mxu0 0
        %1187 = vmatpush1.bf16.msra.mxu0 %v1165
        %1188 = vmatprep.subr.bf16.mxu0 0
        %1189 = vmatpush1.bf16.msra.mxu0 %v1166
        %1190 = vmatprep.subr.bf16.mxu0 0
        %1191 = vmatpush1.bf16.msra.mxu0 %v1167
        %1192 = vmatprep.subr.bf16.mxu0 0
        %1193 = vmatpush1.bf16.msra.mxu0 0
        %1194 = vmatprep.subr.bf16.mxu0 0
        %1195 = vmatpush1.bf16.msra.mxu0 0
        %1196 = vmatprep.subr.bf16.mxu0 0
        %1197 = vmatpush1.bf16.msra.mxu0 0
        %1198 = vmatprep.subr.bf16.mxu0 0
        %1199 = vmatpush1.bf16.msra.mxu0 0
        %1200 = vmatprep.subr.bf16.mxu0 0
        %1201 = vmatpush1.bf16.msra.mxu0 0
        %1202 = vmatprep.subr.bf16.mxu0 0
        %1203 = vmatpush1.bf16.msra.mxu0 0
        %1204 = vmatprep.subr.bf16.mxu0 0
        %1205 = vmatpush1.bf16.msra.mxu0 0
        %1206 = vmatprep.subr.bf16.mxu0 0
        %1207 = vmatpush1.bf16.msra.mxu0 0
        %1208 = vmatprep.mubr.bf16.mxu0 0
        %1209 = vmatmul.mubr.bf16.gmra.mrb[0].mxu0 %v1104
        %v1210 = vpop.f32.mrb[0].mxu0
        %v1211 = vadd.f32 %v1127, %v1210
        %v1212 = vpop.f32.mrb[0].mxu0
        %v1213 = vpop.f32.mrb[0].mxu0
        %v1214 = vadd.f32 %v1127, %v1213
        %v1215 = vpop.f32.mrb[0].mxu0
        %1216 = vmatprep.mubr.bf16.mxu0 0
        %1217 = vmatmul.mubr.bf16.gmra.mrb[0].mxu0 %v1105
        %v1218 = vpop.f32.mrb[0].mxu0
        %v1219 = vadd.f32 %v1127, %v1218
        %v1220 = vpop.f32.mrb[0].mxu0
        %v1221 = vpop.f32.mrb[0].mxu0
        %v1222 = vpop.f32.mrb[0].mxu0
        %1223 = vdwg.mxu0
        %v1224 = vpack.c.bf16 %v860, %v859
        %v1225 = vpack.c.bf16 %v861, %v861
        %s1226 = scalar_lea.vmem [#allocation5], 384
        %v1227 = vld [vmem:[%s1226] sm:$0xf]
        %v1228 = vld [vmem:[%s1226 + $0x4] sm:$0xf]
        %v1229 = vld [vmem:[%s1226 + $0x8] sm:$0xf]
        %v1230 = vld [vmem:[%s1226 + $0xc] sm:$0xf]
        %v1231 = vld [vmem:[%s1226 + $0x10] sm:$0xf]
        %v1232 = vld [vmem:[%s1226 + $0x14] sm:$0xf]
        %v1233 = vld [vmem:[%s1226 + $0x18] sm:$0xf]
        %v1234 = vld [vmem:[%s1226 + $0x1c] sm:$0xf]
        %v1235 = vld [vmem:[%s1226 + $0x20] sm:$0xf]
        %v1236 = vld [vmem:[%s1226 + $0x24] sm:$0xf]
        %v1237 = vld [vmem:[%s1226 + $0x28] sm:$0xf]
        %v1238 = vld [vmem:[%s1226 + $0x2c] sm:$0xf]
        %v1239 = vld [vmem:[%s1226 + $0x30] sm:$0xf]
        %v1240 = vld [vmem:[%s1226 + $0x34] sm:$0xf]
        %v1241 = vld [vmem:[%s1226 + $0x38] sm:$0xf]
        %v1242 = vld [vmem:[%s1226 + $0x3c] sm:$0xf]
        %v1243 = vld [vmem:[#allocation7 + $0xe] sm:$0x1]
        %v1244 = vlaneseq
        %v1245 = vshrl.u32 %v1244, 7
        %v1246 = vsub.s32 0, %v1245
        %v1247 = vrot.slane %v1243, %v1246
        %v1264 = vunpack.c.l.b16 %v1227
        %v1265 = vunpack.c.l.b16 %v1228
        %v1266 = vunpack.c.l.b16 %v1229
        %v1267 = vunpack.c.l.b16 %v1230
        %v1268 = vunpack.c.l.b16 %v1231
        %v1269 = vunpack.c.l.b16 %v1232
        %v1270 = vunpack.c.l.b16 %v1233
        %v1271 = vunpack.c.l.b16 %v1234
        %v1272 = vunpack.c.l.b16 %v1235
        %v1273 = vunpack.c.l.b16 %v1236
        %v1274 = vunpack.c.l.b16 %v1237
        %v1275 = vunpack.c.l.b16 %v1238
        %v1276 = vunpack.c.l.b16 %v1239
        %v1277 = vunpack.c.l.b16 %v1240
        %v1278 = vunpack.c.l.b16 %v1241
        %v1279 = vunpack.c.l.b16 %v1242
        %v1280 = vpack.c.b16 %v1265, %v1264
        %v1281 = vpack.c.b16 %v1267, %v1266
        %v1282 = vpack.c.b16 %v1269, %v1268
        %v1283 = vpack.c.b16 %v1271, %v1270
        %v1284 = vpack.c.b16 %v1273, %v1272
        %v1285 = vpack.c.b16 %v1275, %v1274
        %v1286 = vpack.c.b16 %v1277, %v1276
        %v1287 = vpack.c.b16 %v1279, %v1278
        %1296 = vmatprep.subr.bf16.mxu0 0
        %1297 = vmatpush1.bf16.msra.mxu0 %v1280
        %1298 = vmatprep.subr.bf16.mxu0 0
        %1299 = vmatpush1.bf16.msra.mxu0 %v1281
        %1300 = vmatprep.subr.bf16.mxu0 0
        %1301 = vmatpush1.bf16.msra.mxu0 %v1282
        %1302 = vmatprep.subr.bf16.mxu0 0
        %1303 = vmatpush1.bf16.msra.mxu0 %v1283
        %1304 = vmatprep.subr.bf16.mxu0 0
        %1305 = vmatpush1.bf16.msra.mxu0 %v1284
        %1306 = vmatprep.subr.bf16.mxu0 0
        %1307 = vmatpush1.bf16.msra.mxu0 %v1285
        %1308 = vmatprep.subr.bf16.mxu0 0
        %1309 = vmatpush1.bf16.msra.mxu0 %v1286
        %1310 = vmatprep.subr.bf16.mxu0 0
        %1311 = vmatpush1.bf16.msra.mxu0 %v1287
        %1312 = vmatprep.subr.bf16.mxu0 0
        %1313 = vmatpush1.bf16.msra.mxu0 0
        %1314 = vmatprep.subr.bf16.mxu0 0
        %1315 = vmatpush1.bf16.msra.mxu0 0
        %1316 = vmatprep.subr.bf16.mxu0 0
        %1317 = vmatpush1.bf16.msra.mxu0 0
        %1318 = vmatprep.subr.bf16.mxu0 0
        %1319 = vmatpush1.bf16.msra.mxu0 0
        %1320 = vmatprep.subr.bf16.mxu0 0
        %1321 = vmatpush1.bf16.msra.mxu0 0
        %1322 = vmatprep.subr.bf16.mxu0 0
        %1323 = vmatpush1.bf16.msra.mxu0 0
        %1324 = vmatprep.subr.bf16.mxu0 0
        %1325 = vmatpush1.bf16.msra.mxu0 0
        %1326 = vmatprep.subr.bf16.mxu0 0
        %1327 = vmatpush1.bf16.msra.mxu0 0
        %1328 = vmatprep.mubr.bf16.mxu0 0
        %1329 = vmatmul.mubr.bf16.gmra.mrb[0].mxu0 %v1224
        %v1330 = vpop.f32.mrb[0].mxu0
        %v1331 = vadd.f32 %v1247, %v1330
        %v1332 = vpop.f32.mrb[0].mxu0
        %v1333 = vpop.f32.mrb[0].mxu0
        %v1334 = vadd.f32 %v1247, %v1333
        %v1335 = vpop.f32.mrb[0].mxu0
        %1336 = vmatprep.mubr.bf16.mxu0 0
        %1337 = vmatmul.mubr.bf16.gmra.mrb[0].mxu0 %v1225
        %v1338 = vpop.f32.mrb[0].mxu0
        %v1339 = vadd.f32 %v1247, %v1338
        %v1340 = vpop.f32.mrb[0].mxu0
        %v1341 = vpop.f32.mrb[0].mxu0
        %v1342 = vpop.f32.mrb[0].mxu0
        %1343 = vdwg.mxu0
        %v1344 = vadd.f32 %v1211, %v720
        %v1345 = vadd.f32 %v1214, %v721
        %v1346 = vadd.f32 %v1219, %v722
        %v1347 = vadd.f32 %v1344, %v1331
        %v1348 = vadd.f32 %v1345, %v1334
        %v1349 = vadd.f32 %v1346, %v1339
        %1350 = vst [vmem:[%s217] sm:$0xff] %v1347
        %1351 = vst [vmem:[%s217 + $0x8] sm:$0xff] %v1348
        %1352 = vst [vmem:[%s217 + $0x10] sm:$0xff] %v1349
        %s1353 = sand.u32 %s97, 1
        %s1354 = scalar_lea.sflag [#allocation4], %s1353
        %s1355 = sand.u32 %s97, 1
        %s1356 = smul.addr %s1355, 24
        %s1357 = scalar_lea.vmem [#allocation8], %s1356
        // Predicated region
        $region45: #{tpu_custom_call.1} parent=31 // pred_check
          %p1358 = pneg %p107
        $region46: #{tpu_custom_call.1} parent=31 // pred_check_branch
          %1360 = sbr.rel (%p1358) target = $region48
        $region47: #{tpu_custom_call.1} parent=31 // pred_region
          %s1361 = smul.u32 3, %s21
          %s1363 = ssub.s32 384, 384
          %1364 = vsyncadd %s1354, %s1363
          %s1365 = smul.addr %s1361, 128
          %s1366 = scalar_lea.hbm %s3, %s1365
          %s1367 = sshll.u32 %s1357, 4
          %s1368 = int_to_ptr.vmem [resolvable:$true] %s1367
          %1373 = dma.vmem_to_hbm [thread:$0]  %s1368, 384, %s1366, %s1354, 128, 128, 8
        $region48: #{tpu_custom_call.1} parent=31 // pred_fallthru
          _
      $region32: #{tpu_custom_call.1} parent=5 // pred_fallthru
        _
      %p1374 = scmp.le.s32.totalorder 2, %s16
      // Predicated region
      $region49: #{tpu_custom_call.1} parent=5 // pred_check
        %p1375 = pneg %p1374
      $region50: #{tpu_custom_call.1} parent=5 // pred_check_branch
        %1377 = sbr.rel (%p1375) target = $region52
      $region51: #{tpu_custom_call.1} parent=5 // pred_region
        %s1378 = ssub.s32 %s16, 2
        // Predicated region
        $region53: #{tpu_custom_call.1} parent=51 // pred_check
          %p1379 = pneg %p113
        $region54: #{tpu_custom_call.1} parent=51 // pred_check_branch
          %1381 = sbr.rel (%p1379) target = $region56
        $region55: #{tpu_custom_call.1} parent=51 // pred_region
          %s1382 = sand.u32 %s98, 1
          %s1383 = scalar_lea.sflag [#allocation4], %s1382
          %s1384 = sand.u32 %s98, 1
          %s1385 = smul.addr %s1384, 24
          %s1386 = scalar_lea.vmem [#allocation8], %s1385
          %1387 = dma.done %s1383, 384
        $region56: #{tpu_custom_call.1} parent=51 // pred_fallthru
          _
      $region52: #{tpu_custom_call.1} parent=5 // pred_fallthru
        _
    $region6: #{tpu_custom_call.1} parent=1 // loop_footer
      %s20 = sadd.s32 1, %s16
    $region7: #{tpu_custom_call.1} parent=1 // loop_footer_branch
      %15 = sbr.rel target = $region3
    $region8: #{tpu_custom_call.1} parent=1 // loop_exit
      _
    %1388 = vsyncpa [#allocation3], 1
    %s1389 = scalar_lea.sflag [#allocation3], 1
    %1390 = vsyncpa %s1389, 1
    %1391 = vsyncpa [#allocation6], 1
    %1392 = vsyncpa [#allocation4], 1
    %s1393 = scalar_lea.sflag [#allocation4], 1
    %1394 = vsyncpa %s1393, 1

// kernel: tpu_custom_call.1
$region0: #{tpu_custom_call.1}
  #allocation0 [shape = 'u32[]', space=smem, size = 0x4, offset = 0x4, fixed_abs, tag = 'smem constant byte address 0x4 - core index']
  #allocation1 [shape = 'u32[144,128]{1,0:T(1,128)}', space=vmem, size = 0x12000, scoped, tag = 'internal scratch']
  %s0 = inlined_call_operand.hbm [shape: f32[48,128], index: 0, kind: input, shape index: {}]
  %s1 = inlined_call_operand.hbm [shape: bf16[7,128,128], index: 1, kind: input, shape index: {}]
  %s2 = inlined_call_operand.hbm [shape: f32[17,128], index: 2, kind: input, shape index: {}]
  %s3 = inlined_call_operand.hbm [shape: f32[48,128], index: 3, kind: output, shape index: {}]
  %s4 = sld [smem:[#allocation0]]
  $region57: #{tpu_custom_call.1} parent=0
    _
  %s6 = ssub.s32 1, %s4
  %s7 = scalar_select 0, %s6, %s4
  $region1: #{tpu_custom_call.1} parent=0
    #allocation2 [shape = 'u8[24576]{0}', space=vmem, size = 0x6000, scoped, tag = 'input window, operand 0']
    #allocation3 [shape = 's32[2]{0}', space=sflag, size = 0x8, scoped, tag = 'scoped memory for tpu_custom_call.1']
    #allocation4 [shape = 's32[2]{0}', space=sflag, size = 0x8, scoped, tag = 'scoped memory for tpu_custom_call.1']
    #allocation5 [shape = 'u8[229376]{0}', space=vmem, size = 0x38000, scoped, tag = 'input window, operand 1, single buffered']
    #allocation6 [shape = 's32[1]{0}', space=sflag, size = 0x4, scoped, tag = 'scoped memory for tpu_custom_call.1']
    #allocation7 [shape = 'u8[12288]{0}', space=vmem, size = 0x3000, scoped, tag = 'input window, operand 2, single buffered']
    #allocation8 [shape = 'u8[24576]{0}', space=vmem, size = 0x6000, scoped, tag = 'output window, operand 0']
    %8 = vsyncpa [#allocation3], 0
    %s9 = scalar_lea.sflag [#allocation3], 1
    %10 = vsyncpa %s9, 0
    %11 = vsyncpa [#allocation6], 0
    %12 = vsyncpa [#allocation4], 0
    %s13 = scalar_lea.sflag [#allocation4], 1
    %14 = vsyncpa %s13, 0
    loop: start=0, step=1, limit=4
    $region2: #{tpu_custom_call.1} parent=1 // loop_pre_header
      _
    $region3: #{tpu_custom_call.1} parent=1 // loop_header
      %s16 = sphi 0, %s20
      %p17 = scmp.ge.s32.totalorder %s16, 4
      %s26 = sphi 0, %s28
      %s29 = sphi 0, %s26
      %s30 = sphi 0, %s29
      %s46 = sphi 0, %s30
      %s50 = sphi 0, %s50
      %s52 = sphi 0, %s50
      %s53 = sphi 0, %s52
      %s67 = sphi 0, %s53
      %s71 = sphi 0, %s71
      %s73 = sphi 0, %s71
      %s74 = sphi 0, %s73
      %s88 = sphi 0, %s74
      %s94 = sphi 0, %s96
      %s97 = sphi 0, %s94
      %s98 = sphi 0, %s97
      %s114 = sphi 0, %s98
    $region4: #{tpu_custom_call.1} parent=1 // loop_header_branch
      %19 = sbr.rel (%p17) target = $region8
    $region5: #{tpu_custom_call.1} parent=1 // loop_body
      %s21 = ssub.s32 %s16, 1
      %s22 = ssub.s32 %s16, 2
      %s23 = sadd.s32 %s16, 1
      %s24 = ssub.s32 %s16, %s23
      %p25 = scmp.eq.s32.totalorder %s24, 0
      %s27 = sadd.s32 %s26, 1
      %s28 = scalar_select %p25, %s26, %s27
      %p31 = pneg %p25
      %p32 = scmp.eq.s32.totalorder %s16, 1
      %p33 = por %p31, %p32
      %p34 = scmp.ne.s32.totalorder %s26, %s29
      %p35 = scmp.eq.s32.totalorder %s16, 0
      %p36 = por %p34, %p35
      %p37 = scmp.ne.s32.totalorder %s26, %s29
      %p38 = scmp.eq.s32.totalorder %s21, 1
      %p39 = por %p37, %p38
      %p40 = scmp.ne.s32.totalorder %s29, %s30
      %p41 = scmp.eq.s32.totalorder %s21, 0
      %p42 = por %p40, %p41
      %p43 = scmp.ne.s32.totalorder %s29, %s30
      %p44 = scmp.eq.s32.totalorder %s22, 1
      %p45 = por %p43, %p44
      %p47 = scmp.ne.s32.totalorder %s30, %s46
      %p48 = scmp.eq.s32.totalorder %s22, 0
      %p49 = por %p47, %p48
      %s51 = sadd.s32 %s50, 1
      %p54 = scmp.eq.s32.totalorder %s16, 1
      %p55 = scmp.ne.s32.totalorder %s50, %s52
      %p56 = scmp.eq.s32.totalorder %s16, 0
      %p57 = por %p55, %p56
      %p58 = scmp.ne.s32.totalorder %s50, %s52
      %p59 = scmp.eq.s32.totalorder %s21, 1
      %p60 = por %p58, %p59
      %p61 = scmp.ne.s32.totalorder %s52, %s53
      %p62 = scmp.eq.s32.totalorder %s21, 0
      %p63 = por %p61, %p62
      %p64 = scmp.ne.s32.totalorder %s52, %s53
      %p65 = scmp.eq.s32.totalorder %s22, 1
      %p66 = por %p64, %p65
      %p68 = scmp.ne.s32.totalorder %s53, %s67
      %p69 = scmp.eq.s32.totalorder %s22, 0
      %p70 = por %p68, %p69
      %s72 = sadd.s32 %s71, 1
      %p75 = scmp.eq.s32.totalorder %s16, 1
      %p76 = scmp.ne.s32.totalorder %s71, %s73
      %p77 = scmp.eq.s32.totalorder %s16, 0
      %p78 = por %p76, %p77
      %p79 = scmp.ne.s32.totalorder %s71, %s73
      %p80 = scmp.eq.s32.totalorder %s21, 1
      %p81 = por %p79, %p80
      %p82 = scmp.ne.s32.totalorder %s73, %s74
      %p83 = scmp.eq.s32.totalorder %s21, 0
      %p84 = por %p82, %p83
      %p85 = scmp.ne.s32.totalorder %s73, %s74
      %p86 = scmp.eq.s32.totalorder %s22, 1
      %p87 = por %p85, %p86
      %p89 = scmp.ne.s32.totalorder %s74, %s88
      %p90 = scmp.eq.s32.totalorder %s22, 0
      %p91 = por %p89, %p90
      %s92 = ssub.s32 %s16, %s23
      %p93 = scmp.eq.s32.totalorder %s92, 0
      %s95 = sadd.s32 %s94, 1
      %s96 = scalar_select %p93, %s94, %s95
      %p99 = pneg %p93
      %p100 = scmp.eq.s32.totalorder %s16, 1
      %p101 = por %p99, %p100
      %p102 = scmp.ne.s32.totalorder %s94, %s97
      %p103 = scmp.eq.s32.totalorder %s16, 0
      %p104 = por %p102, %p103
      %p105 = scmp.ne.s32.totalorder %s94, %s97
      %p106 = scmp.eq.s32.totalorder %s21, 1
      %p107 = por %p105, %p106
      %p108 = scmp.ne.s32.totalorder %s97, %s98
      %p109 = scmp.eq.s32.totalorder %s21, 0
      %p110 = por %p108, %p109
      %p111 = scmp.ne.s32.totalorder %s97, %s98
      %p112 = scmp.eq.s32.totalorder %s22, 1
      %p113 = por %p111, %p112
      %p115 = scmp.ne.s32.totalorder %s98, %s114
      %p116 = scmp.eq.s32.totalorder %s22, 0
      %p117 = por %p115, %p116
      %p118 = scmp.le.s32.totalorder 1, %s16
      %p119 = scmp.lt.s32.totalorder %s16, 3
      %p120 = pnand %p118, %p119
      %p121 = pneg %p120
      // Predicated region
      $region9: #{tpu_custom_call.1} parent=5 // pred_check
        _
      $region10: #{tpu_custom_call.1} parent=5 // pred_check_branch
        %123 = sbr.rel (%p120) target = $region12
      $region11: #{tpu_custom_call.1} parent=5 // pred_region
        %s124 = ssub.s32 %s16, 1
        // Predicated region
        $region13: #{tpu_custom_call.1} parent=11 // pred_check
          %p125 = pneg %p63
        $region14: #{tpu_custom_call.1} parent=11 // pred_check_branch
          %127 = sbr.rel (%p125) target = $region16
        $region15: #{tpu_custom_call.1} parent=11 // pred_region
          %s129 = ssub.s32 7168, 7168
          %130 = vsyncadd [#allocation6], %s129
          %s131 = sshll.u32 [#allocation5], 4
          %s132 = int_to_ptr.vmem [resolvable:$true] %s131
          %137 = dma.hbm_to_vmem [thread:$0]  %s1, 7168, %s132, [#allocation6], 64, 64, 4
        $region16: #{tpu_custom_call.1} parent=11 // pred_fallthru
          _
        // Predicated region
        $region17: #{tpu_custom_call.1} parent=11 // pred_check
          %p138 = pneg %p84
        $region18: #{tpu_custom_call.1} parent=11 // pred_check_branch
          %140 = sbr.rel (%p138) target = $region20
        $region19: #{tpu_custom_call.1} parent=11 // pred_region
          %s142 = ssub.s32 384, 384
          %143 = vsyncadd [#allocation6], %s142
          %s144 = sshll.u32 [#allocation7], 4
          %s145 = int_to_ptr.vmem [resolvable:$true] %s144
          %150 = dma.hbm_to_vmem [thread:$0]  %s2, 384, %s145, [#allocation6], 128, 128, 8
        $region20: #{tpu_custom_call.1} parent=11 // pred_fallthru
          _
      $region12: #{tpu_custom_call.1} parent=5 // pred_fallthru
        _
      %p151 = scmp.lt.s32.totalorder %s16, 2
      // Predicated region
      $region21: #{tpu_custom_call.1} parent=5 // pred_check
        %p152 = pneg %p151
      $region22: #{tpu_custom_call.1} parent=5 // pred_check_branch
        %154 = sbr.rel (%p152) target = $region24
      $region23: #{tpu_custom_call.1} parent=5 // pred_region
        // Predicated region
        $region25: #{tpu_custom_call.1} parent=23 // pred_check
          %p155 = pneg %p36
        $region26: #{tpu_custom_call.1} parent=23 // pred_check_branch
          %157 = sbr.rel (%p155) target = $region28
        $region27: #{tpu_custom_call.1} parent=23 // pred_region
          %s158 = sand.u32 %s26, 1
          %s159 = scalar_lea.sflag [#allocation3], %s158
          %s160 = sand.u32 %s26, 1
          %s161 = smul.addr %s160, 24
          %s162 = scalar_lea.vmem [#allocation2], %s161
          %s163 = smul.u32 3, %s16
          %s165 = ssub.s32 384, 384
          %166 = vsyncadd %s159, %s165
          %s167 = smul.addr %s163, 128
          %s168 = scalar_lea.hbm %s0, %s167
          %s169 = sshll.u32 %s162, 4
          %s170 = int_to_ptr.vmem [resolvable:$true] %s169
          %175 = dma.hbm_to_vmem [thread:$0]  %s168, 384, %s170, %s159, 128, 128, 8
        $region28: #{tpu_custom_call.1} parent=23 // pred_fallthru
          _
      $region24: #{tpu_custom_call.1} parent=5 // pred_fallthru
        _
      %p176 = scmp.le.s32.totalorder 1, %s16
      %p177 = scmp.lt.s32.totalorder %s16, 3
      %p178 = pnand %p176, %p177
      %p179 = pneg %p178
      // Predicated region
      $region29: #{tpu_custom_call.1} parent=5 // pred_check
        _
      $region30: #{tpu_custom_call.1} parent=5 // pred_check_branch
        %181 = sbr.rel (%p178) target = $region32
      $region31: #{tpu_custom_call.1} parent=5 // pred_region
        %s182 = ssub.s32 %s16, 1
        %s183 = sand.u32 %s29, 1
        %s184 = scalar_lea.sflag [#allocation3], %s183
        %s185 = sand.u32 %s29, 1
        %s186 = smul.addr %s185, 24
        %s187 = scalar_lea.vmem [#allocation2], %s186
        // Predicated region
        $region33: #{tpu_custom_call.1} parent=31 // pred_check
          %p188 = pneg %p42
        $region34: #{tpu_custom_call.1} parent=31 // pred_check_branch
          %190 = sbr.rel (%p188) target = $region36
        $region35: #{tpu_custom_call.1} parent=31 // pred_region
          %191 = dma.done %s184, 384
        $region36: #{tpu_custom_call.1} parent=31 // pred_fallthru
          _
        // Predicated region
        $region37: #{tpu_custom_call.1} parent=31 // pred_check
          %p192 = pneg %p63
        $region38: #{tpu_custom_call.1} parent=31 // pred_check_branch
          %194 = sbr.rel (%p192) target = $region40
        $region39: #{tpu_custom_call.1} parent=31 // pred_region
          %195 = dma.done [#allocation6], 7168
        $region40: #{tpu_custom_call.1} parent=31 // pred_fallthru
          _
        // Predicated region
        $region41: #{tpu_custom_call.1} parent=31 // pred_check
          %p196 = pneg %p84
        $region42: #{tpu_custom_call.1} parent=31 // pred_check_branch
          %198 = sbr.rel (%p196) target = $region44
        $region43: #{tpu_custom_call.1} parent=31 // pred_region
          %199 = dma.done [#allocation6], 384
        $region44: #{tpu_custom_call.1} parent=31 // pred_fallthru
          _
        %s200 = sand.u32 %s29, 1
        %s201 = scalar_lea.sflag [#allocation3], %s200
        %s202 = sand.u32 %s29, 1
        %s203 = smul.addr %s202, 24
        %s204 = scalar_lea.vmem [#allocation2], %s203
        %p205 = pneg %p42
        %p206 = pneg %p39
        %p207 = pneg %p63
        %p208 = pneg %p60
        %p209 = pneg %p84
        %p210 = pneg %p81
        %p211 = pneg %p110
        %p212 = pneg %p107
        %s213 = sand.u32 %s97, 1
        %s214 = scalar_lea.sflag [#allocation4], %s213
        %s215 = sand.u32 %s97, 1
        %s216 = smul.addr %s215, 24
        %s217 = scalar_lea.vmem [#allocation8], %s216
        %s218 = smul.u32 3, %s21
        %s219 = smul.u32 3, %s21
        %v221 = vld [vmem:[%s187] sm:$0xff]
        %v222 = vld [vmem:[%s187 + $0x8] sm:$0xff]
        %v223 = vld [vmem:[%s187 + $0x10] sm:$0xff]
        %v224 = vpack.c.bf16 %v222, %v221
        %v225 = vpack.c.bf16 %v223, %v223
        %v226 = vld [vmem:[#allocation5] sm:$0xf]
        %v227 = vld [vmem:[#allocation5 + $0x4] sm:$0xf]
        %v228 = vld [vmem:[#allocation5 + $0x8] sm:$0xf]
        %v229 = vld [vmem:[#allocation5 + $0xc] sm:$0xf]
        %v230 = vld [vmem:[#allocation5 + $0x10] sm:$0xf]
        %v231 = vld [vmem:[#allocation5 + $0x14] sm:$0xf]
        %v232 = vld [vmem:[#allocation5 + $0x18] sm:$0xf]
        %v233 = vld [vmem:[#allocation5 + $0x1c] sm:$0xf]
        %v234 = vld [vmem:[#allocation5 + $0x20] sm:$0xf]
        %v235 = vld [vmem:[#allocation5 + $0x24] sm:$0xf]
        %v236 = vld [vmem:[#allocation5 + $0x28] sm:$0xf]
        %v237 = vld [vmem:[#allocation5 + $0x2c] sm:$0xf]
        %v238 = vld [vmem:[#allocation5 + $0x30] sm:$0xf]
        %v239 = vld [vmem:[#allocation5 + $0x34] sm:$0xf]
        %v240 = vld [vmem:[#allocation5 + $0x38] sm:$0xf]
        %v241 = vld [vmem:[#allocation5 + $0x3c] sm:$0xf]
        %v242 = vld [vmem:[#allocation7] sm:$0x1]
        %v243 = vlaneseq
        %v244 = vshrl.u32 %v243, 7
        %v245 = vsub.s32 0, %v244
        %v246 = vrot.slane %v242, %v245
        %v263 = vunpack.c.l.b16 %v226
        %v264 = vunpack.c.l.b16 %v227
        %v265 = vunpack.c.l.b16 %v228
        %v266 = vunpack.c.l.b16 %v229
        %v267 = vunpack.c.l.b16 %v230
        %v268 = vunpack.c.l.b16 %v231
        %v269 = vunpack.c.l.b16 %v232
        %v270 = vunpack.c.l.b16 %v233
        %v271 = vunpack.c.l.b16 %v234
        %v272 = vunpack.c.l.b16 %v235
        %v273 = vunpack.c.l.b16 %v236
        %v274 = vunpack.c.l.b16 %v237
        %v275 = vunpack.c.l.b16 %v238
        %v276 = vunpack.c.l.b16 %v239
        %v277 = vunpack.c.l.b16 %v240
        %v278 = vunpack.c.l.b16 %v241
        %v279 = vpack.c.b16 %v264, %v263
        %v280 = vpack.c.b16 %v266, %v265
        %v281 = vpack.c.b16 %v268, %v267
        %v282 = vpack.c.b16 %v270, %v269
        %v283 = vpack.c.b16 %v272, %v271
        %v284 = vpack.c.b16 %v274, %v273
        %v285 = vpack.c.b16 %v276, %v275
        %v286 = vpack.c.b16 %v278, %v277
        %295 = vmatprep.subr.bf16.mxu0 0
        %296 = vmatpush1.bf16.msra.mxu0 %v279
        %297 = vmatprep.subr.bf16.mxu0 0
        %298 = vmatpush1.bf16.msra.mxu0 %v280
        %299 = vmatprep.subr.bf16.mxu0 0
        %300 = vmatpush1.bf16.msra.mxu0 %v281
        %301 = vmatprep.subr.bf16.mxu0 0
        %302 = vmatpush1.bf16.msra.mxu0 %v282
        %303 = vmatprep.subr.bf16.mxu0 0
        %304 = vmatpush1.bf16.msra.mxu0 %v283
        %305 = vmatprep.subr.bf16.mxu0 0
        %306 = vmatpush1.bf16.msra.mxu0 %v284
        %307 = vmatprep.subr.bf16.mxu0 0
        %308 = vmatpush1.bf16.msra.mxu0 %v285
        %309 = vmatprep.subr.bf16.mxu0 0
        %310 = vmatpush1.bf16.msra.mxu0 %v286
        %311 = vmatprep.subr.bf16.mxu0 0
        %312 = vmatpush1.bf16.msra.mxu0 0
        %313 = vmatprep.subr.bf16.mxu0 0
        %314 = vmatpush1.bf16.msra.mxu0 0
        %315 = vmatprep.subr.bf16.mxu0 0
        %316 = vmatpush1.bf16.msra.mxu0 0
        %317 = vmatprep.subr.bf16.mxu0 0
        %318 = vmatpush1.bf16.msra.mxu0 0
        %319 = vmatprep.subr.bf16.mxu0 0
        %320 = vmatpush1.bf16.msra.mxu0 0
        %321 = vmatprep.subr.bf16.mxu0 0
        %322 = vmatpush1.bf16.msra.mxu0 0
        %323 = vmatprep.subr.bf16.mxu0 0
        %324 = vmatpush1.bf16.msra.mxu0 0
        %325 = vmatprep.subr.bf16.mxu0 0
        %326 = vmatpush1.bf16.msra.mxu0 0
        %327 = vmatprep.mubr.bf16.mxu0 0
        %328 = vmatmul.mubr.bf16.gmra.mrb[0].mxu0 %v224
        %v329 = vpop.f32.mrb[0].mxu0
        %v330 = vadd.f32 %v246, %v329
        %v331 = vpop.f32.mrb[0].mxu0
        %v332 = vpop.f32.mrb[0].mxu0
        %v333 = vadd.f32 %v246, %v332
        %v334 = vpop.f32.mrb[0].mxu0
        %335 = vmatprep.mubr.bf16.mxu0 0
        %336 = vmatmul.mubr.bf16.gmra.mrb[0].mxu0 %v225
        %v337 = vpop.f32.mrb[0].mxu0
        %v338 = vadd.f32 %v246, %v337
        %v339 = vpop.f32.mrb[0].mxu0
        %v340 = vpop.f32.mrb[0].mxu0
        %v341 = vpop.f32.mrb[0].mxu0
        %342 = vdwg.mxu0
        %343 = vadd.xlane.f32.xlu0 %v330
        %v344 = vpop.xlane.xlu0 %343
        %345 = vadd.xlane.f32.xlu0 %v333
        %v346 = vpop.xlane.xlu0 %345
        %347 = vadd.xlane.f32.xlu0 %v338
        %v348 = vpop.xlane.xlu0 %347
        %v349 = vmul.f32 %v344, 0.0078125
        %v350 = vmul.f32 %v346, 0.0078125
        %v351 = vmul.f32 %v348, 0.0078125
        %v352 = vmul.f32 %v330, %v330
        %v353 = vmul.f32 %v333, %v333
        %v354 = vmul.f32 %v338, %v338
        %355 = vadd.xlane.f32.xlu0 %v352
        %v356 = vpop.xlane.xlu0 %355
        %357 = vadd.xlane.f32.xlu0 %v353
        %v358 = vpop.xlane.xlu0 %357
        %359 = vadd.xlane.f32.xlu0 %v354
        %v360 = vpop.xlane.xlu0 %359
        %v361 = vmul.f32 %v356, 0.0078125
        %v362 = vmul.f32 %v358, 0.0078125
        %v363 = vmul.f32 %v360, 0.0078125
        %v364 = vmul.f32 %v349, %v349
        %v365 = vmul.f32 %v350, %v350
        %v366 = vmul.f32 %v351, %v351
        %v367 = vsub.f32 %v361, %v364
        %v368 = vsub.f32 %v362, %v365
        %v369 = vsub.f32 %v363, %v366
        %v370 = vmax.f32 %v367, 0.0
        %v371 = vmax.f32 %v368, 0.0
        %v372 = vmax.f32 %v369, 0.0
        %v373 = vsub.f32 %v330, %v349
        %v374 = vsub.f32 %v333, %v350
        %v375 = vsub.f32 %v338, %v351
        %v376 = vadd.f32 %v370, 1e-05
        %v377 = vadd.f32 %v371, 1e-05
        %v378 = vadd.f32 %v372, 1e-05
        %v379 = vrsqrt.pop %v376
        %v380 = vrsqrt.pop %v377
        %v381 = vrsqrt.pop %v378
        %v382 = vmul.f32 %v373, %v379
        %v383 = vmul.f32 %v374, %v380
        %v384 = vmul.f32 %v375, %v381
        %v385 = vld [vmem:[#allocation7 + $0x1] sm:$0x1]
        %v386 = vlaneseq
        %v387 = vshrl.u32 %v386, 7
        %v388 = vsub.s32 0, %v387
        %v389 = vrot.slane %v385, %v388
        %v390 = vmul.f32 %v382, %v389
        %v391 = vmul.f32 %v383, %v389
        %v392 = vmul.f32 %v384, %v389
        %v393 = vld [vmem:[#allocation7 + $0x2] sm:$0x1]
        %v394 = vlaneseq
        %v395 = vshrl.u32 %v394, 7
        %v396 = vsub.s32 0, %v395
        %v397 = vrot.slane %v393, %v396
        %v398 = vadd.f32 %v390, %v397
        %v399 = vadd.f32 %v391, %v397
        %v400 = vadd.f32 %v392, %v397
        %v401 = vmax.f32 %v398, 0.0
        %v402 = vmax.f32 %v399, 0.0
        %v403 = vmax.f32 %v400, 0.0
        %v404 = vpack.c.bf16 %v402, %v401
        %v405 = vpack.c.bf16 %v403, %v403
        %s406 = scalar_lea.vmem [#allocation5], 64
        %v407 = vld [vmem:[%s406] sm:$0xf]
        %v408 = vld [vmem:[%s406 + $0x4] sm:$0xf]
        %v409 = vld [vmem:[%s406 + $0x8] sm:$0xf]
        %v410 = vld [vmem:[%s406 + $0xc] sm:$0xf]
        %v411 = vld [vmem:[%s406 + $0x10] sm:$0xf]
        %v412 = vld [vmem:[%s406 + $0x14] sm:$0xf]
        %v413 = vld [vmem:[%s406 + $0x18] sm:$0xf]
        %v414 = vld [vmem:[%s406 + $0x1c] sm:$0xf]
        %v415 = vld [vmem:[%s406 + $0x20] sm:$0xf]
        %v416 = vld [vmem:[%s406 + $0x24] sm:$0xf]
        %v417 = vld [vmem:[%s406 + $0x28] sm:$0xf]
        %v418 = vld [vmem:[%s406 + $0x2c] sm:$0xf]
        %v419 = vld [vmem:[%s406 + $0x30] sm:$0xf]
        %v420 = vld [vmem:[%s406 + $0x34] sm:$0xf]
        %v421 = vld [vmem:[%s406 + $0x38] sm:$0xf]
        %v422 = vld [vmem:[%s406 + $0x3c] sm:$0xf]
        %v423 = vld [vmem:[#allocation7 + $0x3] sm:$0x1]
        %v424 = vlaneseq
        %v425 = vshrl.u32 %v424, 7
        %v426 = vsub.s32 0, %v425
        %v427 = vrot.slane %v423, %v426
        %v444 = vunpack.c.l.b16 %v407
        %v445 = vunpack.c.l.b16 %v408
        %v446 = vunpack.c.l.b16 %v409
        %v447 = vunpack.c.l.b16 %v410
        %v448 = vunpack.c.l.b16 %v411
        %v449 = vunpack.c.l.b16 %v412
        %v450 = vunpack.c.l.b16 %v413
        %v451 = vunpack.c.l.b16 %v414
        %v452 = vunpack.c.l.b16 %v415
        %v453 = vunpack.c.l.b16 %v416
        %v454 = vunpack.c.l.b16 %v417
        %v455 = vunpack.c.l.b16 %v418
        %v456 = vunpack.c.l.b16 %v419
        %v457 = vunpack.c.l.b16 %v420
        %v458 = vunpack.c.l.b16 %v421
        %v459 = vunpack.c.l.b16 %v422
        %v460 = vpack.c.b16 %v445, %v444
        %v461 = vpack.c.b16 %v447, %v446
        %v462 = vpack.c.b16 %v449, %v448
        %v463 = vpack.c.b16 %v451, %v450
        %v464 = vpack.c.b16 %v453, %v452
        %v465 = vpack.c.b16 %v455, %v454
        %v466 = vpack.c.b16 %v457, %v456
        %v467 = vpack.c.b16 %v459, %v458
        %476 = vmatprep.subr.bf16.mxu0 0
        %477 = vmatpush1.bf16.msra.mxu0 %v460
        %478 = vmatprep.subr.bf16.mxu0 0
        %479 = vmatpush1.bf16.msra.mxu0 %v461
        %480 = vmatprep.subr.bf16.mxu0 0
        %481 = vmatpush1.bf16.msra.mxu0 %v462
        %482 = vmatprep.subr.bf16.mxu0 0
        %483 = vmatpush1.bf16.msra.mxu0 %v463
        %484 = vmatprep.subr.bf16.mxu0 0
        %485 = vmatpush1.bf16.msra.mxu0 %v464
        %486 = vmatprep.subr.bf16.mxu0 0
        %487 = vmatpush1.bf16.msra.mxu0 %v465
        %488 = vmatprep.subr.bf16.mxu0 0
        %489 = vmatpush1.bf16.msra.mxu0 %v466
        %490 = vmatprep.subr.bf16.mxu0 0
        %491 = vmatpush1.bf16.msra.mxu0 %v467
        %492 = vmatprep.subr.bf16.mxu0 0
        %493 = vmatpush1.bf16.msra.mxu0 0
        %494 = vmatprep.subr.bf16.mxu0 0
        %495 = vmatpush1.bf16.msra.mxu0 0
        %496 = vmatprep.subr.bf16.mxu0 0
        %497 = vmatpush1.bf16.msra.mxu0 0
        %498 = vmatprep.subr.bf16.mxu0 0
        %499 = vmatpush1.bf16.msra.mxu0 0
        %500 = vmatprep.subr.bf16.mxu0 0
        %501 = vmatpush1.bf16.msra.mxu0 0
        %502 = vmatprep.subr.bf16.mxu0 0
        %503 = vmatpush1.bf16.msra.mxu0 0
        %504 = vmatprep.subr.bf16.mxu0 0
        %505 = vmatpush1.bf16.msra.mxu0 0
        %506 = vmatprep.subr.bf16.mxu0 0
        %507 = vmatpush1.bf16.msra.mxu0 0
        %508 = vmatprep.mubr.bf16.mxu0 0
        %509 = vmatmul.mubr.bf16.gmra.mrb[0].mxu0 %v404
        %v510 = vpop.f32.mrb[0].mxu0
        %v511 = vadd.f32 %v427, %v510
        %v512 = vpop.f32.mrb[0].mxu0
        %v513 = vpop.f32.mrb[0].mxu0
        %v514 = vadd.f32 %v427, %v513
        %v515 = vpop.f32.mrb[0].mxu0
        %516 = vmatprep.mubr.bf16.mxu0 0
        %517 = vmatmul.mubr.bf16.gmra.mrb[0].mxu0 %v405
        %v518 = vpop.f32.mrb[0].mxu0
        %v519 = vadd.f32 %v427, %v518
        %v520 = vpop.f32.mrb[0].mxu0
        %v521 = vpop.f32.mrb[0].mxu0
        %v522 = vpop.f32.mrb[0].mxu0
        %523 = vdwg.mxu0
        %524 = vadd.xlane.f32.xlu0 %v511
        %v525 = vpop.xlane.xlu0 %524
        %526 = vadd.xlane.f32.xlu0 %v514
        %v527 = vpop.xlane.xlu0 %526
        %528 = vadd.xlane.f32.xlu0 %v519
        %v529 = vpop.xlane.xlu0 %528
        %v530 = vmul.f32 %v525, 0.015625
        %v531 = vmul.f32 %v527, 0.015625
        %v532 = vmul.f32 %v529, 0.015625
        %v533 = vmul.f32 %v511, %v511
        %v534 = vmul.f32 %v514, %v514
        %v535 = vmul.f32 %v519, %v519
        %536 = vadd.xlane.f32.xlu0 %v533
        %v537 = vpop.xlane.xlu0 %536
        %538 = vadd.xlane.f32.xlu0 %v534
        %v539 = vpop.xlane.xlu0 %538
        %540 = vadd.xlane.f32.xlu0 %v535
        %v541 = vpop.xlane.xlu0 %540
        %v542 = vmul.f32 %v537, 0.015625
        %v543 = vmul.f32 %v539, 0.015625
        %v544 = vmul.f32 %v541, 0.015625
        %v545 = vmul.f32 %v530, %v530
        %v546 = vmul.f32 %v531, %v531
        %v547 = vmul.f32 %v532, %v532
        %v548 = vsub.f32 %v542, %v545
        %v549 = vsub.f32 %v543, %v546
        %v550 = vsub.f32 %v544, %v547
        %v551 = vmax.f32 %v548, 0.0
        %v552 = vmax.f32 %v549, 0.0
        %v553 = vmax.f32 %v550, 0.0
        %v554 = vsub.f32 %v511, %v530
        %v555 = vsub.f32 %v514, %v531
        %v556 = vsub.f32 %v519, %v532
        %v557 = vadd.f32 %v551, 1e-05
        %v558 = vadd.f32 %v552, 1e-05
        %v559 = vadd.f32 %v553, 1e-05
        %v560 = vrsqrt.pop %v557
        %v561 = vrsqrt.pop %v558
        %v562 = vrsqrt.pop %v559
        %v563 = vmul.f32 %v554, %v560
        %v564 = vmul.f32 %v555, %v561
        %v565 = vmul.f32 %v556, %v562
        %v566 = vld [vmem:[#allocation7 + $0x4] sm:$0x1]
        %v567 = vlaneseq
        %v568 = vshrl.u32 %v567, 7
        %v569 = vsub.s32 0, %v568
        %v570 = vrot.slane %v566, %v569
        %v571 = vmul.f32 %v563, %v570
        %v572 = vmul.f32 %v564, %v570
        %v573 = vmul.f32 %v565, %v570
        %v574 = vld [vmem:[#allocation7 + $0x5] sm:$0x1]
        %v575 = vlaneseq
        %v576 = vshrl.u32 %v575, 7
        %v577 = vsub.s32 0, %v576
        %v578 = vrot.slane %v574, %v577
        %v579 = vadd.f32 %v571, %v578
        %v580 = vadd.f32 %v572, %v578
        %v581 = vadd.f32 %v573, %v578
        %v582 = vmax.f32 %v579, 0.0
        %v583 = vmax.f32 %v580, 0.0
        %v584 = vmax.f32 %v581, 0.0
        %v585 = vpack.c.bf16 %v583, %v582
        %v586 = vpack.c.bf16 %v584, %v584
        %s587 = scalar_lea.vmem [#allocation5], 128
        %v588 = vld [vmem:[%s587] sm:$0xf]
        %v589 = vld [vmem:[%s587 + $0x4] sm:$0xf]
        %v590 = vld [vmem:[%s587 + $0x8] sm:$0xf]
        %v591 = vld [vmem:[%s587 + $0xc] sm:$0xf]
        %v592 = vld [vmem:[%s587 + $0x10] sm:$0xf]
        %v593 = vld [vmem:[%s587 + $0x14] sm:$0xf]
        %v594 = vld [vmem:[%s587 + $0x18] sm:$0xf]
        %v595 = vld [vmem:[%s587 + $0x1c] sm:$0xf]
        %v596 = vld [vmem:[%s587 + $0x20] sm:$0xf]
        %v597 = vld [vmem:[%s587 + $0x24] sm:$0xf]
        %v598 = vld [vmem:[%s587 + $0x28] sm:$0xf]
        %v599 = vld [vmem:[%s587 + $0x2c] sm:$0xf]
        %v600 = vld [vmem:[%s587 + $0x30] sm:$0xf]
        %v601 = vld [vmem:[%s587 + $0x34] sm:$0xf]
        %v602 = vld [vmem:[%s587 + $0x38] sm:$0xf]
        %v603 = vld [vmem:[%s587 + $0x3c] sm:$0xf]
        %v604 = vld [vmem:[#allocation7 + $0x6] sm:$0x1]
        %v605 = vlaneseq
        %v606 = vshrl.u32 %v605, 7
        %v607 = vsub.s32 0, %v606
        %v608 = vrot.slane %v604, %v607
        %v625 = vunpack.c.l.b16 %v588
        %v626 = vunpack.c.l.b16 %v589
        %v627 = vunpack.c.l.b16 %v590
        %v628 = vunpack.c.l.b16 %v591
        %v629 = vunpack.c.l.b16 %v592
        %v630 = vunpack.c.l.b16 %v593
        %v631 = vunpack.c.l.b16 %v594
        %v632 = vunpack.c.l.b16 %v595
        %v633 = vunpack.c.l.b16 %v596
        %v634 = vunpack.c.l.b16 %v597
        %v635 = vunpack.c.l.b16 %v598
        %v636 = vunpack.c.l.b16 %v599
        %v637 = vunpack.c.l.b16 %v600
        %v638 = vunpack.c.l.b16 %v601
        %v639 = vunpack.c.l.b16 %v602
        %v640 = vunpack.c.l.b16 %v603
        %v641 = vpack.c.b16 %v626, %v625
        %v642 = vpack.c.b16 %v628, %v627
        %v643 = vpack.c.b16 %v630, %v629
        %v644 = vpack.c.b16 %v632, %v631
        %v645 = vpack.c.b16 %v634, %v633
        %v646 = vpack.c.b16 %v636, %v635
        %v647 = vpack.c.b16 %v638, %v637
        %v648 = vpack.c.b16 %v640, %v639
        %657 = vmatprep.subr.bf16.mxu0 0
        %658 = vmatpush1.bf16.msra.mxu0 %v641
        %659 = vmatprep.subr.bf16.mxu0 0
        %660 = vmatpush1.bf16.msra.mxu0 %v642
        %661 = vmatprep.subr.bf16.mxu0 0
        %662 = vmatpush1.bf16.msra.mxu0 %v643
        %663 = vmatprep.subr.bf16.mxu0 0
        %664 = vmatpush1.bf16.msra.mxu0 %v644
        %665 = vmatprep.subr.bf16.mxu0 0
        %666 = vmatpush1.bf16.msra.mxu0 %v645
        %667 = vmatprep.subr.bf16.mxu0 0
        %668 = vmatpush1.bf16.msra.mxu0 %v646
        %669 = vmatprep.subr.bf16.mxu0 0
        %670 = vmatpush1.bf16.msra.mxu0 %v647
        %671 = vmatprep.subr.bf16.mxu0 0
        %672 = vmatpush1.bf16.msra.mxu0 %v648
        %673 = vmatprep.subr.bf16.mxu0 0
        %674 = vmatpush1.bf16.msra.mxu0 0
        %675 = vmatprep.subr.bf16.mxu0 0
        %676 = vmatpush1.bf16.msra.mxu0 0
        %677 = vmatprep.subr.bf16.mxu0 0
        %678 = vmatpush1.bf16.msra.mxu0 0
        %679 = vmatprep.subr.bf16.mxu0 0
        %680 = vmatpush1.bf16.msra.mxu0 0
        %681 = vmatprep.subr.bf16.mxu0 0
        %682 = vmatpush1.bf16.msra.mxu0 0
        %683 = vmatprep.subr.bf16.mxu0 0
        %684 = vmatpush1.bf16.msra.mxu0 0
        %685 = vmatprep.subr.bf16.mxu0 0
        %686 = vmatpush1.bf16.msra.mxu0 0
        %687 = vmatprep.subr.bf16.mxu0 0
        %688 = vmatpush1.bf16.msra.mxu0 0
        %689 = vmatprep.mubr.bf16.mxu0 0
        %690 = vmatmul.mubr.bf16.gmra.mrb[0].mxu0 %v585
        %v691 = vpop.f32.mrb[0].mxu0
        %v692 = vadd.f32 %v608, %v691
        %v693 = vpop.f32.mrb[0].mxu0
        %v694 = vpop.f32.mrb[0].mxu0
        %v695 = vadd.f32 %v608, %v694
        %v696 = vpop.f32.mrb[0].mxu0
        %697 = vmatprep.mubr.bf16.mxu0 0
        %698 = vmatmul.mubr.bf16.gmra.mrb[0].mxu0 %v586
        %v699 = vpop.f32.mrb[0].mxu0
        %v700 = vadd.f32 %v608, %v699
        %v701 = vpop.f32.mrb[0].mxu0
        %v702 = vpop.f32.mrb[0].mxu0
        %v703 = vpop.f32.mrb[0].mxu0
        %704 = vdwg.mxu0
        %v705 = vmul.f32 %v692, %v692
        %v706 = vmul.f32 %v695, %v695
        %v707 = vmul.f32 %v700, %v700
        %708 = vadd.xlane.f32.xlu0 %v705
        %v709 = vpop.xlane.xlu0 %708
        %710 = vadd.xlane.f32.xlu0 %v706
        %v711 = vpop.xlane.xlu0 %710
        %712 = vadd.xlane.f32.xlu0 %v707
        %v713 = vpop.xlane.xlu0 %712
        %v714 = vmax.f32 %v709, 1e-24
        %v715 = vmax.f32 %v711, 1e-24
        %v716 = vmax.f32 %v713, 1e-24
        %v717 = vrsqrt.pop %v714
        %v718 = vrsqrt.pop %v715
        %v719 = vrsqrt.pop %v716
        %v720 = vmul.f32 %v692, %v717
        %v721 = vmul.f32 %v695, %v718
        %v722 = vmul.f32 %v700, %v719
        %v723 = vpack.c.bf16 %v721, %v720
        %v724 = vpack.c.bf16 %v722, %v722
        %s725 = scalar_lea.vmem [#allocation5], 192
        %v726 = vld [vmem:[%s725] sm:$0xf]
        %v727 = vld [vmem:[%s725 + $0x4] sm:$0xf]
        %v728 = vld [vmem:[%s725 + $0x8] sm:$0xf]
        %v729 = vld [vmem:[%s725 + $0xc] sm:$0xf]
        %v730 = vld [vmem:[%s725 + $0x10] sm:$0xf]
        %v731 = vld [vmem:[%s725 + $0x14] sm:$0xf]
        %v732 = vld [vmem:[%s725 + $0x18] sm:$0xf]
        %v733 = vld [vmem:[%s725 + $0x1c] sm:$0xf]
        %v734 = vld [vmem:[%s725 + $0x20] sm:$0xf]
        %v735 = vld [vmem:[%s725 + $0x24] sm:$0xf]
        %v736 = vld [vmem:[%s725 + $0x28] sm:$0xf]
        %v737 = vld [vmem:[%s725 + $0x2c] sm:$0xf]
        %v738 = vld [vmem:[%s725 + $0x30] sm:$0xf]
        %v739 = vld [vmem:[%s725 + $0x34] sm:$0xf]
        %v740 = vld [vmem:[%s725 + $0x38] sm:$0xf]
        %v741 = vld [vmem:[%s725 + $0x3c] sm:$0xf]
        %v742 = vld [vmem:[#allocation7 + $0x7] sm:$0x1]
        %v743 = vlaneseq
        %v744 = vshrl.u32 %v743, 7
        %v745 = vsub.s32 0, %v744
        %v746 = vrot.slane %v742, %v745
        %v763 = vunpack.c.l.b16 %v726
        %v764 = vunpack.c.l.b16 %v727
        %v765 = vunpack.c.l.b16 %v728
        %v766 = vunpack.c.l.b16 %v729
        %v767 = vunpack.c.l.b16 %v730
        %v768 = vunpack.c.l.b16 %v731
        %v769 = vunpack.c.l.b16 %v732
        %v770 = vunpack.c.l.b16 %v733
        %v771 = vunpack.c.l.b16 %v734
        %v772 = vunpack.c.l.b16 %v735
        %v773 = vunpack.c.l.b16 %v736
        %v774 = vunpack.c.l.b16 %v737
        %v775 = vunpack.c.l.b16 %v738
        %v776 = vunpack.c.l.b16 %v739
        %v777 = vunpack.c.l.b16 %v740
        %v778 = vunpack.c.l.b16 %v741
        %v779 = vpack.c.b16 %v764, %v763
        %v780 = vpack.c.b16 %v766, %v765
        %v781 = vpack.c.b16 %v768, %v767
        %v782 = vpack.c.b16 %v770, %v769
        %v783 = vpack.c.b16 %v772, %v771
        %v784 = vpack.c.b16 %v774, %v773
        %v785 = vpack.c.b16 %v776, %v775
        %v786 = vpack.c.b16 %v778, %v777
        %795 = vmatprep.subr.bf16.mxu0 0
        %796 = vmatpush1.bf16.msra.mxu0 %v779
        %797 = vmatprep.subr.bf16.mxu0 0
        %798 = vmatpush1.bf16.msra.mxu0 %v780
        %799 = vmatprep.subr.bf16.mxu0 0
        %800 = vmatpush1.bf16.msra.mxu0 %v781
        %801 = vmatprep.subr.bf16.mxu0 0
        %802 = vmatpush1.bf16.msra.mxu0 %v782
        %803 = vmatprep.subr.bf16.mxu0 0
        %804 = vmatpush1.bf16.msra.mxu0 %v783
        %805 = vmatprep.subr.bf16.mxu0 0
        %806 = vmatpush1.bf16.msra.mxu0 %v784
        %807 = vmatprep.subr.bf16.mxu0 0
        %808 = vmatpush1.bf16.msra.mxu0 %v785
        %809 = vmatprep.subr.bf16.mxu0 0
        %810 = vmatpush1.bf16.msra.mxu0 %v786
        %811 = vmatprep.subr.bf16.mxu0 0
        %812 = vmatpush1.bf16.msra.mxu0 0
        %813 = vmatprep.subr.bf16.mxu0 0
        %814 = vmatpush1.bf16.msra.mxu0 0
        %815 = vmatprep.subr.bf16.mxu0 0
        %816 = vmatpush1.bf16.msra.mxu0 0
        %817 = vmatprep.subr.bf16.mxu0 0
        %818 = vmatpush1.bf16.msra.mxu0 0
        %819 = vmatprep.subr.bf16.mxu0 0
        %820 = vmatpush1.bf16.msra.mxu0 0
        %821 = vmatprep.subr.bf16.mxu0 0
        %822 = vmatpush1.bf16.msra.mxu0 0
        %823 = vmatprep.subr.bf16.mxu0 0
        %824 = vmatpush1.bf16.msra.mxu0 0
        %825 = vmatprep.subr.bf16.mxu0 0
        %826 = vmatpush1.bf16.msra.mxu0 0
        %827 = vmatprep.mubr.bf16.mxu0 0
        %828 = vmatmul.mubr.bf16.gmra.mrb[0].mxu0 %v723
        %v829 = vpop.f32.mrb[0].mxu0
        %v830 = vadd.f32 %v746, %v829
        %v831 = vpop.f32.mrb[0].mxu0
        %v832 = vpop.f32.mrb[0].mxu0
        %v833 = vadd.f32 %v746, %v832
        %v834 = vpop.f32.mrb[0].mxu0
        %835 = vmatprep.mubr.bf16.mxu0 0
        %836 = vmatmul.mubr.bf16.gmra.mrb[0].mxu0 %v724
        %v837 = vpop.f32.mrb[0].mxu0
        %v838 = vadd.f32 %v746, %v837
        %v839 = vpop.f32.mrb[0].mxu0
        %v840 = vpop.f32.mrb[0].mxu0
        %v841 = vpop.f32.mrb[0].mxu0
        %842 = vdwg.mxu0
        %v843 = vld [vmem:[#allocation7 + $0xf] sm:$0x1]
        %v844 = vlaneseq
        %v845 = vshrl.u32 %v844, 7
        %v846 = vsub.s32 0, %v845
        %v847 = vrot.slane %v843, %v846
        %v848 = vmul.f32 %v830, %v847
        %v849 = vmul.f32 %v833, %v847
        %v850 = vmul.f32 %v838, %v847
        %v851 = vmax.f32 %v830, 0.0
        %v852 = vmax.f32 %v833, 0.0
        %v853 = vmax.f32 %v838, 0.0
        %v854 = vld [vmem:[#allocation7 + $0x10] sm:$0x1]
        %v855 = vlaneseq
        %v856 = vshrl.u32 %v855, 7
        %v857 = vsub.s32 0, %v856
        %v858 = vrot.slane %v854, %v857
        %v859 = vmul.f32 %v851, %v858
        %v860 = vmul.f32 %v852, %v858
        %v861 = vmul.f32 %v853, %v858
        %862 = vadd.xlane.f32.xlu0 %v848
        %v863 = vpop.xlane.xlu0 %862
        %864 = vadd.xlane.f32.xlu0 %v849
        %v865 = vpop.xlane.xlu0 %864
        %866 = vadd.xlane.f32.xlu0 %v850
        %v867 = vpop.xlane.xlu0 %866
        %v868 = vmul.f32 %v863, 0.015625
        %v869 = vmul.f32 %v865, 0.015625
        %v870 = vmul.f32 %v867, 0.015625
        %v871 = vmul.f32 %v848, %v848
        %v872 = vmul.f32 %v849, %v849
        %v873 = vmul.f32 %v850, %v850
        %874 = vadd.xlane.f32.xlu0 %v871
        %v875 = vpop.xlane.xlu0 %874
        %876 = vadd.xlane.f32.xlu0 %v872
        %v877 = vpop.xlane.xlu0 %876
        %878 = vadd.xlane.f32.xlu0 %v873
        %v879 = vpop.xlane.xlu0 %878
        %v880 = vmul.f32 %v875, 0.015625
        %v881 = vmul.f32 %v877, 0.015625
        %v882 = vmul.f32 %v879, 0.015625
        %v883 = vmul.f32 %v868, %v868
        %v884 = vmul.f32 %v869, %v869
        %v885 = vmul.f32 %v870, %v870
        %v886 = vsub.f32 %v880, %v883
        %v887 = vsub.f32 %v881, %v884
        %v888 = vsub.f32 %v882, %v885
        %v889 = vmax.f32 %v886, 0.0
        %v890 = vmax.f32 %v887, 0.0
        %v891 = vmax.f32 %v888, 0.0
        %v892 = vsub.f32 %v848, %v868
        %v893 = vsub.f32 %v849, %v869
        %v894 = vsub.f32 %v850, %v870
        %v895 = vadd.f32 %v889, 1e-05
        %v896 = vadd.f32 %v890, 1e-05
        %v897 = vadd.f32 %v891, 1e-05
        %v898 = vrsqrt.pop %v895
        %v899 = vrsqrt.pop %v896
        %v900 = vrsqrt.pop %v897
        %v901 = vmul.f32 %v892, %v898
        %v902 = vmul.f32 %v893, %v899
        %v903 = vmul.f32 %v894, %v900
        %v904 = vld [vmem:[#allocation7 + $0x8] sm:$0x1]
        %v905 = vlaneseq
        %v906 = vshrl.u32 %v905, 7
        %v907 = vsub.s32 0, %v906
        %v908 = vrot.slane %v904, %v907
        %v909 = vmul.f32 %v901, %v908
        %v910 = vmul.f32 %v902, %v908
        %v911 = vmul.f32 %v903, %v908
        %v912 = vld [vmem:[#allocation7 + $0x9] sm:$0x1]
        %v913 = vlaneseq
        %v914 = vshrl.u32 %v913, 7
        %v915 = vsub.s32 0, %v914
        %v916 = vrot.slane %v912, %v915
        %v917 = vadd.f32 %v909, %v916
        %v918 = vadd.f32 %v910, %v916
        %v919 = vadd.f32 %v911, %v916
        %v920 = vmax.f32 %v917, 0.0
        %v921 = vmax.f32 %v918, 0.0
        %v922 = vmax.f32 %v919, 0.0
        %v923 = vpack.c.bf16 %v921, %v920
        %v924 = vpack.c.bf16 %v922, %v922
        %s925 = scalar_lea.vmem [#allocation5], 256
        %v926 = vld [vmem:[%s925] sm:$0xf]
        %v927 = vld [vmem:[%s925 + $0x4] sm:$0xf]
        %v928 = vld [vmem:[%s925 + $0x8] sm:$0xf]
        %v929 = vld [vmem:[%s925 + $0xc] sm:$0xf]
        %v930 = vld [vmem:[%s925 + $0x10] sm:$0xf]
        %v931 = vld [vmem:[%s925 + $0x14] sm:$0xf]
        %v932 = vld [vmem:[%s925 + $0x18] sm:$0xf]
        %v933 = vld [vmem:[%s925 + $0x1c] sm:$0xf]
        %v934 = vld [vmem:[%s925 + $0x20] sm:$0xf]
        %v935 = vld [vmem:[%s925 + $0x24] sm:$0xf]
        %v936 = vld [vmem:[%s925 + $0x28] sm:$0xf]
        %v937 = vld [vmem:[%s925 + $0x2c] sm:$0xf]
        %v938 = vld [vmem:[%s925 + $0x30] sm:$0xf]
        %v939 = vld [vmem:[%s925 + $0x34] sm:$0xf]
        %v940 = vld [vmem:[%s925 + $0x38] sm:$0xf]
        %v941 = vld [vmem:[%s925 + $0x3c] sm:$0xf]
        %v942 = vld [vmem:[#allocation7 + $0xa] sm:$0x1]
        %v943 = vlaneseq
        %v944 = vshrl.u32 %v943, 7
        %v945 = vsub.s32 0, %v944
        %v946 = vrot.slane %v942, %v945
        %v963 = vunpack.c.l.b16 %v926
        %v964 = vunpack.c.l.b16 %v927
        %v965 = vunpack.c.l.b16 %v928
        %v966 = vunpack.c.l.b16 %v929
        %v967 = vunpack.c.l.b16 %v930
        %v968 = vunpack.c.l.b16 %v931
        %v969 = vunpack.c.l.b16 %v932
        %v970 = vunpack.c.l.b16 %v933
        %v971 = vunpack.c.l.b16 %v934
        %v972 = vunpack.c.l.b16 %v935
        %v973 = vunpack.c.l.b16 %v936
        %v974 = vunpack.c.l.b16 %v937
        %v975 = vunpack.c.l.b16 %v938
        %v976 = vunpack.c.l.b16 %v939
        %v977 = vunpack.c.l.b16 %v940
        %v978 = vunpack.c.l.b16 %v941
        %v979 = vpack.c.b16 %v964, %v963
        %v980 = vpack.c.b16 %v966, %v965
        %v981 = vpack.c.b16 %v968, %v967
        %v982 = vpack.c.b16 %v970, %v969
        %v983 = vpack.c.b16 %v972, %v971
        %v984 = vpack.c.b16 %v974, %v973
        %v985 = vpack.c.b16 %v976, %v975
        %v986 = vpack.c.b16 %v978, %v977
        %995 = vmatprep.subr.bf16.mxu0 0
        %996 = vmatpush1.bf16.msra.mxu0 %v979
        %997 = vmatprep.subr.bf16.mxu0 0
        %998 = vmatpush1.bf16.msra.mxu0 %v980
        %999 = vmatprep.subr.bf16.mxu0 0
        %1000 = vmatpush1.bf16.msra.mxu0 %v981
        %1001 = vmatprep.subr.bf16.mxu0 0
        %1002 = vmatpush1.bf16.msra.mxu0 %v982
        %1003 = vmatprep.subr.bf16.mxu0 0
        %1004 = vmatpush1.bf16.msra.mxu0 %v983
        %1005 = vmatprep.subr.bf16.mxu0 0
        %1006 = vmatpush1.bf16.msra.mxu0 %v984
        %1007 = vmatprep.subr.bf16.mxu0 0
        %1008 = vmatpush1.bf16.msra.mxu0 %v985
        %1009 = vmatprep.subr.bf16.mxu0 0
        %1010 = vmatpush1.bf16.msra.mxu0 %v986
        %1011 = vmatprep.subr.bf16.mxu0 0
        %1012 = vmatpush1.bf16.msra.mxu0 0
        %1013 = vmatprep.subr.bf16.mxu0 0
        %1014 = vmatpush1.bf16.msra.mxu0 0
        %1015 = vmatprep.subr.bf16.mxu0 0
        %1016 = vmatpush1.bf16.msra.mxu0 0
        %1017 = vmatprep.subr.bf16.mxu0 0
        %1018 = vmatpush1.bf16.msra.mxu0 0
        %1019 = vmatprep.subr.bf16.mxu0 0
        %1020 = vmatpush1.bf16.msra.mxu0 0
        %1021 = vmatprep.subr.bf16.mxu0 0
        %1022 = vmatpush1.bf16.msra.mxu0 0
        %1023 = vmatprep.subr.bf16.mxu0 0
        %1024 = vmatpush1.bf16.msra.mxu0 0
        %1025 = vmatprep.subr.bf16.mxu0 0
        %1026 = vmatpush1.bf16.msra.mxu0 0
        %1027 = vmatprep.mubr.bf16.mxu0 0
        %1028 = vmatmul.mubr.bf16.gmra.mrb[0].mxu0 %v923
        %v1029 = vpop.f32.mrb[0].mxu0
        %v1030 = vadd.f32 %v946, %v1029
        %v1031 = vpop.f32.mrb[0].mxu0
        %v1032 = vpop.f32.mrb[0].mxu0
        %v1033 = vadd.f32 %v946, %v1032
        %v1034 = vpop.f32.mrb[0].mxu0
        %1035 = vmatprep.mubr.bf16.mxu0 0
        %1036 = vmatmul.mubr.bf16.gmra.mrb[0].mxu0 %v924
        %v1037 = vpop.f32.mrb[0].mxu0
        %v1038 = vadd.f32 %v946, %v1037
        %v1039 = vpop.f32.mrb[0].mxu0
        %v1040 = vpop.f32.mrb[0].mxu0
        %v1041 = vpop.f32.mrb[0].mxu0
        %1042 = vdwg.mxu0
        %1043 = vadd.xlane.f32.xlu0 %v1030
        %v1044 = vpop.xlane.xlu0 %1043
        %1045 = vadd.xlane.f32.xlu0 %v1033
        %v1046 = vpop.xlane.xlu0 %1045
        %1047 = vadd.xlane.f32.xlu0 %v1038
        %v1048 = vpop.xlane.xlu0 %1047
        %v1049 = vmul.f32 %v1044, 0.0078125
        %v1050 = vmul.f32 %v1046, 0.0078125
        %v1051 = vmul.f32 %v1048, 0.0078125
        %v1052 = vmul.f32 %v1030, %v1030
        %v1053 = vmul.f32 %v1033, %v1033
        %v1054 = vmul.f32 %v1038, %v1038
        %1055 = vadd.xlane.f32.xlu0 %v1052
        %v1056 = vpop.xlane.xlu0 %1055
        %1057 = vadd.xlane.f32.xlu0 %v1053
        %v1058 = vpop.xlane.xlu0 %1057
        %1059 = vadd.xlane.f32.xlu0 %v1054
        %v1060 = vpop.xlane.xlu0 %1059
        %v1061 = vmul.f32 %v1056, 0.0078125
        %v1062 = vmul.f32 %v1058, 0.0078125
        %v1063 = vmul.f32 %v1060, 0.0078125
        %v1064 = vmul.f32 %v1049, %v1049
        %v1065 = vmul.f32 %v1050, %v1050
        %v1066 = vmul.f32 %v1051, %v1051
        %v1067 = vsub.f32 %v1061, %v1064
        %v1068 = vsub.f32 %v1062, %v1065
        %v1069 = vsub.f32 %v1063, %v1066
        %v1070 = vmax.f32 %v1067, 0.0
        %v1071 = vmax.f32 %v1068, 0.0
        %v1072 = vmax.f32 %v1069, 0.0
        %v1073 = vsub.f32 %v1030, %v1049
        %v1074 = vsub.f32 %v1033, %v1050
        %v1075 = vsub.f32 %v1038, %v1051
        %v1076 = vadd.f32 %v1070, 1e-05
        %v1077 = vadd.f32 %v1071, 1e-05
        %v1078 = vadd.f32 %v1072, 1e-05
        %v1079 = vrsqrt.pop %v1076
        %v1080 = vrsqrt.pop %v1077
        %v1081 = vrsqrt.pop %v1078
        %v1082 = vmul.f32 %v1073, %v1079
        %v1083 = vmul.f32 %v1074, %v1080
        %v1084 = vmul.f32 %v1075, %v1081
        %v1085 = vld [vmem:[#allocation7 + $0xb] sm:$0x1]
        %v1086 = vlaneseq
        %v1087 = vshrl.u32 %v1086, 7
        %v1088 = vsub.s32 0, %v1087
        %v1089 = vrot.slane %v1085, %v1088
        %v1090 = vmul.f32 %v1082, %v1089
        %v1091 = vmul.f32 %v1083, %v1089
        %v1092 = vmul.f32 %v1084, %v1089
        %v1093 = vld [vmem:[#allocation7 + $0xc] sm:$0x1]
        %v1094 = vlaneseq
        %v1095 = vshrl.u32 %v1094, 7
        %v1096 = vsub.s32 0, %v1095
        %v1097 = vrot.slane %v1093, %v1096
        %v1098 = vadd.f32 %v1090, %v1097
        %v1099 = vadd.f32 %v1091, %v1097
        %v1100 = vadd.f32 %v1092, %v1097
        %v1101 = vmax.f32 %v1098, 0.0
        %v1102 = vmax.f32 %v1099, 0.0
        %v1103 = vmax.f32 %v1100, 0.0
        %v1104 = vpack.c.bf16 %v1102, %v1101
        %v1105 = vpack.c.bf16 %v1103, %v1103
        %s1106 = scalar_lea.vmem [#allocation5], 320
        %v1107 = vld [vmem:[%s1106] sm:$0xf]
        %v1108 = vld [vmem:[%s1106 + $0x4] sm:$0xf]
        %v1109 = vld [vmem:[%s1106 + $0x8] sm:$0xf]
        %v1110 = vld [vmem:[%s1106 + $0xc] sm:$0xf]
        %v1111 = vld [vmem:[%s1106 + $0x10] sm:$0xf]
        %v1112 = vld [vmem:[%s1106 + $0x14] sm:$0xf]
        %v1113 = vld [vmem:[%s1106 + $0x18] sm:$0xf]
        %v1114 = vld [vmem:[%s1106 + $0x1c] sm:$0xf]
        %v1115 = vld [vmem:[%s1106 + $0x20] sm:$0xf]
        %v1116 = vld [vmem:[%s1106 + $0x24] sm:$0xf]
        %v1117 = vld [vmem:[%s1106 + $0x28] sm:$0xf]
        %v1118 = vld [vmem:[%s1106 + $0x2c] sm:$0xf]
        %v1119 = vld [vmem:[%s1106 + $0x30] sm:$0xf]
        %v1120 = vld [vmem:[%s1106 + $0x34] sm:$0xf]
        %v1121 = vld [vmem:[%s1106 + $0x38] sm:$0xf]
        %v1122 = vld [vmem:[%s1106 + $0x3c] sm:$0xf]
        %v1123 = vld [vmem:[#allocation7 + $0xd] sm:$0x1]
        %v1124 = vlaneseq
        %v1125 = vshrl.u32 %v1124, 7
        %v1126 = vsub.s32 0, %v1125
        %v1127 = vrot.slane %v1123, %v1126
        %v1144 = vunpack.c.l.b16 %v1107
        %v1145 = vunpack.c.l.b16 %v1108
        %v1146 = vunpack.c.l.b16 %v1109
        %v1147 = vunpack.c.l.b16 %v1110
        %v1148 = vunpack.c.l.b16 %v1111
        %v1149 = vunpack.c.l.b16 %v1112
        %v1150 = vunpack.c.l.b16 %v1113
        %v1151 = vunpack.c.l.b16 %v1114
        %v1152 = vunpack.c.l.b16 %v1115
        %v1153 = vunpack.c.l.b16 %v1116
        %v1154 = vunpack.c.l.b16 %v1117
        %v1155 = vunpack.c.l.b16 %v1118
        %v1156 = vunpack.c.l.b16 %v1119
        %v1157 = vunpack.c.l.b16 %v1120
        %v1158 = vunpack.c.l.b16 %v1121
        %v1159 = vunpack.c.l.b16 %v1122
        %v1160 = vpack.c.b16 %v1145, %v1144
        %v1161 = vpack.c.b16 %v1147, %v1146
        %v1162 = vpack.c.b16 %v1149, %v1148
        %v1163 = vpack.c.b16 %v1151, %v1150
        %v1164 = vpack.c.b16 %v1153, %v1152
        %v1165 = vpack.c.b16 %v1155, %v1154
        %v1166 = vpack.c.b16 %v1157, %v1156
        %v1167 = vpack.c.b16 %v1159, %v1158
        %1176 = vmatprep.subr.bf16.mxu0 0
        %1177 = vmatpush1.bf16.msra.mxu0 %v1160
        %1178 = vmatprep.subr.bf16.mxu0 0
        %1179 = vmatpush1.bf16.msra.mxu0 %v1161
        %1180 = vmatprep.subr.bf16.mxu0 0
        %1181 = vmatpush1.bf16.msra.mxu0 %v1162
        %1182 = vmatprep.subr.bf16.mxu0 0
        %1183 = vmatpush1.bf16.msra.mxu0 %v1163
        %1184 = vmatprep.subr.bf16.mxu0 0
        %1185 = vmatpush1.bf16.msra.mxu0 %v1164
        %1186 = vmatprep.subr.bf16.mxu0 0
        %1187 = vmatpush1.bf16.msra.mxu0 %v1165
        %1188 = vmatprep.subr.bf16.mxu0 0
        %1189 = vmatpush1.bf16.msra.mxu0 %v1166
        %1190 = vmatprep.subr.bf16.mxu0 0
        %1191 = vmatpush1.bf16.msra.mxu0 %v1167
        %1192 = vmatprep.subr.bf16.mxu0 0
        %1193 = vmatpush1.bf16.msra.mxu0 0
        %1194 = vmatprep.subr.bf16.mxu0 0
        %1195 = vmatpush1.bf16.msra.mxu0 0
        %1196 = vmatprep.subr.bf16.mxu0 0
        %1197 = vmatpush1.bf16.msra.mxu0 0
        %1198 = vmatprep.subr.bf16.mxu0 0
        %1199 = vmatpush1.bf16.msra.mxu0 0
        %1200 = vmatprep.subr.bf16.mxu0 0
        %1201 = vmatpush1.bf16.msra.mxu0 0
        %1202 = vmatprep.subr.bf16.mxu0 0
        %1203 = vmatpush1.bf16.msra.mxu0 0
        %1204 = vmatprep.subr.bf16.mxu0 0
        %1205 = vmatpush1.bf16.msra.mxu0 0
        %1206 = vmatprep.subr.bf16.mxu0 0
        %1207 = vmatpush1.bf16.msra.mxu0 0
        %1208 = vmatprep.mubr.bf16.mxu0 0
        %1209 = vmatmul.mubr.bf16.gmra.mrb[0].mxu0 %v1104
        %v1210 = vpop.f32.mrb[0].mxu0
        %v1211 = vadd.f32 %v1127, %v1210
        %v1212 = vpop.f32.mrb[0].mxu0
        %v1213 = vpop.f32.mrb[0].mxu0
        %v1214 = vadd.f32 %v1127, %v1213
        %v1215 = vpop.f32.mrb[0].mxu0
        %1216 = vmatprep.mubr.bf16.mxu0 0
        %1217 = vmatmul.mubr.bf16.gmra.mrb[0].mxu0 %v1105
        %v1218 = vpop.f32.mrb[0].mxu0
        %v1219 = vadd.f32 %v1127, %v1218
        %v1220 = vpop.f32.mrb[0].mxu0
        %v1221 = vpop.f32.mrb[0].mxu0
        %v1222 = vpop.f32.mrb[0].mxu0
        %1223 = vdwg.mxu0
        %v1224 = vpack.c.bf16 %v860, %v859
        %v1225 = vpack.c.bf16 %v861, %v861
        %s1226 = scalar_lea.vmem [#allocation5], 384
        %v1227 = vld [vmem:[%s1226] sm:$0xf]
        %v1228 = vld [vmem:[%s1226 + $0x4] sm:$0xf]
        %v1229 = vld [vmem:[%s1226 + $0x8] sm:$0xf]
        %v1230 = vld [vmem:[%s1226 + $0xc] sm:$0xf]
        %v1231 = vld [vmem:[%s1226 + $0x10] sm:$0xf]
        %v1232 = vld [vmem:[%s1226 + $0x14] sm:$0xf]
        %v1233 = vld [vmem:[%s1226 + $0x18] sm:$0xf]
        %v1234 = vld [vmem:[%s1226 + $0x1c] sm:$0xf]
        %v1235 = vld [vmem:[%s1226 + $0x20] sm:$0xf]
        %v1236 = vld [vmem:[%s1226 + $0x24] sm:$0xf]
        %v1237 = vld [vmem:[%s1226 + $0x28] sm:$0xf]
        %v1238 = vld [vmem:[%s1226 + $0x2c] sm:$0xf]
        %v1239 = vld [vmem:[%s1226 + $0x30] sm:$0xf]
        %v1240 = vld [vmem:[%s1226 + $0x34] sm:$0xf]
        %v1241 = vld [vmem:[%s1226 + $0x38] sm:$0xf]
        %v1242 = vld [vmem:[%s1226 + $0x3c] sm:$0xf]
        %v1243 = vld [vmem:[#allocation7 + $0xe] sm:$0x1]
        %v1244 = vlaneseq
        %v1245 = vshrl.u32 %v1244, 7
        %v1246 = vsub.s32 0, %v1245
        %v1247 = vrot.slane %v1243, %v1246
        %v1264 = vunpack.c.l.b16 %v1227
        %v1265 = vunpack.c.l.b16 %v1228
        %v1266 = vunpack.c.l.b16 %v1229
        %v1267 = vunpack.c.l.b16 %v1230
        %v1268 = vunpack.c.l.b16 %v1231
        %v1269 = vunpack.c.l.b16 %v1232
        %v1270 = vunpack.c.l.b16 %v1233
        %v1271 = vunpack.c.l.b16 %v1234
        %v1272 = vunpack.c.l.b16 %v1235
        %v1273 = vunpack.c.l.b16 %v1236
        %v1274 = vunpack.c.l.b16 %v1237
        %v1275 = vunpack.c.l.b16 %v1238
        %v1276 = vunpack.c.l.b16 %v1239
        %v1277 = vunpack.c.l.b16 %v1240
        %v1278 = vunpack.c.l.b16 %v1241
        %v1279 = vunpack.c.l.b16 %v1242
        %v1280 = vpack.c.b16 %v1265, %v1264
        %v1281 = vpack.c.b16 %v1267, %v1266
        %v1282 = vpack.c.b16 %v1269, %v1268
        %v1283 = vpack.c.b16 %v1271, %v1270
        %v1284 = vpack.c.b16 %v1273, %v1272
        %v1285 = vpack.c.b16 %v1275, %v1274
        %v1286 = vpack.c.b16 %v1277, %v1276
        %v1287 = vpack.c.b16 %v1279, %v1278
        %1296 = vmatprep.subr.bf16.mxu0 0
        %1297 = vmatpush1.bf16.msra.mxu0 %v1280
        %1298 = vmatprep.subr.bf16.mxu0 0
        %1299 = vmatpush1.bf16.msra.mxu0 %v1281
        %1300 = vmatprep.subr.bf16.mxu0 0
        %1301 = vmatpush1.bf16.msra.mxu0 %v1282
        %1302 = vmatprep.subr.bf16.mxu0 0
        %1303 = vmatpush1.bf16.msra.mxu0 %v1283
        %1304 = vmatprep.subr.bf16.mxu0 0
        %1305 = vmatpush1.bf16.msra.mxu0 %v1284
        %1306 = vmatprep.subr.bf16.mxu0 0
        %1307 = vmatpush1.bf16.msra.mxu0 %v1285
        %1308 = vmatprep.subr.bf16.mxu0 0
        %1309 = vmatpush1.bf16.msra.mxu0 %v1286
        %1310 = vmatprep.subr.bf16.mxu0 0
        %1311 = vmatpush1.bf16.msra.mxu0 %v1287
        %1312 = vmatprep.subr.bf16.mxu0 0
        %1313 = vmatpush1.bf16.msra.mxu0 0
        %1314 = vmatprep.subr.bf16.mxu0 0
        %1315 = vmatpush1.bf16.msra.mxu0 0
        %1316 = vmatprep.subr.bf16.mxu0 0
        %1317 = vmatpush1.bf16.msra.mxu0 0
        %1318 = vmatprep.subr.bf16.mxu0 0
        %1319 = vmatpush1.bf16.msra.mxu0 0
        %1320 = vmatprep.subr.bf16.mxu0 0
        %1321 = vmatpush1.bf16.msra.mxu0 0
        %1322 = vmatprep.subr.bf16.mxu0 0
        %1323 = vmatpush1.bf16.msra.mxu0 0
        %1324 = vmatprep.subr.bf16.mxu0 0
        %1325 = vmatpush1.bf16.msra.mxu0 0
        %1326 = vmatprep.subr.bf16.mxu0 0
        %1327 = vmatpush1.bf16.msra.mxu0 0
        %1328 = vmatprep.mubr.bf16.mxu0 0
        %1329 = vmatmul.mubr.bf16.gmra.mrb[0].mxu0 %v1224
        %v1330 = vpop.f32.mrb[0].mxu0
        %v1331 = vadd.f32 %v1247, %v1330
        %v1332 = vpop.f32.mrb[0].mxu0
        %v1333 = vpop.f32.mrb[0].mxu0
        %v1334 = vadd.f32 %v1247, %v1333
        %v1335 = vpop.f32.mrb[0].mxu0
        %1336 = vmatprep.mubr.bf16.mxu0 0
        %1337 = vmatmul.mubr.bf16.gmra.mrb[0].mxu0 %v1225
        %v1338 = vpop.f32.mrb[0].mxu0
        %v1339 = vadd.f32 %v1247, %v1338
        %v1340 = vpop.f32.mrb[0].mxu0
        %v1341 = vpop.f32.mrb[0].mxu0
        %v1342 = vpop.f32.mrb[0].mxu0
        %1343 = vdwg.mxu0
        %v1344 = vadd.f32 %v1211, %v720
        %v1345 = vadd.f32 %v1214, %v721
        %v1346 = vadd.f32 %v1219, %v722
        %v1347 = vadd.f32 %v1344, %v1331
        %v1348 = vadd.f32 %v1345, %v1334
        %v1349 = vadd.f32 %v1346, %v1339
        %1350 = vst [vmem:[%s217] sm:$0xff] %v1347
        %1351 = vst [vmem:[%s217 + $0x8] sm:$0xff] %v1348
        %1352 = vst [vmem:[%s217 + $0x10] sm:$0xff] %v1349
        %s1353 = sand.u32 %s97, 1
        %s1354 = scalar_lea.sflag [#allocation4], %s1353
        %s1355 = sand.u32 %s97, 1
        %s1356 = smul.addr %s1355, 24
        %s1357 = scalar_lea.vmem [#allocation8], %s1356
        // Predicated region
        $region45: #{tpu_custom_call.1} parent=31 // pred_check
          %p1358 = pneg %p107
        $region46: #{tpu_custom_call.1} parent=31 // pred_check_branch
          %1360 = sbr.rel (%p1358) target = $region48
        $region47: #{tpu_custom_call.1} parent=31 // pred_region
          %s1361 = smul.u32 3, %s21
          %s1363 = ssub.s32 384, 384
          %1364 = vsyncadd %s1354, %s1363
          %s1365 = smul.addr %s1361, 128
          %s1366 = scalar_lea.hbm %s3, %s1365
          %s1367 = sshll.u32 %s1357, 4
          %s1368 = int_to_ptr.vmem [resolvable:$true] %s1367
          %1373 = dma.vmem_to_hbm [thread:$0]  %s1368, 384, %s1366, %s1354, 128, 128, 8
        $region48: #{tpu_custom_call.1} parent=31 // pred_fallthru
          _
      $region32: #{tpu_custom_call.1} parent=5 // pred_fallthru
        _
      %p1374 = scmp.le.s32.totalorder 2, %s16
      // Predicated region
      $region49: #{tpu_custom_call.1} parent=5 // pred_check
        %p1375 = pneg %p1374
      $region50: #{tpu_custom_call.1} parent=5 // pred_check_branch
        %1377 = sbr.rel (%p1375) target = $region52
      $region51: #{tpu_custom_call.1} parent=5 // pred_region
        %s1378 = ssub.s32 %s16, 2
        // Predicated region
        $region53: #{tpu_custom_call.1} parent=51 // pred_check
          %p1379 = pneg %p113
        $region54: #{tpu_custom_call.1} parent=51 // pred_check_branch
          %1381 = sbr.rel (%p1379) target = $region56
        $region55: #{tpu_custom_call.1} parent=51 // pred_region
          %s1382 = sand.u32 %s98, 1
          %s1383 = scalar_lea.sflag [#allocation4], %s1382
          %s1384 = sand.u32 %s98, 1
          %s1385 = smul.addr %s1384, 24
          %s1386 = scalar_lea.vmem [#allocation8], %s1385
          %1387 = dma.done %s1383, 384
        $region56: #{tpu_custom_call.1} parent=51 // pred_fallthru
          _
      $region52: #{tpu_custom_call.1} parent=5 // pred_fallthru
        _
    $region6: #{tpu_custom_call.1} parent=1 // loop_footer
      %s20 = sadd.s32 1, %s16
    $region7: #{tpu_custom_call.1} parent=1 // loop_footer_branch
      %15 = sbr.rel target = $region3
    $region8: #{tpu_custom_call.1} parent=1 // loop_exit
      _
    %1388 = vsyncpa [#allocation3], 1
    %s1389 = scalar_lea.sflag [#allocation3], 1
    %1390 = vsyncpa %s1389, 1
    %1391 = vsyncpa [#allocation6], 1
    %1392 = vsyncpa [#allocation4], 1
    %s1393 = scalar_lea.sflag [#allocation4], 1
    %1394 = vsyncpa %s1393, 1

</llo_original>
